<compile_context>
chip_gen: v6e
topology: v6e:2x2x1
jax: 0.10.0
libtpu: 0.0.40
codegen_flags: <defaults>
</compile_context>

<pallas_src>
import jax
import jax.numpy as jnp
from jax import lax
from jax.experimental import pallas as pl
from jax.experimental.pallas import tpu as pltpu


def _net_forward_kernel(h0_ref, wl_ref, wr_ref, bias_ref, chart_ref, hs_ref):
    """One batch block (Bb sentences) per grid step.

    h0_ref    : (Bb, T, D)  f32   leaf embeddings (projected in the wrapper)
    wl_ref    : (D+1, D+1)  bf16  fused left weight  [[U, w_a^T], [0, 0]]
    wr_ref    : (D+1, D+1)  bf16  fused right weight [[V, w_b^T], [0, 0]]
    bias_ref  : (1, D)      f32   compose bias
    chart_ref : (Bb, T, T, D) f32 output chart
    hs_ref    : (T, Bb*T, D+1) f32 VMEM scratch: [hidden | score] per span,
                all Bb sentences flattened into one row axis (the MXU M-dim).
    """
    Bb, T, D = h0_ref.shape
    R = hs_ref.shape[1]                     # = Bb * T

    # Hoist weights / bias broadcast / position iota out of the unrolled loops
    # (JAX does not CSE broadcasts across loop bodies).
    wl = wl_ref[...]                                         # bf16
    wr = wr_ref[...]                                         # bf16
    bias = jnp.broadcast_to(bias_ref[...], (R, D))           # f32
    pos = lax.broadcasted_iota(jnp.int32, (R, 1), 0) % T     # start within sentence

    # Level 0: leaves.  Every hs row/lane of every level is written before it
    # is read, so no blanket scratch zero-fill is needed (and the output chart
    # is never zero-filled: each level writes a full masked slab exactly once).
    h0 = h0_ref[...].reshape(R, D)          # layout no-op for T % 8 == 0
    hs_ref[0, :, pl.ds(0, D)] = h0
    hs_ref[0, :, pl.ds(D, 1)] = jnp.zeros((R, 1), jnp.float32)
    for bb in range(Bb):
        chart_ref[bb, 0, :, :] = h0[bb * T:(bb + 1) * T, :]

    # ---- simplified DIORA inside pass, vectorized over all Bb*T rows ------
    # Both loops are static Python loops (T is compile-time small), so the
    # whole pass is straight-line code for the LLO scheduler.
    # TODO(synk): for production-size T keep the split loop as a
    # lax.fori_loop(..., unroll=True) to bound trace / compile size.
    for l in range(1, T):                   # span length = l + 1
        m = jnp.full((R, 1), -jnp.inf, jnp.float32)
        z = jnp.zeros((R, 1), jnp.float32)
        acc = jnp.zeros((R, D), jnp.float32)
        sacc = jnp.zeros((R, 1), jnp.float32)

        for k in range(l):                  # split point
            hs_l = hs_ref[k, :, :]                           # (R, D+1), aligned
            # Right child: aligned full-slab read + sublane roll on the XLU
            # slot instead of a misaligned dynamic sublane slice.  Rows that
            # wrap around (or bleed across sentence boundaries) land only in
            # start positions zeroed by the validity mask below.
            hs_r = pltpu.roll(hs_ref[l - k - 1, :, :],
                              shift=R - (k + 1), axis=0)     # (R, D+1)

            # One fused MXU contraction per child (bf16 operands, f32 acc):
            # columns [:D] -> composition pre-activation, column D -> the
            # w_a / w_b score terms.  The child-score pass-through is added
            # in f32 on the VPU so it never loses precision in bf16.
            y = (jnp.dot(hs_l.astype(jnp.bfloat16), wl,
                         preferred_element_type=jnp.float32)
                 + jnp.dot(hs_r.astype(jnp.bfloat16), wr,
                           preferred_element_type=jnp.float32))   # (R, D+1)
            comp = jnp.tanh(y[:, :D] + bias)                      # (R, D)
            score = y[:, D:D + 1] + hs_l[:, D:D + 1] + hs_r[:, D:D + 1]

            # Online softmax over splits, vectorized over all R rows.
            m_new = jnp.maximum(m, score)
            alpha = jnp.exp(m - m_new)
            w = jnp.exp(score - m_new)
            z = alpha * z + w
            acc = alpha * acc + w * comp
            sacc = alpha * sacc + w * score
            m = m_new

        inv_z = pl.reciprocal(z, approx=True)        # EUP slot (~1e-3 rel err)
        valid = pos < (T - l)                        # (R, 1)
        h_new = jnp.where(valid, acc * inv_z, 0.0)   # (R, D)
        s_new = jnp.where(valid, sacc * inv_z, 0.0)  # (R, 1)

        # Slab stores: one hidden + one score store per level, and one chart
        # slab per batch element in the block (not per start position).
        hs_ref[l, :, pl.ds(0, D)] = h_new
        hs_ref[l, :, pl.ds(D, 1)] = s_new
        for bb in range(Bb):
            chart_ref[bb, l, :, :] = h_new[bb * T:(bb + 1) * T, :]


def _pick_batch_block(B, T, target_rows=128):
    """Batch elements per grid step: pack ~target_rows MXU rows per matmul,
    but keep >= 2 grid steps when possible so the 'parallel' batch axis can
    still be sharded across both TensorCores on v7x."""
    cap = max(1, target_rows // T)
    bb = 1
    for cand in range(1, min(B, cap) + 1):
        if B % cand == 0:
            bb = cand
    if B > 1 and B // bb < 2:
        for cand in range(bb - 1, 0, -1):
            if B % cand == 0:
                bb = cand
                break
    return bb


def net_forward(tokens, params, compute_loss=True):
    """Mirrors Net.forward: returns {'chart': ..., 'total_loss': ...}."""
    table = params["embed_table"]
    w_proj = params["w_proj"]
    u, v = params["u"], params["v"]
    bias = params["bias"]
    w_a, w_b = params["w_a"], params["w_b"]
    D = w_proj.shape[1]

    # Embed: gather + one well-shaped (B*T, E) @ (E, D) matmul in XLA,
    # instead of B tiny matmuls inside the kernel.
    tok_emb = jnp.take(table, tokens, axis=0).astype(jnp.float32)   # (B, T, E)
    h0 = jnp.einsum("bte,ed->btd", tok_emb, w_proj)                 # (B, T, D)
    B, T, _ = h0.shape

    Bb = _pick_batch_block(B, T)
    R = Bb * T

    # Fused compose/score weights (bf16 MXU operands):
    #   y[:, :D] = h_l @ U + h_r @ V
    #   y[:,  D] = h_l . w_a + h_r . w_b
    # The child-score pass-through (s_l + s_r) is added in f32 inside the
    # kernel instead of flowing through the bf16 matmul.
    def fuse(w, score_w):
        wf = jnp.zeros((D + 1, D + 1), jnp.float32)
        wf = wf.at[:D, :D].set(w)
        wf = wf.at[:D, D].set(score_w[0])
        return wf.astype(jnp.bfloat16)

    wl = fuse(u, w_a)
    wr = fuse(v, w_b)

    # NOTE: for production-size T/D the double-buffered (Bb, T, T, D) chart
    # block would not fit v7x's 64 MiB VMEM — there, stream finished per-level
    # slabs to HBM (memory_space=pl.ANY + make_async_copy) instead.
    chart = pl.pallas_call(
        _net_forward_kernel,
        out_shape=jax.ShapeDtypeStruct((B, T, T, D), jnp.float32),
        grid_spec=pltpu.PrefetchScalarGridSpec(
            num_scalar_prefetch=0,
            grid=(B // Bb,),
            in_specs=[
                pl.BlockSpec((Bb, T, D), lambda b: (b, 0, 0)),       # leaf embeddings
                pl.BlockSpec((D + 1, D + 1), lambda b: (0, 0)),      # fused left weight
                pl.BlockSpec((D + 1, D + 1), lambda b: (0, 0)),      # fused right weight
                pl.BlockSpec((1, D), lambda b: (0, 0)),              # compose bias
            ],
            out_specs=pl.BlockSpec((Bb, T, T, D), lambda b: (b, 0, 0, 0)),
            scratch_shapes=[pltpu.VMEM((T, R, D + 1), jnp.float32)],
        ),
        compiler_params=pltpu.CompilerParams(
            # Batch blocks are fully independent -> shard across both TCs on
            # v7x (no-op on single-TC v5e/v6e).
            dimension_semantics=("parallel",)),
    )(h0, wl, wr, bias)

    # compute_loss with no registered loss funcs -> torch.full((1, 1), 1.0)
    loss = jnp.ones((1, 1), jnp.float32)

    ret = {}
    ret["chart"] = chart
    ret["total_loss"] = loss
    return ret


def init_params(key, vocab=50, embed_dim=32, hidden=32):
    ks = jax.random.split(key, 7)
    s = 0.1
    return {
        "embed_table": s * jax.random.normal(ks[0], (vocab, embed_dim), jnp.float32),
        "w_proj": s * jax.random.normal(ks[1], (embed_dim, hidden), jnp.float32),
        "u": s * jax.random.normal(ks[2], (hidden, hidden), jnp.float32),
        "v": s * jax.random.normal(ks[3], (hidden, hidden), jnp.float32),
        "bias": s * jax.random.normal(ks[4], (1, hidden), jnp.float32),
        "w_a": s * jax.random.normal(ks[5], (1, hidden), jnp.float32),
        "w_b": s * jax.random.normal(ks[6], (1, hidden), jnp.float32),
    }


if __name__ == "__main__":
    B, T, V, E, D = 2, 8, 50, 32, 32
    key = jax.random.PRNGKey(0)
    k_params, k_tok = jax.random.split(key)
    params = init_params(k_params, vocab=V, embed_dim=E, hidden=D)
    tokens = jax.random.randint(k_tok, (B, T), 0, V, dtype=jnp.int32)

    out = net_forward(tokens, params, compute_loss=True)
    chart = jax.block_until_ready(out["chart"])
    loss = jax.block_until_ready(out["total_loss"])

    assert chart.shape == (B, T, T, D)
    assert loss.shape == (1, 1)
    assert bool(jnp.all(jnp.isfinite(chart)))
    print("KERNEL_OK")
</pallas_src>

<mosaic_0001>
module attributes {stable_mosaic.version = 11 : i64} {
  func.func @_net_forward_kernel(%arg0: i32, %arg1: memref<1x8x32xf32, #tpu.memory_space<vmem>>, %arg2: memref<33x33xbf16, #tpu.memory_space<vmem>>, %arg3: memref<33x33xbf16, #tpu.memory_space<vmem>>, %arg4: memref<1x32xf32, #tpu.memory_space<vmem>>, %arg5: memref<1x8x8x32xf32, #tpu.memory_space<vmem>>, %arg6: memref<8x8x33xf32, #tpu.memory_space<vmem>>) attributes {dimension_semantics = [#tpu.dimension_semantics<parallel>], iteration_bounds = array<i64: 2>, scalar_prefetch = 0 : i64, scratch_operands = 1 : i64, tpu.core_type = #tpu.core_type<tc>, window_params = [{transform_indices = @transform_0, window_bounds = array<i64: 1, 8, 32>}, {pipeline_mode = #tpu.pipeline_mode<synchronous>, transform_indices = @transform_1, window_bounds = array<i64: 33, 33>}, {pipeline_mode = #tpu.pipeline_mode<synchronous>, transform_indices = @transform_2, window_bounds = array<i64: 33, 33>}, {pipeline_mode = #tpu.pipeline_mode<synchronous>, transform_indices = @transform_3, window_bounds = array<i64: 1, 32>}, {transform_indices = @transform_4, window_bounds = array<i64: 1, 8, 8, 32>}]} {
    %c0 = arith.constant 0 : index
    %c0_0 = arith.constant 0 : index
    %0 = vector.load %arg2[%c0, %c0_0] : memref<33x33xbf16, #tpu.memory_space<vmem>>, vector<33x33xbf16>
    %c0_1 = arith.constant 0 : index
    %c0_2 = arith.constant 0 : index
    %1 = vector.load %arg3[%c0_1, %c0_2] : memref<33x33xbf16, #tpu.memory_space<vmem>>, vector<33x33xbf16>
    %c0_3 = arith.constant 0 : index
    %c0_4 = arith.constant 0 : index
    %2 = vector.load %arg4[%c0_3, %c0_4] : memref<1x32xf32, #tpu.memory_space<vmem>>, vector<1x32xf32>
    %3 = vector.shape_cast %2 : vector<1x32xf32> to vector<1x32xf32>
    %4 = vector.broadcast %3 : vector<1x32xf32> to vector<8x32xf32>
    %5 = tpu.iota {dimensions = array<i32: 0>} : vector<8x1xi32>
    %c8_i32 = arith.constant 8 : i32
    %c0_i32 = arith.constant 0 : i32
    %6 = arith.cmpi eq, %c8_i32, %c0_i32 : i32
    %c1_i32 = arith.constant 1 : i32
    %7 = arith.select %6, %c1_i32, %c8_i32 : i32
    %8 = vector.broadcast %7 : i32 to vector<8x1xi32>
    %9 = arith.remsi %5, %8 : vector<8x1xi32>
    %c0_i32_5 = arith.constant 0 : i32
    %10 = vector.broadcast %c0_i32_5 : i32 to vector<8x1xi32>
    %11 = arith.cmpi ne, %9, %10 : vector<8x1xi32>
    %c0_i32_6 = arith.constant 0 : i32
    %12 = vector.broadcast %c0_i32_6 : i32 to vector<8x1xi32>
    %13 = arith.cmpi slt, %9, %12 : vector<8x1xi32>
    %c0_i32_7 = arith.constant 0 : i32
    %14 = arith.cmpi slt, %7, %c0_i32_7 : i32
    %15 = vector.broadcast %14 : i1 to vector<8x1xi1>
    %16 = vector.broadcast %15 : vector<8x1xi1> to vector<8x1xi1>
    %17 = arith.xori %13, %16 : vector<8x1xi1>
    %18 = arith.andi %17, %11 : vector<8x1xi1>
    %19 = vector.broadcast %7 : i32 to vector<8x1xi32>
    %20 = arith.addi %9, %19 : vector<8x1xi32>
    %21 = arith.select %18, %20, %9 : vector<8x1xi1>, vector<8x1xi32>
    %c0_8 = arith.constant 0 : index
    %c0_9 = arith.constant 0 : index
    %c0_10 = arith.constant 0 : index
    %22 = vector.load %arg1[%c0_8, %c0_9, %c0_10] : memref<1x8x32xf32, #tpu.memory_space<vmem>>, vector<1x8x32xf32>
    %23 = vector.shape_cast %22 : vector<1x8x32xf32> to vector<8x32xf32>
    %c0_11 = arith.constant 0 : index
    %c0_12 = arith.constant 0 : index
    %c0_13 = arith.constant 0 : index
    %24 = vector.load %arg6[%c0_11, %c0_12, %c0_13] : memref<8x8x33xf32, #tpu.memory_space<vmem>>, vector<1x8x32xf32>
    %25 = vector.shape_cast %24 : vector<1x8x32xf32> to vector<8x32xf32>
    %26 = vector.shape_cast %23 : vector<8x32xf32> to vector<1x8x32xf32>
    tpu.vector_store %arg6[%c0_11, %c0_12, %c0_13], %26 {strides = array<i32>} : memref<8x8x33xf32, #tpu.memory_space<vmem>>, vector<1x8x32xf32>,
    %cst = arith.constant 0.000000e+00 : f32
    %27 = vector.broadcast %cst : f32 to vector<8x1xf32>
    %c0_14 = arith.constant 0 : index
    %c0_15 = arith.constant 0 : index
    %c32 = arith.constant 32 : index
    %28 = vector.load %arg6[%c0_14, %c0_15, %c32] : memref<8x8x33xf32, #tpu.memory_space<vmem>>, vector<1x8x1xf32>
    %29 = vector.shape_cast %28 : vector<1x8x1xf32> to vector<8x1xf32>
    %30 = vector.shape_cast %27 : vector<8x1xf32> to vector<1x8x1xf32>
    tpu.vector_store %arg6[%c0_14, %c0_15, %c32], %30 {strides = array<i32>} : memref<8x8x33xf32, #tpu.memory_space<vmem>>, vector<1x8x1xf32>,
    %c0_16 = arith.constant 0 : index
    %c0_17 = arith.constant 0 : index
    %c0_18 = arith.constant 0 : index
    %c0_19 = arith.constant 0 : index
    %31 = vector.load %arg5[%c0_16, %c0_17, %c0_18, %c0_19] : memref<1x8x8x32xf32, #tpu.memory_space<vmem>>, vector<1x1x8x32xf32>
    %32 = vector.shape_cast %31 : vector<1x1x8x32xf32> to vector<8x32xf32>
    %33 = vector.shape_cast %23 : vector<8x32xf32> to vector<1x1x8x32xf32>
    tpu.vector_store %arg5[%c0_16, %c0_17, %c0_18, %c0_19], %33 {strides = array<i32>} : memref<1x8x8x32xf32, #tpu.memory_space<vmem>>, vector<1x1x8x32xf32>,
    %cst_20 = arith.constant 0xFF800000 : f32
    %34 = vector.broadcast %cst_20 : f32 to vector<8x1xf32>
    %cst_21 = arith.constant 0.000000e+00 : f32
    %35 = vector.broadcast %cst_21 : f32 to vector<8x1xf32>
    %cst_22 = arith.constant 0.000000e+00 : f32
    %36 = vector.broadcast %cst_22 : f32 to vector<8x32xf32>
    %cst_23 = arith.constant 0.000000e+00 : f32
    %37 = vector.broadcast %cst_23 : f32 to vector<8x1xf32>
    %c0_24 = arith.constant 0 : index
    %c0_25 = arith.constant 0 : index
    %c0_26 = arith.constant 0 : index
    %38 = vector.load %arg6[%c0_24, %c0_25, %c0_26] : memref<8x8x33xf32, #tpu.memory_space<vmem>>, vector<1x8x33xf32>
    %39 = vector.shape_cast %38 : vector<1x8x33xf32> to vector<8x33xf32>
    %c0_27 = arith.constant 0 : index
    %c0_28 = arith.constant 0 : index
    %c0_29 = arith.constant 0 : index
    %40 = vector.load %arg6[%c0_27, %c0_28, %c0_29] : memref<8x8x33xf32, #tpu.memory_space<vmem>>, vector<1x8x33xf32>
    %41 = vector.shape_cast %40 : vector<1x8x33xf32> to vector<8x33xf32>
    %c7_i32 = arith.constant 7 : i32
    %42 = tpu.dynamic_rotate %41 by %c7_i32 dim 0 : vector<8x33xf32>, i32 -> vector<8x33xf32>
    %43 = arith.truncf %39 : vector<8x33xf32> to vector<8x33xbf16>
    %cst_30 = arith.constant dense<0.000000e+00> : vector<8x33xf32>
    %44 = tpu.matmul %43, %0, %cst_30 {dimension_numbers = #tpu.dot_dimension_numbers<[1], [0], [0], [1], [0, 0, 1, 1], [], []>} : vector<8x33xbf16>, vector<33x33xbf16>, vector<8x33xf32> -> vector<8x33xf32>
    %45 = arith.truncf %42 : vector<8x33xf32> to vector<8x33xbf16>
    %cst_31 = arith.constant dense<0.000000e+00> : vector<8x33xf32>
    %46 = tpu.matmul %45, %1, %cst_31 {dimension_numbers = #tpu.dot_dimension_numbers<[1], [0], [0], [1], [0, 0, 1, 1], [], []>} : vector<8x33xbf16>, vector<33x33xbf16>, vector<8x33xf32> -> vector<8x33xf32>
    %47 = arith.addf %44, %46 : vector<8x33xf32>
    %48 = vector.extract_strided_slice %47 {offsets = [0, 0], sizes = [8, 32], strides = [1, 1]} : vector<8x33xf32> to vector<8x32xf32>
    %49 = arith.addf %48, %4 : vector<8x32xf32>
    %50 = math.tanh %49 : vector<8x32xf32>
    %51 = vector.extract_strided_slice %47 {offsets = [0, 32], sizes = [8, 1], strides = [1, 1]} : vector<8x33xf32> to vector<8x1xf32>
    %52 = vector.extract_strided_slice %39 {offsets = [0, 32], sizes = [8, 1], strides = [1, 1]} : vector<8x33xf32> to vector<8x1xf32>
    %53 = arith.addf %51, %52 : vector<8x1xf32>
    %54 = vector.extract_strided_slice %42 {offsets = [0, 32], sizes = [8, 1], strides = [1, 1]} : vector<8x33xf32> to vector<8x1xf32>
    %55 = arith.addf %53, %54 : vector<8x1xf32>
    %56 = arith.maximumf %34, %55 : vector<8x1xf32>
    %57 = arith.subf %34, %56 : vector<8x1xf32>
    %58 = math.exp %57 : vector<8x1xf32>
    %59 = arith.subf %55, %56 : vector<8x1xf32>
    %60 = math.exp %59 : vector<8x1xf32>
    %61 = arith.mulf %58, %35 : vector<8x1xf32>
    %62 = arith.addf %61, %60 : vector<8x1xf32>
    %63 = vector.broadcast %58 : vector<8x1xf32> to vector<8x32xf32>
    %64 = arith.mulf %63, %36 : vector<8x32xf32>
    %65 = vector.broadcast %60 : vector<8x1xf32> to vector<8x32xf32>
    %66 = arith.mulf %65, %50 : vector<8x32xf32>
    %67 = arith.addf %64, %66 : vector<8x32xf32>
    %68 = arith.mulf %58, %37 : vector<8x1xf32>
    %69 = arith.mulf %60, %55 : vector<8x1xf32>
    %70 = arith.addf %68, %69 : vector<8x1xf32>
    %71 = tpu.reciprocal %62 {approx = true} : vector<8x1xf32> -> vector<8x1xf32>
    %c7_i32_32 = arith.constant 7 : i32
    %72 = vector.broadcast %c7_i32_32 : i32 to vector<8x1xi32>
    %73 = arith.cmpi slt, %21, %72 : vector<8x1xi32>
    %74 = vector.broadcast %71 : vector<8x1xf32> to vector<8x32xf32>
    %75 = arith.mulf %67, %74 : vector<8x32xf32>
    %cst_33 = arith.constant 0.000000e+00 : f32
    %76 = vector.shape_cast %73 : vector<8x1xi1> to vector<8x1xi1>
    %77 = vector.broadcast %76 : vector<8x1xi1> to vector<8x32xi1>
    %78 = vector.broadcast %cst_33 : f32 to vector<8x32xf32>
    %79 = arith.select %77, %75, %78 : vector<8x32xi1>, vector<8x32xf32>
    %80 = arith.mulf %70, %71 : vector<8x1xf32>
    %cst_34 = arith.constant 0.000000e+00 : f32
    %81 = vector.broadcast %cst_34 : f32 to vector<8x1xf32>
    %82 = arith.select %73, %80, %81 : vector<8x1xi1>, vector<8x1xf32>
    %c1 = arith.constant 1 : index
    %c0_35 = arith.constant 0 : index
    %c0_36 = arith.constant 0 : index
    %83 = vector.load %arg6[%c1, %c0_35, %c0_36] : memref<8x8x33xf32, #tpu.memory_space<vmem>>, vector<1x8x32xf32>
    %84 = vector.shape_cast %83 : vector<1x8x32xf32> to vector<8x32xf32>
    %85 = vector.shape_cast %79 : vector<8x32xf32> to vector<1x8x32xf32>
    tpu.vector_store %arg6[%c1, %c0_35, %c0_36], %85 {strides = array<i32>} : memref<8x8x33xf32, #tpu.memory_space<vmem>>, vector<1x8x32xf32>,
    %c1_37 = arith.constant 1 : index
    %c0_38 = arith.constant 0 : index
    %c32_39 = arith.constant 32 : index
    %86 = vector.load %arg6[%c1_37, %c0_38, %c32_39] : memref<8x8x33xf32, #tpu.memory_space<vmem>>, vector<1x8x1xf32>
    %87 = vector.shape_cast %86 : vector<1x8x1xf32> to vector<8x1xf32>
    %88 = vector.shape_cast %82 : vector<8x1xf32> to vector<1x8x1xf32>
    tpu.vector_store %arg6[%c1_37, %c0_38, %c32_39], %88 {strides = array<i32>} : memref<8x8x33xf32, #tpu.memory_space<vmem>>, vector<1x8x1xf32>,
    %c0_40 = arith.constant 0 : index
    %c1_41 = arith.constant 1 : index
    %c0_42 = arith.constant 0 : index
    %c0_43 = arith.constant 0 : index
    %89 = vector.load %arg5[%c0_40, %c1_41, %c0_42, %c0_43] : memref<1x8x8x32xf32, #tpu.memory_space<vmem>>, vector<1x1x8x32xf32>
    %90 = vector.shape_cast %89 : vector<1x1x8x32xf32> to vector<8x32xf32>
    %91 = vector.shape_cast %79 : vector<8x32xf32> to vector<1x1x8x32xf32>
    tpu.vector_store %arg5[%c0_40, %c1_41, %c0_42, %c0_43], %91 {strides = array<i32>} : memref<1x8x8x32xf32, #tpu.memory_space<vmem>>, vector<1x1x8x32xf32>,
    %cst_44 = arith.constant 0xFF800000 : f32
    %92 = vector.broadcast %cst_44 : f32 to vector<8x1xf32>
    %cst_45 = arith.constant 0.000000e+00 : f32
    %93 = vector.broadcast %cst_45 : f32 to vector<8x1xf32>
    %cst_46 = arith.constant 0.000000e+00 : f32
    %94 = vector.broadcast %cst_46 : f32 to vector<8x32xf32>
    %cst_47 = arith.constant 0.000000e+00 : f32
    %95 = vector.broadcast %cst_47 : f32 to vector<8x1xf32>
    %c0_48 = arith.constant 0 : index
    %c0_49 = arith.constant 0 : index
    %c0_50 = arith.constant 0 : index
    %96 = vector.load %arg6[%c0_48, %c0_49, %c0_50] : memref<8x8x33xf32, #tpu.memory_space<vmem>>, vector<1x8x33xf32>
    %97 = vector.shape_cast %96 : vector<1x8x33xf32> to vector<8x33xf32>
    %c1_51 = arith.constant 1 : index
    %c0_52 = arith.constant 0 : index
    %c0_53 = arith.constant 0 : index
    %98 = vector.load %arg6[%c1_51, %c0_52, %c0_53] : memref<8x8x33xf32, #tpu.memory_space<vmem>>, vector<1x8x33xf32>
    %99 = vector.shape_cast %98 : vector<1x8x33xf32> to vector<8x33xf32>
    %c7_i32_54 = arith.constant 7 : i32
    %100 = tpu.dynamic_rotate %99 by %c7_i32_54 dim 0 : vector<8x33xf32>, i32 -> vector<8x33xf32>
    %101 = arith.truncf %97 : vector<8x33xf32> to vector<8x33xbf16>
    %cst_55 = arith.constant dense<0.000000e+00> : vector<8x33xf32>
    %102 = tpu.matmul %101, %0, %cst_55 {dimension_numbers = #tpu.dot_dimension_numbers<[1], [0], [0], [1], [0, 0, 1, 1], [], []>} : vector<8x33xbf16>, vector<33x33xbf16>, vector<8x33xf32> -> vector<8x33xf32>
    %103 = arith.truncf %100 : vector<8x33xf32> to vector<8x33xbf16>
    %cst_56 = arith.constant dense<0.000000e+00> : vector<8x33xf32>
    %104 = tpu.matmul %103, %1, %cst_56 {dimension_numbers = #tpu.dot_dimension_numbers<[1], [0], [0], [1], [0, 0, 1, 1], [], []>} : vector<8x33xbf16>, vector<33x33xbf16>, vector<8x33xf32> -> vector<8x33xf32>
    %105 = arith.addf %102, %104 : vector<8x33xf32>
    %106 = vector.extract_strided_slice %105 {offsets = [0, 0], sizes = [8, 32], strides = [1, 1]} : vector<8x33xf32> to vector<8x32xf32>
    %107 = arith.addf %106, %4 : vector<8x32xf32>
    %108 = math.tanh %107 : vector<8x32xf32>
    %109 = vector.extract_strided_slice %105 {offsets = [0, 32], sizes = [8, 1], strides = [1, 1]} : vector<8x33xf32> to vector<8x1xf32>
    %110 = vector.extract_strided_slice %97 {offsets = [0, 32], sizes = [8, 1], strides = [1, 1]} : vector<8x33xf32> to vector<8x1xf32>
    %111 = arith.addf %109, %110 : vector<8x1xf32>
    %112 = vector.extract_strided_slice %100 {offsets = [0, 32], sizes = [8, 1], strides = [1, 1]} : vector<8x33xf32> to vector<8x1xf32>
    %113 = arith.addf %111, %112 : vector<8x1xf32>
    %114 = arith.maximumf %92, %113 : vector<8x1xf32>
    %115 = arith.subf %92, %114 : vector<8x1xf32>
    %116 = math.exp %115 : vector<8x1xf32>
    %117 = arith.subf %113, %114 : vector<8x1xf32>
    %118 = math.exp %117 : vector<8x1xf32>
    %119 = arith.mulf %116, %93 : vector<8x1xf32>
    %120 = arith.addf %119, %118 : vector<8x1xf32>
    %121 = vector.broadcast %116 : vector<8x1xf32> to vector<8x32xf32>
    %122 = arith.mulf %121, %94 : vector<8x32xf32>
    %123 = vector.broadcast %118 : vector<8x1xf32> to vector<8x32xf32>
    %124 = arith.mulf %123, %108 : vector<8x32xf32>
    %125 = arith.addf %122, %124 : vector<8x32xf32>
    %126 = arith.mulf %116, %95 : vector<8x1xf32>
    %127 = arith.mulf %118, %113 : vector<8x1xf32>
    %128 = arith.addf %126, %127 : vector<8x1xf32>
    %c1_57 = arith.constant 1 : index
    %c0_58 = arith.constant 0 : index
    %c0_59 = arith.constant 0 : index
    %129 = vector.load %arg6[%c1_57, %c0_58, %c0_59] : memref<8x8x33xf32, #tpu.memory_space<vmem>>, vector<1x8x33xf32>
    %130 = vector.shape_cast %129 : vector<1x8x33xf32> to vector<8x33xf32>
    %c0_60 = arith.constant 0 : index
    %c0_61 = arith.constant 0 : index
    %c0_62 = arith.constant 0 : index
    %131 = vector.load %arg6[%c0_60, %c0_61, %c0_62] : memref<8x8x33xf32, #tpu.memory_space<vmem>>, vector<1x8x33xf32>
    %132 = vector.shape_cast %131 : vector<1x8x33xf32> to vector<8x33xf32>
    %c6_i32 = arith.constant 6 : i32
    %133 = tpu.dynamic_rotate %132 by %c6_i32 dim 0 : vector<8x33xf32>, i32 -> vector<8x33xf32>
    %134 = arith.truncf %130 : vector<8x33xf32> to vector<8x33xbf16>
    %cst_63 = arith.constant dense<0.000000e+00> : vector<8x33xf32>
    %135 = tpu.matmul %134, %0, %cst_63 {dimension_numbers = #tpu.dot_dimension_numbers<[1], [0], [0], [1], [0, 0, 1, 1], [], []>} : vector<8x33xbf16>, vector<33x33xbf16>, vector<8x33xf32> -> vector<8x33xf32>
    %136 = arith.truncf %133 : vector<8x33xf32> to vector<8x33xbf16>
    %cst_64 = arith.constant dense<0.000000e+00> : vector<8x33xf32>
    %137 = tpu.matmul %136, %1, %cst_64 {dimension_numbers = #tpu.dot_dimension_numbers<[1], [0], [0], [1], [0, 0, 1, 1], [], []>} : vector<8x33xbf16>, vector<33x33xbf16>, vector<8x33xf32> -> vector<8x33xf32>
    %138 = arith.addf %135, %137 : vector<8x33xf32>
    %139 = vector.extract_strided_slice %138 {offsets = [0, 0], sizes = [8, 32], strides = [1, 1]} : vector<8x33xf32> to vector<8x32xf32>
    %140 = arith.addf %139, %4 : vector<8x32xf32>
    %141 = math.tanh %140 : vector<8x32xf32>
    %142 = vector.extract_strided_slice %138 {offsets = [0, 32], sizes = [8, 1], strides = [1, 1]} : vector<8x33xf32> to vector<8x1xf32>
    %143 = vector.extract_strided_slice %130 {offsets = [0, 32], sizes = [8, 1], strides = [1, 1]} : vector<8x33xf32> to vector<8x1xf32>
    %144 = arith.addf %142, %143 : vector<8x1xf32>
    %145 = vector.extract_strided_slice %133 {offsets = [0, 32], sizes = [8, 1], strides = [1, 1]} : vector<8x33xf32> to vector<8x1xf32>
    %146 = arith.addf %144, %145 : vector<8x1xf32>
    %147 = arith.maximumf %114, %146 : vector<8x1xf32>
    %148 = arith.subf %114, %147 : vector<8x1xf32>
    %149 = math.exp %148 : vector<8x1xf32>
    %150 = arith.subf %146, %147 : vector<8x1xf32>
    %151 = math.exp %150 : vector<8x1xf32>
    %152 = arith.mulf %149, %120 : vector<8x1xf32>
    %153 = arith.addf %152, %151 : vector<8x1xf32>
    %154 = vector.broadcast %149 : vector<8x1xf32> to vector<8x32xf32>
    %155 = arith.mulf %154, %125 : vector<8x32xf32>
    %156 = vector.broadcast %151 : vector<8x1xf32> to vector<8x32xf32>
    %157 = arith.mulf %156, %141 : vector<8x32xf32>
    %158 = arith.addf %155, %157 : vector<8x32xf32>
    %159 = arith.mulf %149, %128 : vector<8x1xf32>
    %160 = arith.mulf %151, %146 : vector<8x1xf32>
    %161 = arith.addf %159, %160 : vector<8x1xf32>
    %162 = tpu.reciprocal %153 {approx = true} : vector<8x1xf32> -> vector<8x1xf32>
    %c6_i32_65 = arith.constant 6 : i32
    %163 = vector.broadcast %c6_i32_65 : i32 to vector<8x1xi32>
    %164 = arith.cmpi slt, %21, %163 : vector<8x1xi32>
    %165 = vector.broadcast %162 : vector<8x1xf32> to vector<8x32xf32>
    %166 = arith.mulf %158, %165 : vector<8x32xf32>
    %cst_66 = arith.constant 0.000000e+00 : f32
    %167 = vector.shape_cast %164 : vector<8x1xi1> to vector<8x1xi1>
    %168 = vector.broadcast %167 : vector<8x1xi1> to vector<8x32xi1>
    %169 = vector.broadcast %cst_66 : f32 to vector<8x32xf32>
    %170 = arith.select %168, %166, %169 : vector<8x32xi1>, vector<8x32xf32>
    %171 = arith.mulf %161, %162 : vector<8x1xf32>
    %cst_67 = arith.constant 0.000000e+00 : f32
    %172 = vector.broadcast %cst_67 : f32 to vector<8x1xf32>
    %173 = arith.select %164, %171, %172 : vector<8x1xi1>, vector<8x1xf32>
    %c2 = arith.constant 2 : index
    %c0_68 = arith.constant 0 : index
    %c0_69 = arith.constant 0 : index
    %174 = vector.load %arg6[%c2, %c0_68, %c0_69] : memref<8x8x33xf32, #tpu.memory_space<vmem>>, vector<1x8x32xf32>
    %175 = vector.shape_cast %174 : vector<1x8x32xf32> to vector<8x32xf32>
    %176 = vector.shape_cast %170 : vector<8x32xf32> to vector<1x8x32xf32>
    tpu.vector_store %arg6[%c2, %c0_68, %c0_69], %176 {strides = array<i32>} : memref<8x8x33xf32, #tpu.memory_space<vmem>>, vector<1x8x32xf32>,
    %c2_70 = arith.constant 2 : index
    %c0_71 = arith.constant 0 : index
    %c32_72 = arith.constant 32 : index
    %177 = vector.load %arg6[%c2_70, %c0_71, %c32_72] : memref<8x8x33xf32, #tpu.memory_space<vmem>>, vector<1x8x1xf32>
    %178 = vector.shape_cast %177 : vector<1x8x1xf32> to vector<8x1xf32>
    %179 = vector.shape_cast %173 : vector<8x1xf32> to vector<1x8x1xf32>
    tpu.vector_store %arg6[%c2_70, %c0_71, %c32_72], %179 {strides = array<i32>} : memref<8x8x33xf32, #tpu.memory_space<vmem>>, vector<1x8x1xf32>,
    %c0_73 = arith.constant 0 : index
    %c2_74 = arith.constant 2 : index
    %c0_75 = arith.constant 0 : index
    %c0_76 = arith.constant 0 : index
    %180 = vector.load %arg5[%c0_73, %c2_74, %c0_75, %c0_76] : memref<1x8x8x32xf32, #tpu.memory_space<vmem>>, vector<1x1x8x32xf32>
    %181 = vector.shape_cast %180 : vector<1x1x8x32xf32> to vector<8x32xf32>
    %182 = vector.shape_cast %170 : vector<8x32xf32> to vector<1x1x8x32xf32>
    tpu.vector_store %arg5[%c0_73, %c2_74, %c0_75, %c0_76], %182 {strides = array<i32>} : memref<1x8x8x32xf32, #tpu.memory_space<vmem>>, vector<1x1x8x32xf32>,
    %cst_77 = arith.constant 0xFF800000 : f32
    %183 = vector.broadcast %cst_77 : f32 to vector<8x1xf32>
    %cst_78 = arith.constant 0.000000e+00 : f32
    %184 = vector.broadcast %cst_78 : f32 to vector<8x1xf32>
    %cst_79 = arith.constant 0.000000e+00 : f32
    %185 = vector.broadcast %cst_79 : f32 to vector<8x32xf32>
    %cst_80 = arith.constant 0.000000e+00 : f32
    %186 = vector.broadcast %cst_80 : f32 to vector<8x1xf32>
    %c0_81 = arith.constant 0 : index
    %c0_82 = arith.constant 0 : index
    %c0_83 = arith.constant 0 : index
    %187 = vector.load %arg6[%c0_81, %c0_82, %c0_83] : memref<8x8x33xf32, #tpu.memory_space<vmem>>, vector<1x8x33xf32>
    %188 = vector.shape_cast %187 : vector<1x8x33xf32> to vector<8x33xf32>
    %c2_84 = arith.constant 2 : index
    %c0_85 = arith.constant 0 : index
    %c0_86 = arith.constant 0 : index
    %189 = vector.load %arg6[%c2_84, %c0_85, %c0_86] : memref<8x8x33xf32, #tpu.memory_space<vmem>>, vector<1x8x33xf32>
    %190 = vector.shape_cast %189 : vector<1x8x33xf32> to vector<8x33xf32>
    %c7_i32_87 = arith.constant 7 : i32
    %191 = tpu.dynamic_rotate %190 by %c7_i32_87 dim 0 : vector<8x33xf32>, i32 -> vector<8x33xf32>
    %192 = arith.truncf %188 : vector<8x33xf32> to vector<8x33xbf16>
    %cst_88 = arith.constant dense<0.000000e+00> : vector<8x33xf32>
    %193 = tpu.matmul %192, %0, %cst_88 {dimension_numbers = #tpu.dot_dimension_numbers<[1], [0], [0], [1], [0, 0, 1, 1], [], []>} : vector<8x33xbf16>, vector<33x33xbf16>, vector<8x33xf32> -> vector<8x33xf32>
    %194 = arith.truncf %191 : vector<8x33xf32> to vector<8x33xbf16>
    %cst_89 = arith.constant dense<0.000000e+00> : vector<8x33xf32>
    %195 = tpu.matmul %194, %1, %cst_89 {dimension_numbers = #tpu.dot_dimension_numbers<[1], [0], [0], [1], [0, 0, 1, 1], [], []>} : vector<8x33xbf16>, vector<33x33xbf16>, vector<8x33xf32> -> vector<8x33xf32>
    %196 = arith.addf %193, %195 : vector<8x33xf32>
    %197 = vector.extract_strided_slice %196 {offsets = [0, 0], sizes = [8, 32], strides = [1, 1]} : vector<8x33xf32> to vector<8x32xf32>
    %198 = arith.addf %197, %4 : vector<8x32xf32>
    %199 = math.tanh %198 : vector<8x32xf32>
    %200 = vector.extract_strided_slice %196 {offsets = [0, 32], sizes = [8, 1], strides = [1, 1]} : vector<8x33xf32> to vector<8x1xf32>
    %201 = vector.extract_strided_slice %188 {offsets = [0, 32], sizes = [8, 1], strides = [1, 1]} : vector<8x33xf32> to vector<8x1xf32>
    %202 = arith.addf %200, %201 : vector<8x1xf32>
    %203 = vector.extract_strided_slice %191 {offsets = [0, 32], sizes = [8, 1], strides = [1, 1]} : vector<8x33xf32> to vector<8x1xf32>
    %204 = arith.addf %202, %203 : vector<8x1xf32>
    %205 = arith.maximumf %183, %204 : vector<8x1xf32>
    %206 = arith.subf %183, %205 : vector<8x1xf32>
    %207 = math.exp %206 : vector<8x1xf32>
    %208 = arith.subf %204, %205 : vector<8x1xf32>
    %209 = math.exp %208 : vector<8x1xf32>
    %210 = arith.mulf %207, %184 : vector<8x1xf32>
    %211 = arith.addf %210, %209 : vector<8x1xf32>
    %212 = vector.broadcast %207 : vector<8x1xf32> to vector<8x32xf32>
    %213 = arith.mulf %212, %185 : vector<8x32xf32>
    %214 = vector.broadcast %209 : vector<8x1xf32> to vector<8x32xf32>
    %215 = arith.mulf %214, %199 : vector<8x32xf32>
    %216 = arith.addf %213, %215 : vector<8x32xf32>
    %217 = arith.mulf %207, %186 : vector<8x1xf32>
    %218 = arith.mulf %209, %204 : vector<8x1xf32>
    %219 = arith.addf %217, %218 : vector<8x1xf32>
    %c1_90 = arith.constant 1 : index
    %c0_91 = arith.constant 0 : index
    %c0_92 = arith.constant 0 : index
    %220 = vector.load %arg6[%c1_90, %c0_91, %c0_92] : memref<8x8x33xf32, #tpu.memory_space<vmem>>, vector<1x8x33xf32>
    %221 = vector.shape_cast %220 : vector<1x8x33xf32> to vector<8x33xf32>
    %c1_93 = arith.constant 1 : index
    %c0_94 = arith.constant 0 : index
    %c0_95 = arith.constant 0 : index
    %222 = vector.load %arg6[%c1_93, %c0_94, %c0_95] : memref<8x8x33xf32, #tpu.memory_space<vmem>>, vector<1x8x33xf32>
    %223 = vector.shape_cast %222 : vector<1x8x33xf32> to vector<8x33xf32>
    %c6_i32_96 = arith.constant 6 : i32
    %224 = tpu.dynamic_rotate %223 by %c6_i32_96 dim 0 : vector<8x33xf32>, i32 -> vector<8x33xf32>
    %225 = arith.truncf %221 : vector<8x33xf32> to vector<8x33xbf16>
    %cst_97 = arith.constant dense<0.000000e+00> : vector<8x33xf32>
    %226 = tpu.matmul %225, %0, %cst_97 {dimension_numbers = #tpu.dot_dimension_numbers<[1], [0], [0], [1], [0, 0, 1, 1], [], []>} : vector<8x33xbf16>, vector<33x33xbf16>, vector<8x33xf32> -> vector<8x33xf32>
    %227 = arith.truncf %224 : vector<8x33xf32> to vector<8x33xbf16>
    %cst_98 = arith.constant dense<0.000000e+00> : vector<8x33xf32>
    %228 = tpu.matmul %227, %1, %cst_98 {dimension_numbers = #tpu.dot_dimension_numbers<[1], [0], [0], [1], [0, 0, 1, 1], [], []>} : vector<8x33xbf16>, vector<33x33xbf16>, vector<8x33xf32> -> vector<8x33xf32>
    %229 = arith.addf %226, %228 : vector<8x33xf32>
    %230 = vector.extract_strided_slice %229 {offsets = [0, 0], sizes = [8, 32], strides = [1, 1]} : vector<8x33xf32> to vector<8x32xf32>
    %231 = arith.addf %230, %4 : vector<8x32xf32>
    %232 = math.tanh %231 : vector<8x32xf32>
    %233 = vector.extract_strided_slice %229 {offsets = [0, 32], sizes = [8, 1], strides = [1, 1]} : vector<8x33xf32> to vector<8x1xf32>
    %234 = vector.extract_strided_slice %221 {offsets = [0, 32], sizes = [8, 1], strides = [1, 1]} : vector<8x33xf32> to vector<8x1xf32>
    %235 = arith.addf %233, %234 : vector<8x1xf32>
    %236 = vector.extract_strided_slice %224 {offsets = [0, 32], sizes = [8, 1], strides = [1, 1]} : vector<8x33xf32> to vector<8x1xf32>
    %237 = arith.addf %235, %236 : vector<8x1xf32>
    %238 = arith.maximumf %205, %237 : vector<8x1xf32>
    %239 = arith.subf %205, %238 : vector<8x1xf32>
    %240 = math.exp %239 : vector<8x1xf32>
    %241 = arith.subf %237, %238 : vector<8x1xf32>
    %242 = math.exp %241 : vector<8x1xf32>
    %243 = arith.mulf %240, %211 : vector<8x1xf32>
    %244 = arith.addf %243, %242 : vector<8x1xf32>
    %245 = vector.broadcast %240 : vector<8x1xf32> to vector<8x32xf32>
    %246 = arith.mulf %245, %216 : vector<8x32xf32>
    %247 = vector.broadcast %242 : vector<8x1xf32> to vector<8x32xf32>
    %248 = arith.mulf %247, %232 : vector<8x32xf32>
    %249 = arith.addf %246, %248 : vector<8x32xf32>
    %250 = arith.mulf %240, %219 : vector<8x1xf32>
    %251 = arith.mulf %242, %237 : vector<8x1xf32>
    %252 = arith.addf %250, %251 : vector<8x1xf32>
    %c2_99 = arith.constant 2 : index
    %c0_100 = arith.constant 0 : index
    %c0_101 = arith.constant 0 : index
    %253 = vector.load %arg6[%c2_99, %c0_100, %c0_101] : memref<8x8x33xf32, #tpu.memory_space<vmem>>, vector<1x8x33xf32>
    %254 = vector.shape_cast %253 : vector<1x8x33xf32> to vector<8x33xf32>
    %c0_102 = arith.constant 0 : index
    %c0_103 = arith.constant 0 : index
    %c0_104 = arith.constant 0 : index
    %255 = vector.load %arg6[%c0_102, %c0_103, %c0_104] : memref<8x8x33xf32, #tpu.memory_space<vmem>>, vector<1x8x33xf32>
    %256 = vector.shape_cast %255 : vector<1x8x33xf32> to vector<8x33xf32>
    %c5_i32 = arith.constant 5 : i32
    %257 = tpu.dynamic_rotate %256 by %c5_i32 dim 0 : vector<8x33xf32>, i32 -> vector<8x33xf32>
    %258 = arith.truncf %254 : vector<8x33xf32> to vector<8x33xbf16>
    %cst_105 = arith.constant dense<0.000000e+00> : vector<8x33xf32>
    %259 = tpu.matmul %258, %0, %cst_105 {dimension_numbers = #tpu.dot_dimension_numbers<[1], [0], [0], [1], [0, 0, 1, 1], [], []>} : vector<8x33xbf16>, vector<33x33xbf16>, vector<8x33xf32> -> vector<8x33xf32>
    %260 = arith.truncf %257 : vector<8x33xf32> to vector<8x33xbf16>
    %cst_106 = arith.constant dense<0.000000e+00> : vector<8x33xf32>
    %261 = tpu.matmul %260, %1, %cst_106 {dimension_numbers = #tpu.dot_dimension_numbers<[1], [0], [0], [1], [0, 0, 1, 1], [], []>} : vector<8x33xbf16>, vector<33x33xbf16>, vector<8x33xf32> -> vector<8x33xf32>
    %262 = arith.addf %259, %261 : vector<8x33xf32>
    %263 = vector.extract_strided_slice %262 {offsets = [0, 0], sizes = [8, 32], strides = [1, 1]} : vector<8x33xf32> to vector<8x32xf32>
    %264 = arith.addf %263, %4 : vector<8x32xf32>
    %265 = math.tanh %264 : vector<8x32xf32>
    %266 = vector.extract_strided_slice %262 {offsets = [0, 32], sizes = [8, 1], strides = [1, 1]} : vector<8x33xf32> to vector<8x1xf32>
    %267 = vector.extract_strided_slice %254 {offsets = [0, 32], sizes = [8, 1], strides = [1, 1]} : vector<8x33xf32> to vector<8x1xf32>
    %268 = arith.addf %266, %267 : vector<8x1xf32>
    %269 = vector.extract_strided_slice %257 {offsets = [0, 32], sizes = [8, 1], strides = [1, 1]} : vector<8x33xf32> to vector<8x1xf32>
    %270 = arith.addf %268, %269 : vector<8x1xf32>
    %271 = arith.maximumf %238, %270 : vector<8x1xf32>
    %272 = arith.subf %238, %271 : vector<8x1xf32>
    %273 = math.exp %272 : vector<8x1xf32>
    %274 = arith.subf %270, %271 : vector<8x1xf32>
    %275 = math.exp %274 : vector<8x1xf32>
    %276 = arith.mulf %273, %244 : vector<8x1xf32>
    %277 = arith.addf %276, %275 : vector<8x1xf32>
    %278 = vector.broadcast %273 : vector<8x1xf32> to vector<8x32xf32>
    %279 = arith.mulf %278, %249 : vector<8x32xf32>
    %280 = vector.broadcast %275 : vector<8x1xf32> to vector<8x32xf32>
    %281 = arith.mulf %280, %265 : vector<8x32xf32>
    %282 = arith.addf %279, %281 : vector<8x32xf32>
    %283 = arith.mulf %273, %252 : vector<8x1xf32>
    %284 = arith.mulf %275, %270 : vector<8x1xf32>
    %285 = arith.addf %283, %284 : vector<8x1xf32>
    %286 = tpu.reciprocal %277 {approx = true} : vector<8x1xf32> -> vector<8x1xf32>
    %c5_i32_107 = arith.constant 5 : i32
    %287 = vector.broadcast %c5_i32_107 : i32 to vector<8x1xi32>
    %288 = arith.cmpi slt, %21, %287 : vector<8x1xi32>
    %289 = vector.broadcast %286 : vector<8x1xf32> to vector<8x32xf32>
    %290 = arith.mulf %282, %289 : vector<8x32xf32>
    %cst_108 = arith.constant 0.000000e+00 : f32
    %291 = vector.shape_cast %288 : vector<8x1xi1> to vector<8x1xi1>
    %292 = vector.broadcast %291 : vector<8x1xi1> to vector<8x32xi1>
    %293 = vector.broadcast %cst_108 : f32 to vector<8x32xf32>
    %294 = arith.select %292, %290, %293 : vector<8x32xi1>, vector<8x32xf32>
    %295 = arith.mulf %285, %286 : vector<8x1xf32>
    %cst_109 = arith.constant 0.000000e+00 : f32
    %296 = vector.broadcast %cst_109 : f32 to vector<8x1xf32>
    %297 = arith.select %288, %295, %296 : vector<8x1xi1>, vector<8x1xf32>
    %c3 = arith.constant 3 : index
    %c0_110 = arith.constant 0 : index
    %c0_111 = arith.constant 0 : index
    %298 = vector.load %arg6[%c3, %c0_110, %c0_111] : memref<8x8x33xf32, #tpu.memory_space<vmem>>, vector<1x8x32xf32>
    %299 = vector.shape_cast %298 : vector<1x8x32xf32> to vector<8x32xf32>
    %300 = vector.shape_cast %294 : vector<8x32xf32> to vector<1x8x32xf32>
    tpu.vector_store %arg6[%c3, %c0_110, %c0_111], %300 {strides = array<i32>} : memref<8x8x33xf32, #tpu.memory_space<vmem>>, vector<1x8x32xf32>,
    %c3_112 = arith.constant 3 : index
    %c0_113 = arith.constant 0 : index
    %c32_114 = arith.constant 32 : index
    %301 = vector.load %arg6[%c3_112, %c0_113, %c32_114] : memref<8x8x33xf32, #tpu.memory_space<vmem>>, vector<1x8x1xf32>
    %302 = vector.shape_cast %301 : vector<1x8x1xf32> to vector<8x1xf32>
    %303 = vector.shape_cast %297 : vector<8x1xf32> to vector<1x8x1xf32>
    tpu.vector_store %arg6[%c3_112, %c0_113, %c32_114], %303 {strides = array<i32>} : memref<8x8x33xf32, #tpu.memory_space<vmem>>, vector<1x8x1xf32>,
    %c0_115 = arith.constant 0 : index
    %c3_116 = arith.constant 3 : index
    %c0_117 = arith.constant 0 : index
    %c0_118 = arith.constant 0 : index
    %304 = vector.load %arg5[%c0_115, %c3_116, %c0_117, %c0_118] : memref<1x8x8x32xf32, #tpu.memory_space<vmem>>, vector<1x1x8x32xf32>
    %305 = vector.shape_cast %304 : vector<1x1x8x32xf32> to vector<8x32xf32>
    %306 = vector.shape_cast %294 : vector<8x32xf32> to vector<1x1x8x32xf32>
    tpu.vector_store %arg5[%c0_115, %c3_116, %c0_117, %c0_118], %306 {strides = array<i32>} : memref<1x8x8x32xf32, #tpu.memory_space<vmem>>, vector<1x1x8x32xf32>,
    %cst_119 = arith.constant 0xFF800000 : f32
    %307 = vector.broadcast %cst_119 : f32 to vector<8x1xf32>
    %cst_120 = arith.constant 0.000000e+00 : f32
    %308 = vector.broadcast %cst_120 : f32 to vector<8x1xf32>
    %cst_121 = arith.constant 0.000000e+00 : f32
    %309 = vector.broadcast %cst_121 : f32 to vector<8x32xf32>
    %cst_122 = arith.constant 0.000000e+00 : f32
    %310 = vector.broadcast %cst_122 : f32 to vector<8x1xf32>
    %c0_123 = arith.constant 0 : index
    %c0_124 = arith.constant 0 : index
    %c0_125 = arith.constant 0 : index
    %311 = vector.load %arg6[%c0_123, %c0_124, %c0_125] : memref<8x8x33xf32, #tpu.memory_space<vmem>>, vector<1x8x33xf32>
    %312 = vector.shape_cast %311 : vector<1x8x33xf32> to vector<8x33xf32>
    %c3_126 = arith.constant 3 : index
    %c0_127 = arith.constant 0 : index
    %c0_128 = arith.constant 0 : index
    %313 = vector.load %arg6[%c3_126, %c0_127, %c0_128] : memref<8x8x33xf32, #tpu.memory_space<vmem>>, vector<1x8x33xf32>
    %314 = vector.shape_cast %313 : vector<1x8x33xf32> to vector<8x33xf32>
    %c7_i32_129 = arith.constant 7 : i32
    %315 = tpu.dynamic_rotate %314 by %c7_i32_129 dim 0 : vector<8x33xf32>, i32 -> vector<8x33xf32>
    %316 = arith.truncf %312 : vector<8x33xf32> to vector<8x33xbf16>
    %cst_130 = arith.constant dense<0.000000e+00> : vector<8x33xf32>
    %317 = tpu.matmul %316, %0, %cst_130 {dimension_numbers = #tpu.dot_dimension_numbers<[1], [0], [0], [1], [0, 0, 1, 1], [], []>} : vector<8x33xbf16>, vector<33x33xbf16>, vector<8x33xf32> -> vector<8x33xf32>
    %318 = arith.truncf %315 : vector<8x33xf32> to vector<8x33xbf16>
    %cst_131 = arith.constant dense<0.000000e+00> : vector<8x33xf32>
    %319 = tpu.matmul %318, %1, %cst_131 {dimension_numbers = #tpu.dot_dimension_numbers<[1], [0], [0], [1], [0, 0, 1, 1], [], []>} : vector<8x33xbf16>, vector<33x33xbf16>, vector<8x33xf32> -> vector<8x33xf32>
    %320 = arith.addf %317, %319 : vector<8x33xf32>
    %321 = vector.extract_strided_slice %320 {offsets = [0, 0], sizes = [8, 32], strides = [1, 1]} : vector<8x33xf32> to vector<8x32xf32>
    %322 = arith.addf %321, %4 : vector<8x32xf32>
    %323 = math.tanh %322 : vector<8x32xf32>
    %324 = vector.extract_strided_slice %320 {offsets = [0, 32], sizes = [8, 1], strides = [1, 1]} : vector<8x33xf32> to vector<8x1xf32>
    %325 = vector.extract_strided_slice %312 {offsets = [0, 32], sizes = [8, 1], strides = [1, 1]} : vector<8x33xf32> to vector<8x1xf32>
    %326 = arith.addf %324, %325 : vector<8x1xf32>
    %327 = vector.extract_strided_slice %315 {offsets = [0, 32], sizes = [8, 1], strides = [1, 1]} : vector<8x33xf32> to vector<8x1xf32>
    %328 = arith.addf %326, %327 : vector<8x1xf32>
    %329 = arith.maximumf %307, %328 : vector<8x1xf32>
    %330 = arith.subf %307, %329 : vector<8x1xf32>
    %331 = math.exp %330 : vector<8x1xf32>
    %332 = arith.subf %328, %329 : vector<8x1xf32>
    %333 = math.exp %332 : vector<8x1xf32>
    %334 = arith.mulf %331, %308 : vector<8x1xf32>
    %335 = arith.addf %334, %333 : vector<8x1xf32>
    %336 = vector.broadcast %331 : vector<8x1xf32> to vector<8x32xf32>
    %337 = arith.mulf %336, %309 : vector<8x32xf32>
    %338 = vector.broadcast %333 : vector<8x1xf32> to vector<8x32xf32>
    %339 = arith.mulf %338, %323 : vector<8x32xf32>
    %340 = arith.addf %337, %339 : vector<8x32xf32>
    %341 = arith.mulf %331, %310 : vector<8x1xf32>
    %342 = arith.mulf %333, %328 : vector<8x1xf32>
    %343 = arith.addf %341, %342 : vector<8x1xf32>
    %c1_132 = arith.constant 1 : index
    %c0_133 = arith.constant 0 : index
    %c0_134 = arith.constant 0 : index
    %344 = vector.load %arg6[%c1_132, %c0_133, %c0_134] : memref<8x8x33xf32, #tpu.memory_space<vmem>>, vector<1x8x33xf32>
    %345 = vector.shape_cast %344 : vector<1x8x33xf32> to vector<8x33xf32>
    %c2_135 = arith.constant 2 : index
    %c0_136 = arith.constant 0 : index
    %c0_137 = arith.constant 0 : index
    %346 = vector.load %arg6[%c2_135, %c0_136, %c0_137] : memref<8x8x33xf32, #tpu.memory_space<vmem>>, vector<1x8x33xf32>
    %347 = vector.shape_cast %346 : vector<1x8x33xf32> to vector<8x33xf32>
    %c6_i32_138 = arith.constant 6 : i32
    %348 = tpu.dynamic_rotate %347 by %c6_i32_138 dim 0 : vector<8x33xf32>, i32 -> vector<8x33xf32>
    %349 = arith.truncf %345 : vector<8x33xf32> to vector<8x33xbf16>
    %cst_139 = arith.constant dense<0.000000e+00> : vector<8x33xf32>
    %350 = tpu.matmul %349, %0, %cst_139 {dimension_numbers = #tpu.dot_dimension_numbers<[1], [0], [0], [1], [0, 0, 1, 1], [], []>} : vector<8x33xbf16>, vector<33x33xbf16>, vector<8x33xf32> -> vector<8x33xf32>
    %351 = arith.truncf %348 : vector<8x33xf32> to vector<8x33xbf16>
    %cst_140 = arith.constant dense<0.000000e+00> : vector<8x33xf32>
    %352 = tpu.matmul %351, %1, %cst_140 {dimension_numbers = #tpu.dot_dimension_numbers<[1], [0], [0], [1], [0, 0, 1, 1], [], []>} : vector<8x33xbf16>, vector<33x33xbf16>, vector<8x33xf32> -> vector<8x33xf32>
    %353 = arith.addf %350, %352 : vector<8x33xf32>
    %354 = vector.extract_strided_slice %353 {offsets = [0, 0], sizes = [8, 32], strides = [1, 1]} : vector<8x33xf32> to vector<8x32xf32>
    %355 = arith.addf %354, %4 : vector<8x32xf32>
    %356 = math.tanh %355 : vector<8x32xf32>
    %357 = vector.extract_strided_slice %353 {offsets = [0, 32], sizes = [8, 1], strides = [1, 1]} : vector<8x33xf32> to vector<8x1xf32>
    %358 = vector.extract_strided_slice %345 {offsets = [0, 32], sizes = [8, 1], strides = [1, 1]} : vector<8x33xf32> to vector<8x1xf32>
    %359 = arith.addf %357, %358 : vector<8x1xf32>
    %360 = vector.extract_strided_slice %348 {offsets = [0, 32], sizes = [8, 1], strides = [1, 1]} : vector<8x33xf32> to vector<8x1xf32>
    %361 = arith.addf %359, %360 : vector<8x1xf32>
    %362 = arith.maximumf %329, %361 : vector<8x1xf32>
    %363 = arith.subf %329, %362 : vector<8x1xf32>
    %364 = math.exp %363 : vector<8x1xf32>
    %365 = arith.subf %361, %362 : vector<8x1xf32>
    %366 = math.exp %365 : vector<8x1xf32>
    %367 = arith.mulf %364, %335 : vector<8x1xf32>
    %368 = arith.addf %367, %366 : vector<8x1xf32>
    %369 = vector.broadcast %364 : vector<8x1xf32> to vector<8x32xf32>
    %370 = arith.mulf %369, %340 : vector<8x32xf32>
    %371 = vector.broadcast %366 : vector<8x1xf32> to vector<8x32xf32>
    %372 = arith.mulf %371, %356 : vector<8x32xf32>
    %373 = arith.addf %370, %372 : vector<8x32xf32>
    %374 = arith.mulf %364, %343 : vector<8x1xf32>
    %375 = arith.mulf %366, %361 : vector<8x1xf32>
    %376 = arith.addf %374, %375 : vector<8x1xf32>
    %c2_141 = arith.constant 2 : index
    %c0_142 = arith.constant 0 : index
    %c0_143 = arith.constant 0 : index
    %377 = vector.load %arg6[%c2_141, %c0_142, %c0_143] : memref<8x8x33xf32, #tpu.memory_space<vmem>>, vector<1x8x33xf32>
    %378 = vector.shape_cast %377 : vector<1x8x33xf32> to vector<8x33xf32>
    %c1_144 = arith.constant 1 : index
    %c0_145 = arith.constant 0 : index
    %c0_146 = arith.constant 0 : index
    %379 = vector.load %arg6[%c1_144, %c0_145, %c0_146] : memref<8x8x33xf32, #tpu.memory_space<vmem>>, vector<1x8x33xf32>
    %380 = vector.shape_cast %379 : vector<1x8x33xf32> to vector<8x33xf32>
    %c5_i32_147 = arith.constant 5 : i32
    %381 = tpu.dynamic_rotate %380 by %c5_i32_147 dim 0 : vector<8x33xf32>, i32 -> vector<8x33xf32>
    %382 = arith.truncf %378 : vector<8x33xf32> to vector<8x33xbf16>
    %cst_148 = arith.constant dense<0.000000e+00> : vector<8x33xf32>
    %383 = tpu.matmul %382, %0, %cst_148 {dimension_numbers = #tpu.dot_dimension_numbers<[1], [0], [0], [1], [0, 0, 1, 1], [], []>} : vector<8x33xbf16>, vector<33x33xbf16>, vector<8x33xf32> -> vector<8x33xf32>
    %384 = arith.truncf %381 : vector<8x33xf32> to vector<8x33xbf16>
    %cst_149 = arith.constant dense<0.000000e+00> : vector<8x33xf32>
    %385 = tpu.matmul %384, %1, %cst_149 {dimension_numbers = #tpu.dot_dimension_numbers<[1], [0], [0], [1], [0, 0, 1, 1], [], []>} : vector<8x33xbf16>, vector<33x33xbf16>, vector<8x33xf32> -> vector<8x33xf32>
    %386 = arith.addf %383, %385 : vector<8x33xf32>
    %387 = vector.extract_strided_slice %386 {offsets = [0, 0], sizes = [8, 32], strides = [1, 1]} : vector<8x33xf32> to vector<8x32xf32>
    %388 = arith.addf %387, %4 : vector<8x32xf32>
    %389 = math.tanh %388 : vector<8x32xf32>
    %390 = vector.extract_strided_slice %386 {offsets = [0, 32], sizes = [8, 1], strides = [1, 1]} : vector<8x33xf32> to vector<8x1xf32>
    %391 = vector.extract_strided_slice %378 {offsets = [0, 32], sizes = [8, 1], strides = [1, 1]} : vector<8x33xf32> to vector<8x1xf32>
    %392 = arith.addf %390, %391 : vector<8x1xf32>
    %393 = vector.extract_strided_slice %381 {offsets = [0, 32], sizes = [8, 1], strides = [1, 1]} : vector<8x33xf32> to vector<8x1xf32>
    %394 = arith.addf %392, %393 : vector<8x1xf32>
    %395 = arith.maximumf %362, %394 : vector<8x1xf32>
    %396 = arith.subf %362, %395 : vector<8x1xf32>
    %397 = math.exp %396 : vector<8x1xf32>
    %398 = arith.subf %394, %395 : vector<8x1xf32>
    %399 = math.exp %398 : vector<8x1xf32>
    %400 = arith.mulf %397, %368 : vector<8x1xf32>
    %401 = arith.addf %400, %399 : vector<8x1xf32>
    %402 = vector.broadcast %397 : vector<8x1xf32> to vector<8x32xf32>
    %403 = arith.mulf %402, %373 : vector<8x32xf32>
    %404 = vector.broadcast %399 : vector<8x1xf32> to vector<8x32xf32>
    %405 = arith.mulf %404, %389 : vector<8x32xf32>
    %406 = arith.addf %403, %405 : vector<8x32xf32>
    %407 = arith.mulf %397, %376 : vector<8x1xf32>
    %408 = arith.mulf %399, %394 : vector<8x1xf32>
    %409 = arith.addf %407, %408 : vector<8x1xf32>
    %c3_150 = arith.constant 3 : index
    %c0_151 = arith.constant 0 : index
    %c0_152 = arith.constant 0 : index
    %410 = vector.load %arg6[%c3_150, %c0_151, %c0_152] : memref<8x8x33xf32, #tpu.memory_space<vmem>>, vector<1x8x33xf32>
    %411 = vector.shape_cast %410 : vector<1x8x33xf32> to vector<8x33xf32>
    %c0_153 = arith.constant 0 : index
    %c0_154 = arith.constant 0 : index
    %c0_155 = arith.constant 0 : index
    %412 = vector.load %arg6[%c0_153, %c0_154, %c0_155] : memref<8x8x33xf32, #tpu.memory_space<vmem>>, vector<1x8x33xf32>
    %413 = vector.shape_cast %412 : vector<1x8x33xf32> to vector<8x33xf32>
    %c4_i32 = arith.constant 4 : i32
    %414 = tpu.dynamic_rotate %413 by %c4_i32 dim 0 : vector<8x33xf32>, i32 -> vector<8x33xf32>
    %415 = arith.truncf %411 : vector<8x33xf32> to vector<8x33xbf16>
    %cst_156 = arith.constant dense<0.000000e+00> : vector<8x33xf32>
    %416 = tpu.matmul %415, %0, %cst_156 {dimension_numbers = #tpu.dot_dimension_numbers<[1], [0], [0], [1], [0, 0, 1, 1], [], []>} : vector<8x33xbf16>, vector<33x33xbf16>, vector<8x33xf32> -> vector<8x33xf32>
    %417 = arith.truncf %414 : vector<8x33xf32> to vector<8x33xbf16>
    %cst_157 = arith.constant dense<0.000000e+00> : vector<8x33xf32>
    %418 = tpu.matmul %417, %1, %cst_157 {dimension_numbers = #tpu.dot_dimension_numbers<[1], [0], [0], [1], [0, 0, 1, 1], [], []>} : vector<8x33xbf16>, vector<33x33xbf16>, vector<8x33xf32> -> vector<8x33xf32>
    %419 = arith.addf %416, %418 : vector<8x33xf32>
    %420 = vector.extract_strided_slice %419 {offsets = [0, 0], sizes = [8, 32], strides = [1, 1]} : vector<8x33xf32> to vector<8x32xf32>
    %421 = arith.addf %420, %4 : vector<8x32xf32>
    %422 = math.tanh %421 : vector<8x32xf32>
    %423 = vector.extract_strided_slice %419 {offsets = [0, 32], sizes = [8, 1], strides = [1, 1]} : vector<8x33xf32> to vector<8x1xf32>
    %424 = vector.extract_strided_slice %411 {offsets = [0, 32], sizes = [8, 1], strides = [1, 1]} : vector<8x33xf32> to vector<8x1xf32>
    %425 = arith.addf %423, %424 : vector<8x1xf32>
    %426 = vector.extract_strided_slice %414 {offsets = [0, 32], sizes = [8, 1], strides = [1, 1]} : vector<8x33xf32> to vector<8x1xf32>
    %427 = arith.addf %425, %426 : vector<8x1xf32>
    %428 = arith.maximumf %395, %427 : vector<8x1xf32>
    %429 = arith.subf %395, %428 : vector<8x1xf32>
    %430 = math.exp %429 : vector<8x1xf32>
    %431 = arith.subf %427, %428 : vector<8x1xf32>
    %432 = math.exp %431 : vector<8x1xf32>
    %433 = arith.mulf %430, %401 : vector<8x1xf32>
    %434 = arith.addf %433, %432 : vector<8x1xf32>
    %435 = vector.broadcast %430 : vector<8x1xf32> to vector<8x32xf32>
    %436 = arith.mulf %435, %406 : vector<8x32xf32>
    %437 = vector.broadcast %432 : vector<8x1xf32> to vector<8x32xf32>
    %438 = arith.mulf %437, %422 : vector<8x32xf32>
    %439 = arith.addf %436, %438 : vector<8x32xf32>
    %440 = arith.mulf %430, %409 : vector<8x1xf32>
    %441 = arith.mulf %432, %427 : vector<8x1xf32>
    %442 = arith.addf %440, %441 : vector<8x1xf32>
    %443 = tpu.reciprocal %434 {approx = true} : vector<8x1xf32> -> vector<8x1xf32>
    %c4_i32_158 = arith.constant 4 : i32
    %444 = vector.broadcast %c4_i32_158 : i32 to vector<8x1xi32>
    %445 = arith.cmpi slt, %21, %444 : vector<8x1xi32>
    %446 = vector.broadcast %443 : vector<8x1xf32> to vector<8x32xf32>
    %447 = arith.mulf %439, %446 : vector<8x32xf32>
    %cst_159 = arith.constant 0.000000e+00 : f32
    %448 = vector.shape_cast %445 : vector<8x1xi1> to vector<8x1xi1>
    %449 = vector.broadcast %448 : vector<8x1xi1> to vector<8x32xi1>
    %450 = vector.broadcast %cst_159 : f32 to vector<8x32xf32>
    %451 = arith.select %449, %447, %450 : vector<8x32xi1>, vector<8x32xf32>
    %452 = arith.mulf %442, %443 : vector<8x1xf32>
    %cst_160 = arith.constant 0.000000e+00 : f32
    %453 = vector.broadcast %cst_160 : f32 to vector<8x1xf32>
    %454 = arith.select %445, %452, %453 : vector<8x1xi1>, vector<8x1xf32>
    %c4 = arith.constant 4 : index
    %c0_161 = arith.constant 0 : index
    %c0_162 = arith.constant 0 : index
    %455 = vector.load %arg6[%c4, %c0_161, %c0_162] : memref<8x8x33xf32, #tpu.memory_space<vmem>>, vector<1x8x32xf32>
    %456 = vector.shape_cast %455 : vector<1x8x32xf32> to vector<8x32xf32>
    %457 = vector.shape_cast %451 : vector<8x32xf32> to vector<1x8x32xf32>
    tpu.vector_store %arg6[%c4, %c0_161, %c0_162], %457 {strides = array<i32>} : memref<8x8x33xf32, #tpu.memory_space<vmem>>, vector<1x8x32xf32>,
    %c4_163 = arith.constant 4 : index
    %c0_164 = arith.constant 0 : index
    %c32_165 = arith.constant 32 : index
    %458 = vector.load %arg6[%c4_163, %c0_164, %c32_165] : memref<8x8x33xf32, #tpu.memory_space<vmem>>, vector<1x8x1xf32>
    %459 = vector.shape_cast %458 : vector<1x8x1xf32> to vector<8x1xf32>
    %460 = vector.shape_cast %454 : vector<8x1xf32> to vector<1x8x1xf32>
    tpu.vector_store %arg6[%c4_163, %c0_164, %c32_165], %460 {strides = array<i32>} : memref<8x8x33xf32, #tpu.memory_space<vmem>>, vector<1x8x1xf32>,
    %c0_166 = arith.constant 0 : index
    %c4_167 = arith.constant 4 : index
    %c0_168 = arith.constant 0 : index
    %c0_169 = arith.constant 0 : index
    %461 = vector.load %arg5[%c0_166, %c4_167, %c0_168, %c0_169] : memref<1x8x8x32xf32, #tpu.memory_space<vmem>>, vector<1x1x8x32xf32>
    %462 = vector.shape_cast %461 : vector<1x1x8x32xf32> to vector<8x32xf32>
    %463 = vector.shape_cast %451 : vector<8x32xf32> to vector<1x1x8x32xf32>
    tpu.vector_store %arg5[%c0_166, %c4_167, %c0_168, %c0_169], %463 {strides = array<i32>} : memref<1x8x8x32xf32, #tpu.memory_space<vmem>>, vector<1x1x8x32xf32>,
    %cst_170 = arith.constant 0xFF800000 : f32
    %464 = vector.broadcast %cst_170 : f32 to vector<8x1xf32>
    %cst_171 = arith.constant 0.000000e+00 : f32
    %465 = vector.broadcast %cst_171 : f32 to vector<8x1xf32>
    %cst_172 = arith.constant 0.000000e+00 : f32
    %466 = vector.broadcast %cst_172 : f32 to vector<8x32xf32>
    %cst_173 = arith.constant 0.000000e+00 : f32
    %467 = vector.broadcast %cst_173 : f32 to vector<8x1xf32>
    %c0_174 = arith.constant 0 : index
    %c0_175 = arith.constant 0 : index
    %c0_176 = arith.constant 0 : index
    %468 = vector.load %arg6[%c0_174, %c0_175, %c0_176] : memref<8x8x33xf32, #tpu.memory_space<vmem>>, vector<1x8x33xf32>
    %469 = vector.shape_cast %468 : vector<1x8x33xf32> to vector<8x33xf32>
    %c4_177 = arith.constant 4 : index
    %c0_178 = arith.constant 0 : index
    %c0_179 = arith.constant 0 : index
    %470 = vector.load %arg6[%c4_177, %c0_178, %c0_179] : memref<8x8x33xf32, #tpu.memory_space<vmem>>, vector<1x8x33xf32>
    %471 = vector.shape_cast %470 : vector<1x8x33xf32> to vector<8x33xf32>
    %c7_i32_180 = arith.constant 7 : i32
    %472 = tpu.dynamic_rotate %471 by %c7_i32_180 dim 0 : vector<8x33xf32>, i32 -> vector<8x33xf32>
    %473 = arith.truncf %469 : vector<8x33xf32> to vector<8x33xbf16>
    %cst_181 = arith.constant dense<0.000000e+00> : vector<8x33xf32>
    %474 = tpu.matmul %473, %0, %cst_181 {dimension_numbers = #tpu.dot_dimension_numbers<[1], [0], [0], [1], [0, 0, 1, 1], [], []>} : vector<8x33xbf16>, vector<33x33xbf16>, vector<8x33xf32> -> vector<8x33xf32>
    %475 = arith.truncf %472 : vector<8x33xf32> to vector<8x33xbf16>
    %cst_182 = arith.constant dense<0.000000e+00> : vector<8x33xf32>
    %476 = tpu.matmul %475, %1, %cst_182 {dimension_numbers = #tpu.dot_dimension_numbers<[1], [0], [0], [1], [0, 0, 1, 1], [], []>} : vector<8x33xbf16>, vector<33x33xbf16>, vector<8x33xf32> -> vector<8x33xf32>
    %477 = arith.addf %474, %476 : vector<8x33xf32>
    %478 = vector.extract_strided_slice %477 {offsets = [0, 0], sizes = [8, 32], strides = [1, 1]} : vector<8x33xf32> to vector<8x32xf32>
    %479 = arith.addf %478, %4 : vector<8x32xf32>
    %480 = math.tanh %479 : vector<8x32xf32>
    %481 = vector.extract_strided_slice %477 {offsets = [0, 32], sizes = [8, 1], strides = [1, 1]} : vector<8x33xf32> to vector<8x1xf32>
    %482 = vector.extract_strided_slice %469 {offsets = [0, 32], sizes = [8, 1], strides = [1, 1]} : vector<8x33xf32> to vector<8x1xf32>
    %483 = arith.addf %481, %482 : vector<8x1xf32>
    %484 = vector.extract_strided_slice %472 {offsets = [0, 32], sizes = [8, 1], strides = [1, 1]} : vector<8x33xf32> to vector<8x1xf32>
    %485 = arith.addf %483, %484 : vector<8x1xf32>
    %486 = arith.maximumf %464, %485 : vector<8x1xf32>
    %487 = arith.subf %464, %486 : vector<8x1xf32>
    %488 = math.exp %487 : vector<8x1xf32>
    %489 = arith.subf %485, %486 : vector<8x1xf32>
    %490 = math.exp %489 : vector<8x1xf32>
    %491 = arith.mulf %488, %465 : vector<8x1xf32>
    %492 = arith.addf %491, %490 : vector<8x1xf32>
    %493 = vector.broadcast %488 : vector<8x1xf32> to vector<8x32xf32>
    %494 = arith.mulf %493, %466 : vector<8x32xf32>
    %495 = vector.broadcast %490 : vector<8x1xf32> to vector<8x32xf32>
    %496 = arith.mulf %495, %480 : vector<8x32xf32>
    %497 = arith.addf %494, %496 : vector<8x32xf32>
    %498 = arith.mulf %488, %467 : vector<8x1xf32>
    %499 = arith.mulf %490, %485 : vector<8x1xf32>
    %500 = arith.addf %498, %499 : vector<8x1xf32>
    %c1_183 = arith.constant 1 : index
    %c0_184 = arith.constant 0 : index
    %c0_185 = arith.constant 0 : index
    %501 = vector.load %arg6[%c1_183, %c0_184, %c0_185] : memref<8x8x33xf32, #tpu.memory_space<vmem>>, vector<1x8x33xf32>
    %502 = vector.shape_cast %501 : vector<1x8x33xf32> to vector<8x33xf32>
    %c3_186 = arith.constant 3 : index
    %c0_187 = arith.constant 0 : index
    %c0_188 = arith.constant 0 : index
    %503 = vector.load %arg6[%c3_186, %c0_187, %c0_188] : memref<8x8x33xf32, #tpu.memory_space<vmem>>, vector<1x8x33xf32>
    %504 = vector.shape_cast %503 : vector<1x8x33xf32> to vector<8x33xf32>
    %c6_i32_189 = arith.constant 6 : i32
    %505 = tpu.dynamic_rotate %504 by %c6_i32_189 dim 0 : vector<8x33xf32>, i32 -> vector<8x33xf32>
    %506 = arith.truncf %502 : vector<8x33xf32> to vector<8x33xbf16>
    %cst_190 = arith.constant dense<0.000000e+00> : vector<8x33xf32>
    %507 = tpu.matmul %506, %0, %cst_190 {dimension_numbers = #tpu.dot_dimension_numbers<[1], [0], [0], [1], [0, 0, 1, 1], [], []>} : vector<8x33xbf16>, vector<33x33xbf16>, vector<8x33xf32> -> vector<8x33xf32>
    %508 = arith.truncf %505 : vector<8x33xf32> to vector<8x33xbf16>
    %cst_191 = arith.constant dense<0.000000e+00> : vector<8x33xf32>
    %509 = tpu.matmul %508, %1, %cst_191 {dimension_numbers = #tpu.dot_dimension_numbers<[1], [0], [0], [1], [0, 0, 1, 1], [], []>} : vector<8x33xbf16>, vector<33x33xbf16>, vector<8x33xf32> -> vector<8x33xf32>
    %510 = arith.addf %507, %509 : vector<8x33xf32>
    %511 = vector.extract_strided_slice %510 {offsets = [0, 0], sizes = [8, 32], strides = [1, 1]} : vector<8x33xf32> to vector<8x32xf32>
    %512 = arith.addf %511, %4 : vector<8x32xf32>
    %513 = math.tanh %512 : vector<8x32xf32>
    %514 = vector.extract_strided_slice %510 {offsets = [0, 32], sizes = [8, 1], strides = [1, 1]} : vector<8x33xf32> to vector<8x1xf32>
    %515 = vector.extract_strided_slice %502 {offsets = [0, 32], sizes = [8, 1], strides = [1, 1]} : vector<8x33xf32> to vector<8x1xf32>
    %516 = arith.addf %514, %515 : vector<8x1xf32>
    %517 = vector.extract_strided_slice %505 {offsets = [0, 32], sizes = [8, 1], strides = [1, 1]} : vector<8x33xf32> to vector<8x1xf32>
    %518 = arith.addf %516, %517 : vector<8x1xf32>
    %519 = arith.maximumf %486, %518 : vector<8x1xf32>
    %520 = arith.subf %486, %519 : vector<8x1xf32>
    %521 = math.exp %520 : vector<8x1xf32>
    %522 = arith.subf %518, %519 : vector<8x1xf32>
    %523 = math.exp %522 : vector<8x1xf32>
    %524 = arith.mulf %521, %492 : vector<8x1xf32>
    %525 = arith.addf %524, %523 : vector<8x1xf32>
    %526 = vector.broadcast %521 : vector<8x1xf32> to vector<8x32xf32>
    %527 = arith.mulf %526, %497 : vector<8x32xf32>
    %528 = vector.broadcast %523 : vector<8x1xf32> to vector<8x32xf32>
    %529 = arith.mulf %528, %513 : vector<8x32xf32>
    %530 = arith.addf %527, %529 : vector<8x32xf32>
    %531 = arith.mulf %521, %500 : vector<8x1xf32>
    %532 = arith.mulf %523, %518 : vector<8x1xf32>
    %533 = arith.addf %531, %532 : vector<8x1xf32>
    %c2_192 = arith.constant 2 : index
    %c0_193 = arith.constant 0 : index
    %c0_194 = arith.constant 0 : index
    %534 = vector.load %arg6[%c2_192, %c0_193, %c0_194] : memref<8x8x33xf32, #tpu.memory_space<vmem>>, vector<1x8x33xf32>
    %535 = vector.shape_cast %534 : vector<1x8x33xf32> to vector<8x33xf32>
    %c2_195 = arith.constant 2 : index
    %c0_196 = arith.constant 0 : index
    %c0_197 = arith.constant 0 : index
    %536 = vector.load %arg6[%c2_195, %c0_196, %c0_197] : memref<8x8x33xf32, #tpu.memory_space<vmem>>, vector<1x8x33xf32>
    %537 = vector.shape_cast %536 : vector<1x8x33xf32> to vector<8x33xf32>
    %c5_i32_198 = arith.constant 5 : i32
    %538 = tpu.dynamic_rotate %537 by %c5_i32_198 dim 0 : vector<8x33xf32>, i32 -> vector<8x33xf32>
    %539 = arith.truncf %535 : vector<8x33xf32> to vector<8x33xbf16>
    %cst_199 = arith.constant dense<0.000000e+00> : vector<8x33xf32>
    %540 = tpu.matmul %539, %0, %cst_199 {dimension_numbers = #tpu.dot_dimension_numbers<[1], [0], [0], [1], [0, 0, 1, 1], [], []>} : vector<8x33xbf16>, vector<33x33xbf16>, vector<8x33xf32> -> vector<8x33xf32>
    %541 = arith.truncf %538 : vector<8x33xf32> to vector<8x33xbf16>
    %cst_200 = arith.constant dense<0.000000e+00> : vector<8x33xf32>
    %542 = tpu.matmul %541, %1, %cst_200 {dimension_numbers = #tpu.dot_dimension_numbers<[1], [0], [0], [1], [0, 0, 1, 1], [], []>} : vector<8x33xbf16>, vector<33x33xbf16>, vector<8x33xf32> -> vector<8x33xf32>
    %543 = arith.addf %540, %542 : vector<8x33xf32>
    %544 = vector.extract_strided_slice %543 {offsets = [0, 0], sizes = [8, 32], strides = [1, 1]} : vector<8x33xf32> to vector<8x32xf32>
    %545 = arith.addf %544, %4 : vector<8x32xf32>
    %546 = math.tanh %545 : vector<8x32xf32>
    %547 = vector.extract_strided_slice %543 {offsets = [0, 32], sizes = [8, 1], strides = [1, 1]} : vector<8x33xf32> to vector<8x1xf32>
    %548 = vector.extract_strided_slice %535 {offsets = [0, 32], sizes = [8, 1], strides = [1, 1]} : vector<8x33xf32> to vector<8x1xf32>
    %549 = arith.addf %547, %548 : vector<8x1xf32>
    %550 = vector.extract_strided_slice %538 {offsets = [0, 32], sizes = [8, 1], strides = [1, 1]} : vector<8x33xf32> to vector<8x1xf32>
    %551 = arith.addf %549, %550 : vector<8x1xf32>
    %552 = arith.maximumf %519, %551 : vector<8x1xf32>
    %553 = arith.subf %519, %552 : vector<8x1xf32>
    %554 = math.exp %553 : vector<8x1xf32>
    %555 = arith.subf %551, %552 : vector<8x1xf32>
    %556 = math.exp %555 : vector<8x1xf32>
    %557 = arith.mulf %554, %525 : vector<8x1xf32>
    %558 = arith.addf %557, %556 : vector<8x1xf32>
    %559 = vector.broadcast %554 : vector<8x1xf32> to vector<8x32xf32>
    %560 = arith.mulf %559, %530 : vector<8x32xf32>
    %561 = vector.broadcast %556 : vector<8x1xf32> to vector<8x32xf32>
    %562 = arith.mulf %561, %546 : vector<8x32xf32>
    %563 = arith.addf %560, %562 : vector<8x32xf32>
    %564 = arith.mulf %554, %533 : vector<8x1xf32>
    %565 = arith.mulf %556, %551 : vector<8x1xf32>
    %566 = arith.addf %564, %565 : vector<8x1xf32>
    %c3_201 = arith.constant 3 : index
    %c0_202 = arith.constant 0 : index
    %c0_203 = arith.constant 0 : index
    %567 = vector.load %arg6[%c3_201, %c0_202, %c0_203] : memref<8x8x33xf32, #tpu.memory_space<vmem>>, vector<1x8x33xf32>
    %568 = vector.shape_cast %567 : vector<1x8x33xf32> to vector<8x33xf32>
    %c1_204 = arith.constant 1 : index
    %c0_205 = arith.constant 0 : index
    %c0_206 = arith.constant 0 : index
    %569 = vector.load %arg6[%c1_204, %c0_205, %c0_206] : memref<8x8x33xf32, #tpu.memory_space<vmem>>, vector<1x8x33xf32>
    %570 = vector.shape_cast %569 : vector<1x8x33xf32> to vector<8x33xf32>
    %c4_i32_207 = arith.constant 4 : i32
    %571 = tpu.dynamic_rotate %570 by %c4_i32_207 dim 0 : vector<8x33xf32>, i32 -> vector<8x33xf32>
    %572 = arith.truncf %568 : vector<8x33xf32> to vector<8x33xbf16>
    %cst_208 = arith.constant dense<0.000000e+00> : vector<8x33xf32>
    %573 = tpu.matmul %572, %0, %cst_208 {dimension_numbers = #tpu.dot_dimension_numbers<[1], [0], [0], [1], [0, 0, 1, 1], [], []>} : vector<8x33xbf16>, vector<33x33xbf16>, vector<8x33xf32> -> vector<8x33xf32>
    %574 = arith.truncf %571 : vector<8x33xf32> to vector<8x33xbf16>
    %cst_209 = arith.constant dense<0.000000e+00> : vector<8x33xf32>
    %575 = tpu.matmul %574, %1, %cst_209 {dimension_numbers = #tpu.dot_dimension_numbers<[1], [0], [0], [1], [0, 0, 1, 1], [], []>} : vector<8x33xbf16>, vector<33x33xbf16>, vector<8x33xf32> -> vector<8x33xf32>
    %576 = arith.addf %573, %575 : vector<8x33xf32>
    %577 = vector.extract_strided_slice %576 {offsets = [0, 0], sizes = [8, 32], strides = [1, 1]} : vector<8x33xf32> to vector<8x32xf32>
    %578 = arith.addf %577, %4 : vector<8x32xf32>
    %579 = math.tanh %578 : vector<8x32xf32>
    %580 = vector.extract_strided_slice %576 {offsets = [0, 32], sizes = [8, 1], strides = [1, 1]} : vector<8x33xf32> to vector<8x1xf32>
    %581 = vector.extract_strided_slice %568 {offsets = [0, 32], sizes = [8, 1], strides = [1, 1]} : vector<8x33xf32> to vector<8x1xf32>
    %582 = arith.addf %580, %581 : vector<8x1xf32>
    %583 = vector.extract_strided_slice %571 {offsets = [0, 32], sizes = [8, 1], strides = [1, 1]} : vector<8x33xf32> to vector<8x1xf32>
    %584 = arith.addf %582, %583 : vector<8x1xf32>
    %585 = arith.maximumf %552, %584 : vector<8x1xf32>
    %586 = arith.subf %552, %585 : vector<8x1xf32>
    %587 = math.exp %586 : vector<8x1xf32>
    %588 = arith.subf %584, %585 : vector<8x1xf32>
    %589 = math.exp %588 : vector<8x1xf32>
    %590 = arith.mulf %587, %558 : vector<8x1xf32>
    %591 = arith.addf %590, %589 : vector<8x1xf32>
    %592 = vector.broadcast %587 : vector<8x1xf32> to vector<8x32xf32>
    %593 = arith.mulf %592, %563 : vector<8x32xf32>
    %594 = vector.broadcast %589 : vector<8x1xf32> to vector<8x32xf32>
    %595 = arith.mulf %594, %579 : vector<8x32xf32>
    %596 = arith.addf %593, %595 : vector<8x32xf32>
    %597 = arith.mulf %587, %566 : vector<8x1xf32>
    %598 = arith.mulf %589, %584 : vector<8x1xf32>
    %599 = arith.addf %597, %598 : vector<8x1xf32>
    %c4_210 = arith.constant 4 : index
    %c0_211 = arith.constant 0 : index
    %c0_212 = arith.constant 0 : index
    %600 = vector.load %arg6[%c4_210, %c0_211, %c0_212] : memref<8x8x33xf32, #tpu.memory_space<vmem>>, vector<1x8x33xf32>
    %601 = vector.shape_cast %600 : vector<1x8x33xf32> to vector<8x33xf32>
    %c0_213 = arith.constant 0 : index
    %c0_214 = arith.constant 0 : index
    %c0_215 = arith.constant 0 : index
    %602 = vector.load %arg6[%c0_213, %c0_214, %c0_215] : memref<8x8x33xf32, #tpu.memory_space<vmem>>, vector<1x8x33xf32>
    %603 = vector.shape_cast %602 : vector<1x8x33xf32> to vector<8x33xf32>
    %c3_i32 = arith.constant 3 : i32
    %604 = tpu.dynamic_rotate %603 by %c3_i32 dim 0 : vector<8x33xf32>, i32 -> vector<8x33xf32>
    %605 = arith.truncf %601 : vector<8x33xf32> to vector<8x33xbf16>
    %cst_216 = arith.constant dense<0.000000e+00> : vector<8x33xf32>
    %606 = tpu.matmul %605, %0, %cst_216 {dimension_numbers = #tpu.dot_dimension_numbers<[1], [0], [0], [1], [0, 0, 1, 1], [], []>} : vector<8x33xbf16>, vector<33x33xbf16>, vector<8x33xf32> -> vector<8x33xf32>
    %607 = arith.truncf %604 : vector<8x33xf32> to vector<8x33xbf16>
    %cst_217 = arith.constant dense<0.000000e+00> : vector<8x33xf32>
    %608 = tpu.matmul %607, %1, %cst_217 {dimension_numbers = #tpu.dot_dimension_numbers<[1], [0], [0], [1], [0, 0, 1, 1], [], []>} : vector<8x33xbf16>, vector<33x33xbf16>, vector<8x33xf32> -> vector<8x33xf32>
    %609 = arith.addf %606, %608 : vector<8x33xf32>
    %610 = vector.extract_strided_slice %609 {offsets = [0, 0], sizes = [8, 32], strides = [1, 1]} : vector<8x33xf32> to vector<8x32xf32>
    %611 = arith.addf %610, %4 : vector<8x32xf32>
    %612 = math.tanh %611 : vector<8x32xf32>
    %613 = vector.extract_strided_slice %609 {offsets = [0, 32], sizes = [8, 1], strides = [1, 1]} : vector<8x33xf32> to vector<8x1xf32>
    %614 = vector.extract_strided_slice %601 {offsets = [0, 32], sizes = [8, 1], strides = [1, 1]} : vector<8x33xf32> to vector<8x1xf32>
    %615 = arith.addf %613, %614 : vector<8x1xf32>
    %616 = vector.extract_strided_slice %604 {offsets = [0, 32], sizes = [8, 1], strides = [1, 1]} : vector<8x33xf32> to vector<8x1xf32>
    %617 = arith.addf %615, %616 : vector<8x1xf32>
    %618 = arith.maximumf %585, %617 : vector<8x1xf32>
    %619 = arith.subf %585, %618 : vector<8x1xf32>
    %620 = math.exp %619 : vector<8x1xf32>
    %621 = arith.subf %617, %618 : vector<8x1xf32>
    %622 = math.exp %621 : vector<8x1xf32>
    %623 = arith.mulf %620, %591 : vector<8x1xf32>
    %624 = arith.addf %623, %622 : vector<8x1xf32>
    %625 = vector.broadcast %620 : vector<8x1xf32> to vector<8x32xf32>
    %626 = arith.mulf %625, %596 : vector<8x32xf32>
    %627 = vector.broadcast %622 : vector<8x1xf32> to vector<8x32xf32>
    %628 = arith.mulf %627, %612 : vector<8x32xf32>
    %629 = arith.addf %626, %628 : vector<8x32xf32>
    %630 = arith.mulf %620, %599 : vector<8x1xf32>
    %631 = arith.mulf %622, %617 : vector<8x1xf32>
    %632 = arith.addf %630, %631 : vector<8x1xf32>
    %633 = tpu.reciprocal %624 {approx = true} : vector<8x1xf32> -> vector<8x1xf32>
    %c3_i32_218 = arith.constant 3 : i32
    %634 = vector.broadcast %c3_i32_218 : i32 to vector<8x1xi32>
    %635 = arith.cmpi slt, %21, %634 : vector<8x1xi32>
    %636 = vector.broadcast %633 : vector<8x1xf32> to vector<8x32xf32>
    %637 = arith.mulf %629, %636 : vector<8x32xf32>
    %cst_219 = arith.constant 0.000000e+00 : f32
    %638 = vector.shape_cast %635 : vector<8x1xi1> to vector<8x1xi1>
    %639 = vector.broadcast %638 : vector<8x1xi1> to vector<8x32xi1>
    %640 = vector.broadcast %cst_219 : f32 to vector<8x32xf32>
    %641 = arith.select %639, %637, %640 : vector<8x32xi1>, vector<8x32xf32>
    %642 = arith.mulf %632, %633 : vector<8x1xf32>
    %cst_220 = arith.constant 0.000000e+00 : f32
    %643 = vector.broadcast %cst_220 : f32 to vector<8x1xf32>
    %644 = arith.select %635, %642, %643 : vector<8x1xi1>, vector<8x1xf32>
    %c5 = arith.constant 5 : index
    %c0_221 = arith.constant 0 : index
    %c0_222 = arith.constant 0 : index
    %645 = vector.load %arg6[%c5, %c0_221, %c0_222] : memref<8x8x33xf32, #tpu.memory_space<vmem>>, vector<1x8x32xf32>
    %646 = vector.shape_cast %645 : vector<1x8x32xf32> to vector<8x32xf32>
    %647 = vector.shape_cast %641 : vector<8x32xf32> to vector<1x8x32xf32>
    tpu.vector_store %arg6[%c5, %c0_221, %c0_222], %647 {strides = array<i32>} : memref<8x8x33xf32, #tpu.memory_space<vmem>>, vector<1x8x32xf32>,
    %c5_223 = arith.constant 5 : index
    %c0_224 = arith.constant 0 : index
    %c32_225 = arith.constant 32 : index
    %648 = vector.load %arg6[%c5_223, %c0_224, %c32_225] : memref<8x8x33xf32, #tpu.memory_space<vmem>>, vector<1x8x1xf32>
    %649 = vector.shape_cast %648 : vector<1x8x1xf32> to vector<8x1xf32>
    %650 = vector.shape_cast %644 : vector<8x1xf32> to vector<1x8x1xf32>
    tpu.vector_store %arg6[%c5_223, %c0_224, %c32_225], %650 {strides = array<i32>} : memref<8x8x33xf32, #tpu.memory_space<vmem>>, vector<1x8x1xf32>,
    %c0_226 = arith.constant 0 : index
    %c5_227 = arith.constant 5 : index
    %c0_228 = arith.constant 0 : index
    %c0_229 = arith.constant 0 : index
    %651 = vector.load %arg5[%c0_226, %c5_227, %c0_228, %c0_229] : memref<1x8x8x32xf32, #tpu.memory_space<vmem>>, vector<1x1x8x32xf32>
    %652 = vector.shape_cast %651 : vector<1x1x8x32xf32> to vector<8x32xf32>
    %653 = vector.shape_cast %641 : vector<8x32xf32> to vector<1x1x8x32xf32>
    tpu.vector_store %arg5[%c0_226, %c5_227, %c0_228, %c0_229], %653 {strides = array<i32>} : memref<1x8x8x32xf32, #tpu.memory_space<vmem>>, vector<1x1x8x32xf32>,
    %cst_230 = arith.constant 0xFF800000 : f32
    %654 = vector.broadcast %cst_230 : f32 to vector<8x1xf32>
    %cst_231 = arith.constant 0.000000e+00 : f32
    %655 = vector.broadcast %cst_231 : f32 to vector<8x1xf32>
    %cst_232 = arith.constant 0.000000e+00 : f32
    %656 = vector.broadcast %cst_232 : f32 to vector<8x32xf32>
    %cst_233 = arith.constant 0.000000e+00 : f32
    %657 = vector.broadcast %cst_233 : f32 to vector<8x1xf32>
    %c0_234 = arith.constant 0 : index
    %c0_235 = arith.constant 0 : index
    %c0_236 = arith.constant 0 : index
    %658 = vector.load %arg6[%c0_234, %c0_235, %c0_236] : memref<8x8x33xf32, #tpu.memory_space<vmem>>, vector<1x8x33xf32>
    %659 = vector.shape_cast %658 : vector<1x8x33xf32> to vector<8x33xf32>
    %c5_237 = arith.constant 5 : index
    %c0_238 = arith.constant 0 : index
    %c0_239 = arith.constant 0 : index
    %660 = vector.load %arg6[%c5_237, %c0_238, %c0_239] : memref<8x8x33xf32, #tpu.memory_space<vmem>>, vector<1x8x33xf32>
    %661 = vector.shape_cast %660 : vector<1x8x33xf32> to vector<8x33xf32>
    %c7_i32_240 = arith.constant 7 : i32
    %662 = tpu.dynamic_rotate %661 by %c7_i32_240 dim 0 : vector<8x33xf32>, i32 -> vector<8x33xf32>
    %663 = arith.truncf %659 : vector<8x33xf32> to vector<8x33xbf16>
    %cst_241 = arith.constant dense<0.000000e+00> : vector<8x33xf32>
    %664 = tpu.matmul %663, %0, %cst_241 {dimension_numbers = #tpu.dot_dimension_numbers<[1], [0], [0], [1], [0, 0, 1, 1], [], []>} : vector<8x33xbf16>, vector<33x33xbf16>, vector<8x33xf32> -> vector<8x33xf32>
    %665 = arith.truncf %662 : vector<8x33xf32> to vector<8x33xbf16>
    %cst_242 = arith.constant dense<0.000000e+00> : vector<8x33xf32>
    %666 = tpu.matmul %665, %1, %cst_242 {dimension_numbers = #tpu.dot_dimension_numbers<[1], [0], [0], [1], [0, 0, 1, 1], [], []>} : vector<8x33xbf16>, vector<33x33xbf16>, vector<8x33xf32> -> vector<8x33xf32>
    %667 = arith.addf %664, %666 : vector<8x33xf32>
    %668 = vector.extract_strided_slice %667 {offsets = [0, 0], sizes = [8, 32], strides = [1, 1]} : vector<8x33xf32> to vector<8x32xf32>
    %669 = arith.addf %668, %4 : vector<8x32xf32>
    %670 = math.tanh %669 : vector<8x32xf32>
    %671 = vector.extract_strided_slice %667 {offsets = [0, 32], sizes = [8, 1], strides = [1, 1]} : vector<8x33xf32> to vector<8x1xf32>
    %672 = vector.extract_strided_slice %659 {offsets = [0, 32], sizes = [8, 1], strides = [1, 1]} : vector<8x33xf32> to vector<8x1xf32>
    %673 = arith.addf %671, %672 : vector<8x1xf32>
    %674 = vector.extract_strided_slice %662 {offsets = [0, 32], sizes = [8, 1], strides = [1, 1]} : vector<8x33xf32> to vector<8x1xf32>
    %675 = arith.addf %673, %674 : vector<8x1xf32>
    %676 = arith.maximumf %654, %675 : vector<8x1xf32>
    %677 = arith.subf %654, %676 : vector<8x1xf32>
    %678 = math.exp %677 : vector<8x1xf32>
    %679 = arith.subf %675, %676 : vector<8x1xf32>
    %680 = math.exp %679 : vector<8x1xf32>
    %681 = arith.mulf %678, %655 : vector<8x1xf32>
    %682 = arith.addf %681, %680 : vector<8x1xf32>
    %683 = vector.broadcast %678 : vector<8x1xf32> to vector<8x32xf32>
    %684 = arith.mulf %683, %656 : vector<8x32xf32>
    %685 = vector.broadcast %680 : vector<8x1xf32> to vector<8x32xf32>
    %686 = arith.mulf %685, %670 : vector<8x32xf32>
    %687 = arith.addf %684, %686 : vector<8x32xf32>
    %688 = arith.mulf %678, %657 : vector<8x1xf32>
    %689 = arith.mulf %680, %675 : vector<8x1xf32>
    %690 = arith.addf %688, %689 : vector<8x1xf32>
    %c1_243 = arith.constant 1 : index
    %c0_244 = arith.constant 0 : index
    %c0_245 = arith.constant 0 : index
    %691 = vector.load %arg6[%c1_243, %c0_244, %c0_245] : memref<8x8x33xf32, #tpu.memory_space<vmem>>, vector<1x8x33xf32>
    %692 = vector.shape_cast %691 : vector<1x8x33xf32> to vector<8x33xf32>
    %c4_246 = arith.constant 4 : index
    %c0_247 = arith.constant 0 : index
    %c0_248 = arith.constant 0 : index
    %693 = vector.load %arg6[%c4_246, %c0_247, %c0_248] : memref<8x8x33xf32, #tpu.memory_space<vmem>>, vector<1x8x33xf32>
    %694 = vector.shape_cast %693 : vector<1x8x33xf32> to vector<8x33xf32>
    %c6_i32_249 = arith.constant 6 : i32
    %695 = tpu.dynamic_rotate %694 by %c6_i32_249 dim 0 : vector<8x33xf32>, i32 -> vector<8x33xf32>
    %696 = arith.truncf %692 : vector<8x33xf32> to vector<8x33xbf16>
    %cst_250 = arith.constant dense<0.000000e+00> : vector<8x33xf32>
    %697 = tpu.matmul %696, %0, %cst_250 {dimension_numbers = #tpu.dot_dimension_numbers<[1], [0], [0], [1], [0, 0, 1, 1], [], []>} : vector<8x33xbf16>, vector<33x33xbf16>, vector<8x33xf32> -> vector<8x33xf32>
    %698 = arith.truncf %695 : vector<8x33xf32> to vector<8x33xbf16>
    %cst_251 = arith.constant dense<0.000000e+00> : vector<8x33xf32>
    %699 = tpu.matmul %698, %1, %cst_251 {dimension_numbers = #tpu.dot_dimension_numbers<[1], [0], [0], [1], [0, 0, 1, 1], [], []>} : vector<8x33xbf16>, vector<33x33xbf16>, vector<8x33xf32> -> vector<8x33xf32>
    %700 = arith.addf %697, %699 : vector<8x33xf32>
    %701 = vector.extract_strided_slice %700 {offsets = [0, 0], sizes = [8, 32], strides = [1, 1]} : vector<8x33xf32> to vector<8x32xf32>
    %702 = arith.addf %701, %4 : vector<8x32xf32>
    %703 = math.tanh %702 : vector<8x32xf32>
    %704 = vector.extract_strided_slice %700 {offsets = [0, 32], sizes = [8, 1], strides = [1, 1]} : vector<8x33xf32> to vector<8x1xf32>
    %705 = vector.extract_strided_slice %692 {offsets = [0, 32], sizes = [8, 1], strides = [1, 1]} : vector<8x33xf32> to vector<8x1xf32>
    %706 = arith.addf %704, %705 : vector<8x1xf32>
    %707 = vector.extract_strided_slice %695 {offsets = [0, 32], sizes = [8, 1], strides = [1, 1]} : vector<8x33xf32> to vector<8x1xf32>
    %708 = arith.addf %706, %707 : vector<8x1xf32>
    %709 = arith.maximumf %676, %708 : vector<8x1xf32>
    %710 = arith.subf %676, %709 : vector<8x1xf32>
    %711 = math.exp %710 : vector<8x1xf32>
    %712 = arith.subf %708, %709 : vector<8x1xf32>
    %713 = math.exp %712 : vector<8x1xf32>
    %714 = arith.mulf %711, %682 : vector<8x1xf32>
    %715 = arith.addf %714, %713 : vector<8x1xf32>
    %716 = vector.broadcast %711 : vector<8x1xf32> to vector<8x32xf32>
    %717 = arith.mulf %716, %687 : vector<8x32xf32>
    %718 = vector.broadcast %713 : vector<8x1xf32> to vector<8x32xf32>
    %719 = arith.mulf %718, %703 : vector<8x32xf32>
    %720 = arith.addf %717, %719 : vector<8x32xf32>
    %721 = arith.mulf %711, %690 : vector<8x1xf32>
    %722 = arith.mulf %713, %708 : vector<8x1xf32>
    %723 = arith.addf %721, %722 : vector<8x1xf32>
    %c2_252 = arith.constant 2 : index
    %c0_253 = arith.constant 0 : index
    %c0_254 = arith.constant 0 : index
    %724 = vector.load %arg6[%c2_252, %c0_253, %c0_254] : memref<8x8x33xf32, #tpu.memory_space<vmem>>, vector<1x8x33xf32>
    %725 = vector.shape_cast %724 : vector<1x8x33xf32> to vector<8x33xf32>
    %c3_255 = arith.constant 3 : index
    %c0_256 = arith.constant 0 : index
    %c0_257 = arith.constant 0 : index
    %726 = vector.load %arg6[%c3_255, %c0_256, %c0_257] : memref<8x8x33xf32, #tpu.memory_space<vmem>>, vector<1x8x33xf32>
    %727 = vector.shape_cast %726 : vector<1x8x33xf32> to vector<8x33xf32>
    %c5_i32_258 = arith.constant 5 : i32
    %728 = tpu.dynamic_rotate %727 by %c5_i32_258 dim 0 : vector<8x33xf32>, i32 -> vector<8x33xf32>
    %729 = arith.truncf %725 : vector<8x33xf32> to vector<8x33xbf16>
    %cst_259 = arith.constant dense<0.000000e+00> : vector<8x33xf32>
    %730 = tpu.matmul %729, %0, %cst_259 {dimension_numbers = #tpu.dot_dimension_numbers<[1], [0], [0], [1], [0, 0, 1, 1], [], []>} : vector<8x33xbf16>, vector<33x33xbf16>, vector<8x33xf32> -> vector<8x33xf32>
    %731 = arith.truncf %728 : vector<8x33xf32> to vector<8x33xbf16>
    %cst_260 = arith.constant dense<0.000000e+00> : vector<8x33xf32>
    %732 = tpu.matmul %731, %1, %cst_260 {dimension_numbers = #tpu.dot_dimension_numbers<[1], [0], [0], [1], [0, 0, 1, 1], [], []>} : vector<8x33xbf16>, vector<33x33xbf16>, vector<8x33xf32> -> vector<8x33xf32>
    %733 = arith.addf %730, %732 : vector<8x33xf32>
    %734 = vector.extract_strided_slice %733 {offsets = [0, 0], sizes = [8, 32], strides = [1, 1]} : vector<8x33xf32> to vector<8x32xf32>
    %735 = arith.addf %734, %4 : vector<8x32xf32>
    %736 = math.tanh %735 : vector<8x32xf32>
    %737 = vector.extract_strided_slice %733 {offsets = [0, 32], sizes = [8, 1], strides = [1, 1]} : vector<8x33xf32> to vector<8x1xf32>
    %738 = vector.extract_strided_slice %725 {offsets = [0, 32], sizes = [8, 1], strides = [1, 1]} : vector<8x33xf32> to vector<8x1xf32>
    %739 = arith.addf %737, %738 : vector<8x1xf32>
    %740 = vector.extract_strided_slice %728 {offsets = [0, 32], sizes = [8, 1], strides = [1, 1]} : vector<8x33xf32> to vector<8x1xf32>
    %741 = arith.addf %739, %740 : vector<8x1xf32>
    %742 = arith.maximumf %709, %741 : vector<8x1xf32>
    %743 = arith.subf %709, %742 : vector<8x1xf32>
    %744 = math.exp %743 : vector<8x1xf32>
    %745 = arith.subf %741, %742 : vector<8x1xf32>
    %746 = math.exp %745 : vector<8x1xf32>
    %747 = arith.mulf %744, %715 : vector<8x1xf32>
    %748 = arith.addf %747, %746 : vector<8x1xf32>
    %749 = vector.broadcast %744 : vector<8x1xf32> to vector<8x32xf32>
    %750 = arith.mulf %749, %720 : vector<8x32xf32>
    %751 = vector.broadcast %746 : vector<8x1xf32> to vector<8x32xf32>
    %752 = arith.mulf %751, %736 : vector<8x32xf32>
    %753 = arith.addf %750, %752 : vector<8x32xf32>
    %754 = arith.mulf %744, %723 : vector<8x1xf32>
    %755 = arith.mulf %746, %741 : vector<8x1xf32>
    %756 = arith.addf %754, %755 : vector<8x1xf32>
    %c3_261 = arith.constant 3 : index
    %c0_262 = arith.constant 0 : index
    %c0_263 = arith.constant 0 : index
    %757 = vector.load %arg6[%c3_261, %c0_262, %c0_263] : memref<8x8x33xf32, #tpu.memory_space<vmem>>, vector<1x8x33xf32>
    %758 = vector.shape_cast %757 : vector<1x8x33xf32> to vector<8x33xf32>
    %c2_264 = arith.constant 2 : index
    %c0_265 = arith.constant 0 : index
    %c0_266 = arith.constant 0 : index
    %759 = vector.load %arg6[%c2_264, %c0_265, %c0_266] : memref<8x8x33xf32, #tpu.memory_space<vmem>>, vector<1x8x33xf32>
    %760 = vector.shape_cast %759 : vector<1x8x33xf32> to vector<8x33xf32>
    %c4_i32_267 = arith.constant 4 : i32
    %761 = tpu.dynamic_rotate %760 by %c4_i32_267 dim 0 : vector<8x33xf32>, i32 -> vector<8x33xf32>
    %762 = arith.truncf %758 : vector<8x33xf32> to vector<8x33xbf16>
    %cst_268 = arith.constant dense<0.000000e+00> : vector<8x33xf32>
    %763 = tpu.matmul %762, %0, %cst_268 {dimension_numbers = #tpu.dot_dimension_numbers<[1], [0], [0], [1], [0, 0, 1, 1], [], []>} : vector<8x33xbf16>, vector<33x33xbf16>, vector<8x33xf32> -> vector<8x33xf32>
    %764 = arith.truncf %761 : vector<8x33xf32> to vector<8x33xbf16>
    %cst_269 = arith.constant dense<0.000000e+00> : vector<8x33xf32>
    %765 = tpu.matmul %764, %1, %cst_269 {dimension_numbers = #tpu.dot_dimension_numbers<[1], [0], [0], [1], [0, 0, 1, 1], [], []>} : vector<8x33xbf16>, vector<33x33xbf16>, vector<8x33xf32> -> vector<8x33xf32>
    %766 = arith.addf %763, %765 : vector<8x33xf32>
    %767 = vector.extract_strided_slice %766 {offsets = [0, 0], sizes = [8, 32], strides = [1, 1]} : vector<8x33xf32> to vector<8x32xf32>
    %768 = arith.addf %767, %4 : vector<8x32xf32>
    %769 = math.tanh %768 : vector<8x32xf32>
    %770 = vector.extract_strided_slice %766 {offsets = [0, 32], sizes = [8, 1], strides = [1, 1]} : vector<8x33xf32> to vector<8x1xf32>
    %771 = vector.extract_strided_slice %758 {offsets = [0, 32], sizes = [8, 1], strides = [1, 1]} : vector<8x33xf32> to vector<8x1xf32>
    %772 = arith.addf %770, %771 : vector<8x1xf32>
    %773 = vector.extract_strided_slice %761 {offsets = [0, 32], sizes = [8, 1], strides = [1, 1]} : vector<8x33xf32> to vector<8x1xf32>
    %774 = arith.addf %772, %773 : vector<8x1xf32>
    %775 = arith.maximumf %742, %774 : vector<8x1xf32>
    %776 = arith.subf %742, %775 : vector<8x1xf32>
    %777 = math.exp %776 : vector<8x1xf32>
    %778 = arith.subf %774, %775 : vector<8x1xf32>
    %779 = math.exp %778 : vector<8x1xf32>
    %780 = arith.mulf %777, %748 : vector<8x1xf32>
    %781 = arith.addf %780, %779 : vector<8x1xf32>
    %782 = vector.broadcast %777 : vector<8x1xf32> to vector<8x32xf32>
    %783 = arith.mulf %782, %753 : vector<8x32xf32>
    %784 = vector.broadcast %779 : vector<8x1xf32> to vector<8x32xf32>
    %785 = arith.mulf %784, %769 : vector<8x32xf32>
    %786 = arith.addf %783, %785 : vector<8x32xf32>
    %787 = arith.mulf %777, %756 : vector<8x1xf32>
    %788 = arith.mulf %779, %774 : vector<8x1xf32>
    %789 = arith.addf %787, %788 : vector<8x1xf32>
    %c4_270 = arith.constant 4 : index
    %c0_271 = arith.constant 0 : index
    %c0_272 = arith.constant 0 : index
    %790 = vector.load %arg6[%c4_270, %c0_271, %c0_272] : memref<8x8x33xf32, #tpu.memory_space<vmem>>, vector<1x8x33xf32>
    %791 = vector.shape_cast %790 : vector<1x8x33xf32> to vector<8x33xf32>
    %c1_273 = arith.constant 1 : index
    %c0_274 = arith.constant 0 : index
    %c0_275 = arith.constant 0 : index
    %792 = vector.load %arg6[%c1_273, %c0_274, %c0_275] : memref<8x8x33xf32, #tpu.memory_space<vmem>>, vector<1x8x33xf32>
    %793 = vector.shape_cast %792 : vector<1x8x33xf32> to vector<8x33xf32>
    %c3_i32_276 = arith.constant 3 : i32
    %794 = tpu.dynamic_rotate %793 by %c3_i32_276 dim 0 : vector<8x33xf32>, i32 -> vector<8x33xf32>
    %795 = arith.truncf %791 : vector<8x33xf32> to vector<8x33xbf16>
    %cst_277 = arith.constant dense<0.000000e+00> : vector<8x33xf32>
    %796 = tpu.matmul %795, %0, %cst_277 {dimension_numbers = #tpu.dot_dimension_numbers<[1], [0], [0], [1], [0, 0, 1, 1], [], []>} : vector<8x33xbf16>, vector<33x33xbf16>, vector<8x33xf32> -> vector<8x33xf32>
    %797 = arith.truncf %794 : vector<8x33xf32> to vector<8x33xbf16>
    %cst_278 = arith.constant dense<0.000000e+00> : vector<8x33xf32>
    %798 = tpu.matmul %797, %1, %cst_278 {dimension_numbers = #tpu.dot_dimension_numbers<[1], [0], [0], [1], [0, 0, 1, 1], [], []>} : vector<8x33xbf16>, vector<33x33xbf16>, vector<8x33xf32> -> vector<8x33xf32>
    %799 = arith.addf %796, %798 : vector<8x33xf32>
    %800 = vector.extract_strided_slice %799 {offsets = [0, 0], sizes = [8, 32], strides = [1, 1]} : vector<8x33xf32> to vector<8x32xf32>
    %801 = arith.addf %800, %4 : vector<8x32xf32>
    %802 = math.tanh %801 : vector<8x32xf32>
    %803 = vector.extract_strided_slice %799 {offsets = [0, 32], sizes = [8, 1], strides = [1, 1]} : vector<8x33xf32> to vector<8x1xf32>
    %804 = vector.extract_strided_slice %791 {offsets = [0, 32], sizes = [8, 1], strides = [1, 1]} : vector<8x33xf32> to vector<8x1xf32>
    %805 = arith.addf %803, %804 : vector<8x1xf32>
    %806 = vector.extract_strided_slice %794 {offsets = [0, 32], sizes = [8, 1], strides = [1, 1]} : vector<8x33xf32> to vector<8x1xf32>
    %807 = arith.addf %805, %806 : vector<8x1xf32>
    %808 = arith.maximumf %775, %807 : vector<8x1xf32>
    %809 = arith.subf %775, %808 : vector<8x1xf32>
    %810 = math.exp %809 : vector<8x1xf32>
    %811 = arith.subf %807, %808 : vector<8x1xf32>
    %812 = math.exp %811 : vector<8x1xf32>
    %813 = arith.mulf %810, %781 : vector<8x1xf32>
    %814 = arith.addf %813, %812 : vector<8x1xf32>
    %815 = vector.broadcast %810 : vector<8x1xf32> to vector<8x32xf32>
    %816 = arith.mulf %815, %786 : vector<8x32xf32>
    %817 = vector.broadcast %812 : vector<8x1xf32> to vector<8x32xf32>
    %818 = arith.mulf %817, %802 : vector<8x32xf32>
    %819 = arith.addf %816, %818 : vector<8x32xf32>
    %820 = arith.mulf %810, %789 : vector<8x1xf32>
    %821 = arith.mulf %812, %807 : vector<8x1xf32>
    %822 = arith.addf %820, %821 : vector<8x1xf32>
    %c5_279 = arith.constant 5 : index
    %c0_280 = arith.constant 0 : index
    %c0_281 = arith.constant 0 : index
    %823 = vector.load %arg6[%c5_279, %c0_280, %c0_281] : memref<8x8x33xf32, #tpu.memory_space<vmem>>, vector<1x8x33xf32>
    %824 = vector.shape_cast %823 : vector<1x8x33xf32> to vector<8x33xf32>
    %c0_282 = arith.constant 0 : index
    %c0_283 = arith.constant 0 : index
    %c0_284 = arith.constant 0 : index
    %825 = vector.load %arg6[%c0_282, %c0_283, %c0_284] : memref<8x8x33xf32, #tpu.memory_space<vmem>>, vector<1x8x33xf32>
    %826 = vector.shape_cast %825 : vector<1x8x33xf32> to vector<8x33xf32>
    %c2_i32 = arith.constant 2 : i32
    %827 = tpu.dynamic_rotate %826 by %c2_i32 dim 0 : vector<8x33xf32>, i32 -> vector<8x33xf32>
    %828 = arith.truncf %824 : vector<8x33xf32> to vector<8x33xbf16>
    %cst_285 = arith.constant dense<0.000000e+00> : vector<8x33xf32>
    %829 = tpu.matmul %828, %0, %cst_285 {dimension_numbers = #tpu.dot_dimension_numbers<[1], [0], [0], [1], [0, 0, 1, 1], [], []>} : vector<8x33xbf16>, vector<33x33xbf16>, vector<8x33xf32> -> vector<8x33xf32>
    %830 = arith.truncf %827 : vector<8x33xf32> to vector<8x33xbf16>
    %cst_286 = arith.constant dense<0.000000e+00> : vector<8x33xf32>
    %831 = tpu.matmul %830, %1, %cst_286 {dimension_numbers = #tpu.dot_dimension_numbers<[1], [0], [0], [1], [0, 0, 1, 1], [], []>} : vector<8x33xbf16>, vector<33x33xbf16>, vector<8x33xf32> -> vector<8x33xf32>
    %832 = arith.addf %829, %831 : vector<8x33xf32>
    %833 = vector.extract_strided_slice %832 {offsets = [0, 0], sizes = [8, 32], strides = [1, 1]} : vector<8x33xf32> to vector<8x32xf32>
    %834 = arith.addf %833, %4 : vector<8x32xf32>
    %835 = math.tanh %834 : vector<8x32xf32>
    %836 = vector.extract_strided_slice %832 {offsets = [0, 32], sizes = [8, 1], strides = [1, 1]} : vector<8x33xf32> to vector<8x1xf32>
    %837 = vector.extract_strided_slice %824 {offsets = [0, 32], sizes = [8, 1], strides = [1, 1]} : vector<8x33xf32> to vector<8x1xf32>
    %838 = arith.addf %836, %837 : vector<8x1xf32>
    %839 = vector.extract_strided_slice %827 {offsets = [0, 32], sizes = [8, 1], strides = [1, 1]} : vector<8x33xf32> to vector<8x1xf32>
    %840 = arith.addf %838, %839 : vector<8x1xf32>
    %841 = arith.maximumf %808, %840 : vector<8x1xf32>
    %842 = arith.subf %808, %841 : vector<8x1xf32>
    %843 = math.exp %842 : vector<8x1xf32>
    %844 = arith.subf %840, %841 : vector<8x1xf32>
    %845 = math.exp %844 : vector<8x1xf32>
    %846 = arith.mulf %843, %814 : vector<8x1xf32>
    %847 = arith.addf %846, %845 : vector<8x1xf32>
    %848 = vector.broadcast %843 : vector<8x1xf32> to vector<8x32xf32>
    %849 = arith.mulf %848, %819 : vector<8x32xf32>
    %850 = vector.broadcast %845 : vector<8x1xf32> to vector<8x32xf32>
    %851 = arith.mulf %850, %835 : vector<8x32xf32>
    %852 = arith.addf %849, %851 : vector<8x32xf32>
    %853 = arith.mulf %843, %822 : vector<8x1xf32>
    %854 = arith.mulf %845, %840 : vector<8x1xf32>
    %855 = arith.addf %853, %854 : vector<8x1xf32>
    %856 = tpu.reciprocal %847 {approx = true} : vector<8x1xf32> -> vector<8x1xf32>
    %c2_i32_287 = arith.constant 2 : i32
    %857 = vector.broadcast %c2_i32_287 : i32 to vector<8x1xi32>
    %858 = arith.cmpi slt, %21, %857 : vector<8x1xi32>
    %859 = vector.broadcast %856 : vector<8x1xf32> to vector<8x32xf32>
    %860 = arith.mulf %852, %859 : vector<8x32xf32>
    %cst_288 = arith.constant 0.000000e+00 : f32
    %861 = vector.shape_cast %858 : vector<8x1xi1> to vector<8x1xi1>
    %862 = vector.broadcast %861 : vector<8x1xi1> to vector<8x32xi1>
    %863 = vector.broadcast %cst_288 : f32 to vector<8x32xf32>
    %864 = arith.select %862, %860, %863 : vector<8x32xi1>, vector<8x32xf32>
    %865 = arith.mulf %855, %856 : vector<8x1xf32>
    %cst_289 = arith.constant 0.000000e+00 : f32
    %866 = vector.broadcast %cst_289 : f32 to vector<8x1xf32>
    %867 = arith.select %858, %865, %866 : vector<8x1xi1>, vector<8x1xf32>
    %c6 = arith.constant 6 : index
    %c0_290 = arith.constant 0 : index
    %c0_291 = arith.constant 0 : index
    %868 = vector.load %arg6[%c6, %c0_290, %c0_291] : memref<8x8x33xf32, #tpu.memory_space<vmem>>, vector<1x8x32xf32>
    %869 = vector.shape_cast %868 : vector<1x8x32xf32> to vector<8x32xf32>
    %870 = vector.shape_cast %864 : vector<8x32xf32> to vector<1x8x32xf32>
    tpu.vector_store %arg6[%c6, %c0_290, %c0_291], %870 {strides = array<i32>} : memref<8x8x33xf32, #tpu.memory_space<vmem>>, vector<1x8x32xf32>,
    %c6_292 = arith.constant 6 : index
    %c0_293 = arith.constant 0 : index
    %c32_294 = arith.constant 32 : index
    %871 = vector.load %arg6[%c6_292, %c0_293, %c32_294] : memref<8x8x33xf32, #tpu.memory_space<vmem>>, vector<1x8x1xf32>
    %872 = vector.shape_cast %871 : vector<1x8x1xf32> to vector<8x1xf32>
    %873 = vector.shape_cast %867 : vector<8x1xf32> to vector<1x8x1xf32>
    tpu.vector_store %arg6[%c6_292, %c0_293, %c32_294], %873 {strides = array<i32>} : memref<8x8x33xf32, #tpu.memory_space<vmem>>, vector<1x8x1xf32>,
    %c0_295 = arith.constant 0 : index
    %c6_296 = arith.constant 6 : index
    %c0_297 = arith.constant 0 : index
    %c0_298 = arith.constant 0 : index
    %874 = vector.load %arg5[%c0_295, %c6_296, %c0_297, %c0_298] : memref<1x8x8x32xf32, #tpu.memory_space<vmem>>, vector<1x1x8x32xf32>
    %875 = vector.shape_cast %874 : vector<1x1x8x32xf32> to vector<8x32xf32>
    %876 = vector.shape_cast %864 : vector<8x32xf32> to vector<1x1x8x32xf32>
    tpu.vector_store %arg5[%c0_295, %c6_296, %c0_297, %c0_298], %876 {strides = array<i32>} : memref<1x8x8x32xf32, #tpu.memory_space<vmem>>, vector<1x1x8x32xf32>,
    %cst_299 = arith.constant 0xFF800000 : f32
    %877 = vector.broadcast %cst_299 : f32 to vector<8x1xf32>
    %cst_300 = arith.constant 0.000000e+00 : f32
    %878 = vector.broadcast %cst_300 : f32 to vector<8x1xf32>
    %cst_301 = arith.constant 0.000000e+00 : f32
    %879 = vector.broadcast %cst_301 : f32 to vector<8x32xf32>
    %cst_302 = arith.constant 0.000000e+00 : f32
    %880 = vector.broadcast %cst_302 : f32 to vector<8x1xf32>
    %c0_303 = arith.constant 0 : index
    %c0_304 = arith.constant 0 : index
    %c0_305 = arith.constant 0 : index
    %881 = vector.load %arg6[%c0_303, %c0_304, %c0_305] : memref<8x8x33xf32, #tpu.memory_space<vmem>>, vector<1x8x33xf32>
    %882 = vector.shape_cast %881 : vector<1x8x33xf32> to vector<8x33xf32>
    %c6_306 = arith.constant 6 : index
    %c0_307 = arith.constant 0 : index
    %c0_308 = arith.constant 0 : index
    %883 = vector.load %arg6[%c6_306, %c0_307, %c0_308] : memref<8x8x33xf32, #tpu.memory_space<vmem>>, vector<1x8x33xf32>
    %884 = vector.shape_cast %883 : vector<1x8x33xf32> to vector<8x33xf32>
    %c7_i32_309 = arith.constant 7 : i32
    %885 = tpu.dynamic_rotate %884 by %c7_i32_309 dim 0 : vector<8x33xf32>, i32 -> vector<8x33xf32>
    %886 = arith.truncf %882 : vector<8x33xf32> to vector<8x33xbf16>
    %cst_310 = arith.constant dense<0.000000e+00> : vector<8x33xf32>
    %887 = tpu.matmul %886, %0, %cst_310 {dimension_numbers = #tpu.dot_dimension_numbers<[1], [0], [0], [1], [0, 0, 1, 1], [], []>} : vector<8x33xbf16>, vector<33x33xbf16>, vector<8x33xf32> -> vector<8x33xf32>
    %888 = arith.truncf %885 : vector<8x33xf32> to vector<8x33xbf16>
    %cst_311 = arith.constant dense<0.000000e+00> : vector<8x33xf32>
    %889 = tpu.matmul %888, %1, %cst_311 {dimension_numbers = #tpu.dot_dimension_numbers<[1], [0], [0], [1], [0, 0, 1, 1], [], []>} : vector<8x33xbf16>, vector<33x33xbf16>, vector<8x33xf32> -> vector<8x33xf32>
    %890 = arith.addf %887, %889 : vector<8x33xf32>
    %891 = vector.extract_strided_slice %890 {offsets = [0, 0], sizes = [8, 32], strides = [1, 1]} : vector<8x33xf32> to vector<8x32xf32>
    %892 = arith.addf %891, %4 : vector<8x32xf32>
    %893 = math.tanh %892 : vector<8x32xf32>
    %894 = vector.extract_strided_slice %890 {offsets = [0, 32], sizes = [8, 1], strides = [1, 1]} : vector<8x33xf32> to vector<8x1xf32>
    %895 = vector.extract_strided_slice %882 {offsets = [0, 32], sizes = [8, 1], strides = [1, 1]} : vector<8x33xf32> to vector<8x1xf32>
    %896 = arith.addf %894, %895 : vector<8x1xf32>
    %897 = vector.extract_strided_slice %885 {offsets = [0, 32], sizes = [8, 1], strides = [1, 1]} : vector<8x33xf32> to vector<8x1xf32>
    %898 = arith.addf %896, %897 : vector<8x1xf32>
    %899 = arith.maximumf %877, %898 : vector<8x1xf32>
    %900 = arith.subf %877, %899 : vector<8x1xf32>
    %901 = math.exp %900 : vector<8x1xf32>
    %902 = arith.subf %898, %899 : vector<8x1xf32>
    %903 = math.exp %902 : vector<8x1xf32>
    %904 = arith.mulf %901, %878 : vector<8x1xf32>
    %905 = arith.addf %904, %903 : vector<8x1xf32>
    %906 = vector.broadcast %901 : vector<8x1xf32> to vector<8x32xf32>
    %907 = arith.mulf %906, %879 : vector<8x32xf32>
    %908 = vector.broadcast %903 : vector<8x1xf32> to vector<8x32xf32>
    %909 = arith.mulf %908, %893 : vector<8x32xf32>
    %910 = arith.addf %907, %909 : vector<8x32xf32>
    %911 = arith.mulf %901, %880 : vector<8x1xf32>
    %912 = arith.mulf %903, %898 : vector<8x1xf32>
    %913 = arith.addf %911, %912 : vector<8x1xf32>
    %c1_312 = arith.constant 1 : index
    %c0_313 = arith.constant 0 : index
    %c0_314 = arith.constant 0 : index
    %914 = vector.load %arg6[%c1_312, %c0_313, %c0_314] : memref<8x8x33xf32, #tpu.memory_space<vmem>>, vector<1x8x33xf32>
    %915 = vector.shape_cast %914 : vector<1x8x33xf32> to vector<8x33xf32>
    %c5_315 = arith.constant 5 : index
    %c0_316 = arith.constant 0 : index
    %c0_317 = arith.constant 0 : index
    %916 = vector.load %arg6[%c5_315, %c0_316, %c0_317] : memref<8x8x33xf32, #tpu.memory_space<vmem>>, vector<1x8x33xf32>
    %917 = vector.shape_cast %916 : vector<1x8x33xf32> to vector<8x33xf32>
    %c6_i32_318 = arith.constant 6 : i32
    %918 = tpu.dynamic_rotate %917 by %c6_i32_318 dim 0 : vector<8x33xf32>, i32 -> vector<8x33xf32>
    %919 = arith.truncf %915 : vector<8x33xf32> to vector<8x33xbf16>
    %cst_319 = arith.constant dense<0.000000e+00> : vector<8x33xf32>
    %920 = tpu.matmul %919, %0, %cst_319 {dimension_numbers = #tpu.dot_dimension_numbers<[1], [0], [0], [1], [0, 0, 1, 1], [], []>} : vector<8x33xbf16>, vector<33x33xbf16>, vector<8x33xf32> -> vector<8x33xf32>
    %921 = arith.truncf %918 : vector<8x33xf32> to vector<8x33xbf16>
    %cst_320 = arith.constant dense<0.000000e+00> : vector<8x33xf32>
    %922 = tpu.matmul %921, %1, %cst_320 {dimension_numbers = #tpu.dot_dimension_numbers<[1], [0], [0], [1], [0, 0, 1, 1], [], []>} : vector<8x33xbf16>, vector<33x33xbf16>, vector<8x33xf32> -> vector<8x33xf32>
    %923 = arith.addf %920, %922 : vector<8x33xf32>
    %924 = vector.extract_strided_slice %923 {offsets = [0, 0], sizes = [8, 32], strides = [1, 1]} : vector<8x33xf32> to vector<8x32xf32>
    %925 = arith.addf %924, %4 : vector<8x32xf32>
    %926 = math.tanh %925 : vector<8x32xf32>
    %927 = vector.extract_strided_slice %923 {offsets = [0, 32], sizes = [8, 1], strides = [1, 1]} : vector<8x33xf32> to vector<8x1xf32>
    %928 = vector.extract_strided_slice %915 {offsets = [0, 32], sizes = [8, 1], strides = [1, 1]} : vector<8x33xf32> to vector<8x1xf32>
    %929 = arith.addf %927, %928 : vector<8x1xf32>
    %930 = vector.extract_strided_slice %918 {offsets = [0, 32], sizes = [8, 1], strides = [1, 1]} : vector<8x33xf32> to vector<8x1xf32>
    %931 = arith.addf %929, %930 : vector<8x1xf32>
    %932 = arith.maximumf %899, %931 : vector<8x1xf32>
    %933 = arith.subf %899, %932 : vector<8x1xf32>
    %934 = math.exp %933 : vector<8x1xf32>
    %935 = arith.subf %931, %932 : vector<8x1xf32>
    %936 = math.exp %935 : vector<8x1xf32>
    %937 = arith.mulf %934, %905 : vector<8x1xf32>
    %938 = arith.addf %937, %936 : vector<8x1xf32>
    %939 = vector.broadcast %934 : vector<8x1xf32> to vector<8x32xf32>
    %940 = arith.mulf %939, %910 : vector<8x32xf32>
    %941 = vector.broadcast %936 : vector<8x1xf32> to vector<8x32xf32>
    %942 = arith.mulf %941, %926 : vector<8x32xf32>
    %943 = arith.addf %940, %942 : vector<8x32xf32>
    %944 = arith.mulf %934, %913 : vector<8x1xf32>
    %945 = arith.mulf %936, %931 : vector<8x1xf32>
    %946 = arith.addf %944, %945 : vector<8x1xf32>
    %c2_321 = arith.constant 2 : index
    %c0_322 = arith.constant 0 : index
    %c0_323 = arith.constant 0 : index
    %947 = vector.load %arg6[%c2_321, %c0_322, %c0_323] : memref<8x8x33xf32, #tpu.memory_space<vmem>>, vector<1x8x33xf32>
    %948 = vector.shape_cast %947 : vector<1x8x33xf32> to vector<8x33xf32>
    %c4_324 = arith.constant 4 : index
    %c0_325 = arith.constant 0 : index
    %c0_326 = arith.constant 0 : index
    %949 = vector.load %arg6[%c4_324, %c0_325, %c0_326] : memref<8x8x33xf32, #tpu.memory_space<vmem>>, vector<1x8x33xf32>
    %950 = vector.shape_cast %949 : vector<1x8x33xf32> to vector<8x33xf32>
    %c5_i32_327 = arith.constant 5 : i32
    %951 = tpu.dynamic_rotate %950 by %c5_i32_327 dim 0 : vector<8x33xf32>, i32 -> vector<8x33xf32>
    %952 = arith.truncf %948 : vector<8x33xf32> to vector<8x33xbf16>
    %cst_328 = arith.constant dense<0.000000e+00> : vector<8x33xf32>
    %953 = tpu.matmul %952, %0, %cst_328 {dimension_numbers = #tpu.dot_dimension_numbers<[1], [0], [0], [1], [0, 0, 1, 1], [], []>} : vector<8x33xbf16>, vector<33x33xbf16>, vector<8x33xf32> -> vector<8x33xf32>
    %954 = arith.truncf %951 : vector<8x33xf32> to vector<8x33xbf16>
    %cst_329 = arith.constant dense<0.000000e+00> : vector<8x33xf32>
    %955 = tpu.matmul %954, %1, %cst_329 {dimension_numbers = #tpu.dot_dimension_numbers<[1], [0], [0], [1], [0, 0, 1, 1], [], []>} : vector<8x33xbf16>, vector<33x33xbf16>, vector<8x33xf32> -> vector<8x33xf32>
    %956 = arith.addf %953, %955 : vector<8x33xf32>
    %957 = vector.extract_strided_slice %956 {offsets = [0, 0], sizes = [8, 32], strides = [1, 1]} : vector<8x33xf32> to vector<8x32xf32>
    %958 = arith.addf %957, %4 : vector<8x32xf32>
    %959 = math.tanh %958 : vector<8x32xf32>
    %960 = vector.extract_strided_slice %956 {offsets = [0, 32], sizes = [8, 1], strides = [1, 1]} : vector<8x33xf32> to vector<8x1xf32>
    %961 = vector.extract_strided_slice %948 {offsets = [0, 32], sizes = [8, 1], strides = [1, 1]} : vector<8x33xf32> to vector<8x1xf32>
    %962 = arith.addf %960, %961 : vector<8x1xf32>
    %963 = vector.extract_strided_slice %951 {offsets = [0, 32], sizes = [8, 1], strides = [1, 1]} : vector<8x33xf32> to vector<8x1xf32>
    %964 = arith.addf %962, %963 : vector<8x1xf32>
    %965 = arith.maximumf %932, %964 : vector<8x1xf32>
    %966 = arith.subf %932, %965 : vector<8x1xf32>
    %967 = math.exp %966 : vector<8x1xf32>
    %968 = arith.subf %964, %965 : vector<8x1xf32>
    %969 = math.exp %968 : vector<8x1xf32>
    %970 = arith.mulf %967, %938 : vector<8x1xf32>
    %971 = arith.addf %970, %969 : vector<8x1xf32>
    %972 = vector.broadcast %967 : vector<8x1xf32> to vector<8x32xf32>
    %973 = arith.mulf %972, %943 : vector<8x32xf32>
    %974 = vector.broadcast %969 : vector<8x1xf32> to vector<8x32xf32>
    %975 = arith.mulf %974, %959 : vector<8x32xf32>
    %976 = arith.addf %973, %975 : vector<8x32xf32>
    %977 = arith.mulf %967, %946 : vector<8x1xf32>
    %978 = arith.mulf %969, %964 : vector<8x1xf32>
    %979 = arith.addf %977, %978 : vector<8x1xf32>
    %c3_330 = arith.constant 3 : index
    %c0_331 = arith.constant 0 : index
    %c0_332 = arith.constant 0 : index
    %980 = vector.load %arg6[%c3_330, %c0_331, %c0_332] : memref<8x8x33xf32, #tpu.memory_space<vmem>>, vector<1x8x33xf32>
    %981 = vector.shape_cast %980 : vector<1x8x33xf32> to vector<8x33xf32>
    %c3_333 = arith.constant 3 : index
    %c0_334 = arith.constant 0 : index
    %c0_335 = arith.constant 0 : index
    %982 = vector.load %arg6[%c3_333, %c0_334, %c0_335] : memref<8x8x33xf32, #tpu.memory_space<vmem>>, vector<1x8x33xf32>
    %983 = vector.shape_cast %982 : vector<1x8x33xf32> to vector<8x33xf32>
    %c4_i32_336 = arith.constant 4 : i32
    %984 = tpu.dynamic_rotate %983 by %c4_i32_336 dim 0 : vector<8x33xf32>, i32 -> vector<8x33xf32>
    %985 = arith.truncf %981 : vector<8x33xf32> to vector<8x33xbf16>
    %cst_337 = arith.constant dense<0.000000e+00> : vector<8x33xf32>
    %986 = tpu.matmul %985, %0, %cst_337 {dimension_numbers = #tpu.dot_dimension_numbers<[1], [0], [0], [1], [0, 0, 1, 1], [], []>} : vector<8x33xbf16>, vector<33x33xbf16>, vector<8x33xf32> -> vector<8x33xf32>
    %987 = arith.truncf %984 : vector<8x33xf32> to vector<8x33xbf16>
    %cst_338 = arith.constant dense<0.000000e+00> : vector<8x33xf32>
    %988 = tpu.matmul %987, %1, %cst_338 {dimension_numbers = #tpu.dot_dimension_numbers<[1], [0], [0], [1], [0, 0, 1, 1], [], []>} : vector<8x33xbf16>, vector<33x33xbf16>, vector<8x33xf32> -> vector<8x33xf32>
    %989 = arith.addf %986, %988 : vector<8x33xf32>
    %990 = vector.extract_strided_slice %989 {offsets = [0, 0], sizes = [8, 32], strides = [1, 1]} : vector<8x33xf32> to vector<8x32xf32>
    %991 = arith.addf %990, %4 : vector<8x32xf32>
    %992 = math.tanh %991 : vector<8x32xf32>
    %993 = vector.extract_strided_slice %989 {offsets = [0, 32], sizes = [8, 1], strides = [1, 1]} : vector<8x33xf32> to vector<8x1xf32>
    %994 = vector.extract_strided_slice %981 {offsets = [0, 32], sizes = [8, 1], strides = [1, 1]} : vector<8x33xf32> to vector<8x1xf32>
    %995 = arith.addf %993, %994 : vector<8x1xf32>
    %996 = vector.extract_strided_slice %984 {offsets = [0, 32], sizes = [8, 1], strides = [1, 1]} : vector<8x33xf32> to vector<8x1xf32>
    %997 = arith.addf %995, %996 : vector<8x1xf32>
    %998 = arith.maximumf %965, %997 : vector<8x1xf32>
    %999 = arith.subf %965, %998 : vector<8x1xf32>
    %1000 = math.exp %999 : vector<8x1xf32>
    %1001 = arith.subf %997, %998 : vector<8x1xf32>
    %1002 = math.exp %1001 : vector<8x1xf32>
    %1003 = arith.mulf %1000, %971 : vector<8x1xf32>
    %1004 = arith.addf %1003, %1002 : vector<8x1xf32>
    %1005 = vector.broadcast %1000 : vector<8x1xf32> to vector<8x32xf32>
    %1006 = arith.mulf %1005, %976 : vector<8x32xf32>
    %1007 = vector.broadcast %1002 : vector<8x1xf32> to vector<8x32xf32>
    %1008 = arith.mulf %1007, %992 : vector<8x32xf32>
    %1009 = arith.addf %1006, %1008 : vector<8x32xf32>
    %1010 = arith.mulf %1000, %979 : vector<8x1xf32>
    %1011 = arith.mulf %1002, %997 : vector<8x1xf32>
    %1012 = arith.addf %1010, %1011 : vector<8x1xf32>
    %c4_339 = arith.constant 4 : index
    %c0_340 = arith.constant 0 : index
    %c0_341 = arith.constant 0 : index
    %1013 = vector.load %arg6[%c4_339, %c0_340, %c0_341] : memref<8x8x33xf32, #tpu.memory_space<vmem>>, vector<1x8x33xf32>
    %1014 = vector.shape_cast %1013 : vector<1x8x33xf32> to vector<8x33xf32>
    %c2_342 = arith.constant 2 : index
    %c0_343 = arith.constant 0 : index
    %c0_344 = arith.constant 0 : index
    %1015 = vector.load %arg6[%c2_342, %c0_343, %c0_344] : memref<8x8x33xf32, #tpu.memory_space<vmem>>, vector<1x8x33xf32>
    %1016 = vector.shape_cast %1015 : vector<1x8x33xf32> to vector<8x33xf32>
    %c3_i32_345 = arith.constant 3 : i32
    %1017 = tpu.dynamic_rotate %1016 by %c3_i32_345 dim 0 : vector<8x33xf32>, i32 -> vector<8x33xf32>
    %1018 = arith.truncf %1014 : vector<8x33xf32> to vector<8x33xbf16>
    %cst_346 = arith.constant dense<0.000000e+00> : vector<8x33xf32>
    %1019 = tpu.matmul %1018, %0, %cst_346 {dimension_numbers = #tpu.dot_dimension_numbers<[1], [0], [0], [1], [0, 0, 1, 1], [], []>} : vector<8x33xbf16>, vector<33x33xbf16>, vector<8x33xf32> -> vector<8x33xf32>
    %1020 = arith.truncf %1017 : vector<8x33xf32> to vector<8x33xbf16>
    %cst_347 = arith.constant dense<0.000000e+00> : vector<8x33xf32>
    %1021 = tpu.matmul %1020, %1, %cst_347 {dimension_numbers = #tpu.dot_dimension_numbers<[1], [0], [0], [1], [0, 0, 1, 1], [], []>} : vector<8x33xbf16>, vector<33x33xbf16>, vector<8x33xf32> -> vector<8x33xf32>
    %1022 = arith.addf %1019, %1021 : vector<8x33xf32>
    %1023 = vector.extract_strided_slice %1022 {offsets = [0, 0], sizes = [8, 32], strides = [1, 1]} : vector<8x33xf32> to vector<8x32xf32>
    %1024 = arith.addf %1023, %4 : vector<8x32xf32>
    %1025 = math.tanh %1024 : vector<8x32xf32>
    %1026 = vector.extract_strided_slice %1022 {offsets = [0, 32], sizes = [8, 1], strides = [1, 1]} : vector<8x33xf32> to vector<8x1xf32>
    %1027 = vector.extract_strided_slice %1014 {offsets = [0, 32], sizes = [8, 1], strides = [1, 1]} : vector<8x33xf32> to vector<8x1xf32>
    %1028 = arith.addf %1026, %1027 : vector<8x1xf32>
    %1029 = vector.extract_strided_slice %1017 {offsets = [0, 32], sizes = [8, 1], strides = [1, 1]} : vector<8x33xf32> to vector<8x1xf32>
    %1030 = arith.addf %1028, %1029 : vector<8x1xf32>
    %1031 = arith.maximumf %998, %1030 : vector<8x1xf32>
    %1032 = arith.subf %998, %1031 : vector<8x1xf32>
    %1033 = math.exp %1032 : vector<8x1xf32>
    %1034 = arith.subf %1030, %1031 : vector<8x1xf32>
    %1035 = math.exp %1034 : vector<8x1xf32>
    %1036 = arith.mulf %1033, %1004 : vector<8x1xf32>
    %1037 = arith.addf %1036, %1035 : vector<8x1xf32>
    %1038 = vector.broadcast %1033 : vector<8x1xf32> to vector<8x32xf32>
    %1039 = arith.mulf %1038, %1009 : vector<8x32xf32>
    %1040 = vector.broadcast %1035 : vector<8x1xf32> to vector<8x32xf32>
    %1041 = arith.mulf %1040, %1025 : vector<8x32xf32>
    %1042 = arith.addf %1039, %1041 : vector<8x32xf32>
    %1043 = arith.mulf %1033, %1012 : vector<8x1xf32>
    %1044 = arith.mulf %1035, %1030 : vector<8x1xf32>
    %1045 = arith.addf %1043, %1044 : vector<8x1xf32>
    %c5_348 = arith.constant 5 : index
    %c0_349 = arith.constant 0 : index
    %c0_350 = arith.constant 0 : index
    %1046 = vector.load %arg6[%c5_348, %c0_349, %c0_350] : memref<8x8x33xf32, #tpu.memory_space<vmem>>, vector<1x8x33xf32>
    %1047 = vector.shape_cast %1046 : vector<1x8x33xf32> to vector<8x33xf32>
    %c1_351 = arith.constant 1 : index
    %c0_352 = arith.constant 0 : index
    %c0_353 = arith.constant 0 : index
    %1048 = vector.load %arg6[%c1_351, %c0_352, %c0_353] : memref<8x8x33xf32, #tpu.memory_space<vmem>>, vector<1x8x33xf32>
    %1049 = vector.shape_cast %1048 : vector<1x8x33xf32> to vector<8x33xf32>
    %c2_i32_354 = arith.constant 2 : i32
    %1050 = tpu.dynamic_rotate %1049 by %c2_i32_354 dim 0 : vector<8x33xf32>, i32 -> vector<8x33xf32>
    %1051 = arith.truncf %1047 : vector<8x33xf32> to vector<8x33xbf16>
    %cst_355 = arith.constant dense<0.000000e+00> : vector<8x33xf32>
    %1052 = tpu.matmul %1051, %0, %cst_355 {dimension_numbers = #tpu.dot_dimension_numbers<[1], [0], [0], [1], [0, 0, 1, 1], [], []>} : vector<8x33xbf16>, vector<33x33xbf16>, vector<8x33xf32> -> vector<8x33xf32>
    %1053 = arith.truncf %1050 : vector<8x33xf32> to vector<8x33xbf16>
    %cst_356 = arith.constant dense<0.000000e+00> : vector<8x33xf32>
    %1054 = tpu.matmul %1053, %1, %cst_356 {dimension_numbers = #tpu.dot_dimension_numbers<[1], [0], [0], [1], [0, 0, 1, 1], [], []>} : vector<8x33xbf16>, vector<33x33xbf16>, vector<8x33xf32> -> vector<8x33xf32>
    %1055 = arith.addf %1052, %1054 : vector<8x33xf32>
    %1056 = vector.extract_strided_slice %1055 {offsets = [0, 0], sizes = [8, 32], strides = [1, 1]} : vector<8x33xf32> to vector<8x32xf32>
    %1057 = arith.addf %1056, %4 : vector<8x32xf32>
    %1058 = math.tanh %1057 : vector<8x32xf32>
    %1059 = vector.extract_strided_slice %1055 {offsets = [0, 32], sizes = [8, 1], strides = [1, 1]} : vector<8x33xf32> to vector<8x1xf32>
    %1060 = vector.extract_strided_slice %1047 {offsets = [0, 32], sizes = [8, 1], strides = [1, 1]} : vector<8x33xf32> to vector<8x1xf32>
    %1061 = arith.addf %1059, %1060 : vector<8x1xf32>
    %1062 = vector.extract_strided_slice %1050 {offsets = [0, 32], sizes = [8, 1], strides = [1, 1]} : vector<8x33xf32> to vector<8x1xf32>
    %1063 = arith.addf %1061, %1062 : vector<8x1xf32>
    %1064 = arith.maximumf %1031, %1063 : vector<8x1xf32>
    %1065 = arith.subf %1031, %1064 : vector<8x1xf32>
    %1066 = math.exp %1065 : vector<8x1xf32>
    %1067 = arith.subf %1063, %1064 : vector<8x1xf32>
    %1068 = math.exp %1067 : vector<8x1xf32>
    %1069 = arith.mulf %1066, %1037 : vector<8x1xf32>
    %1070 = arith.addf %1069, %1068 : vector<8x1xf32>
    %1071 = vector.broadcast %1066 : vector<8x1xf32> to vector<8x32xf32>
    %1072 = arith.mulf %1071, %1042 : vector<8x32xf32>
    %1073 = vector.broadcast %1068 : vector<8x1xf32> to vector<8x32xf32>
    %1074 = arith.mulf %1073, %1058 : vector<8x32xf32>
    %1075 = arith.addf %1072, %1074 : vector<8x32xf32>
    %1076 = arith.mulf %1066, %1045 : vector<8x1xf32>
    %1077 = arith.mulf %1068, %1063 : vector<8x1xf32>
    %1078 = arith.addf %1076, %1077 : vector<8x1xf32>
    %c6_357 = arith.constant 6 : index
    %c0_358 = arith.constant 0 : index
    %c0_359 = arith.constant 0 : index
    %1079 = vector.load %arg6[%c6_357, %c0_358, %c0_359] : memref<8x8x33xf32, #tpu.memory_space<vmem>>, vector<1x8x33xf32>
    %1080 = vector.shape_cast %1079 : vector<1x8x33xf32> to vector<8x33xf32>
    %c0_360 = arith.constant 0 : index
    %c0_361 = arith.constant 0 : index
    %c0_362 = arith.constant 0 : index
    %1081 = vector.load %arg6[%c0_360, %c0_361, %c0_362] : memref<8x8x33xf32, #tpu.memory_space<vmem>>, vector<1x8x33xf32>
    %1082 = vector.shape_cast %1081 : vector<1x8x33xf32> to vector<8x33xf32>
    %c1_i32_363 = arith.constant 1 : i32
    %1083 = tpu.dynamic_rotate %1082 by %c1_i32_363 dim 0 : vector<8x33xf32>, i32 -> vector<8x33xf32>
    %1084 = arith.truncf %1080 : vector<8x33xf32> to vector<8x33xbf16>
    %cst_364 = arith.constant dense<0.000000e+00> : vector<8x33xf32>
    %1085 = tpu.matmul %1084, %0, %cst_364 {dimension_numbers = #tpu.dot_dimension_numbers<[1], [0], [0], [1], [0, 0, 1, 1], [], []>} : vector<8x33xbf16>, vector<33x33xbf16>, vector<8x33xf32> -> vector<8x33xf32>
    %1086 = arith.truncf %1083 : vector<8x33xf32> to vector<8x33xbf16>
    %cst_365 = arith.constant dense<0.000000e+00> : vector<8x33xf32>
    %1087 = tpu.matmul %1086, %1, %cst_365 {dimension_numbers = #tpu.dot_dimension_numbers<[1], [0], [0], [1], [0, 0, 1, 1], [], []>} : vector<8x33xbf16>, vector<33x33xbf16>, vector<8x33xf32> -> vector<8x33xf32>
    %1088 = arith.addf %1085, %1087 : vector<8x33xf32>
    %1089 = vector.extract_strided_slice %1088 {offsets = [0, 0], sizes = [8, 32], strides = [1, 1]} : vector<8x33xf32> to vector<8x32xf32>
    %1090 = arith.addf %1089, %4 : vector<8x32xf32>
    %1091 = math.tanh %1090 : vector<8x32xf32>
    %1092 = vector.extract_strided_slice %1088 {offsets = [0, 32], sizes = [8, 1], strides = [1, 1]} : vector<8x33xf32> to vector<8x1xf32>
    %1093 = vector.extract_strided_slice %1080 {offsets = [0, 32], sizes = [8, 1], strides = [1, 1]} : vector<8x33xf32> to vector<8x1xf32>
    %1094 = arith.addf %1092, %1093 : vector<8x1xf32>
    %1095 = vector.extract_strided_slice %1083 {offsets = [0, 32], sizes = [8, 1], strides = [1, 1]} : vector<8x33xf32> to vector<8x1xf32>
    %1096 = arith.addf %1094, %1095 : vector<8x1xf32>
    %1097 = arith.maximumf %1064, %1096 : vector<8x1xf32>
    %1098 = arith.subf %1064, %1097 : vector<8x1xf32>
    %1099 = math.exp %1098 : vector<8x1xf32>
    %1100 = arith.subf %1096, %1097 : vector<8x1xf32>
    %1101 = math.exp %1100 : vector<8x1xf32>
    %1102 = arith.mulf %1099, %1070 : vector<8x1xf32>
    %1103 = arith.addf %1102, %1101 : vector<8x1xf32>
    %1104 = vector.broadcast %1099 : vector<8x1xf32> to vector<8x32xf32>
    %1105 = arith.mulf %1104, %1075 : vector<8x32xf32>
    %1106 = vector.broadcast %1101 : vector<8x1xf32> to vector<8x32xf32>
    %1107 = arith.mulf %1106, %1091 : vector<8x32xf32>
    %1108 = arith.addf %1105, %1107 : vector<8x32xf32>
    %1109 = arith.mulf %1099, %1078 : vector<8x1xf32>
    %1110 = arith.mulf %1101, %1096 : vector<8x1xf32>
    %1111 = arith.addf %1109, %1110 : vector<8x1xf32>
    %1112 = tpu.reciprocal %1103 {approx = true} : vector<8x1xf32> -> vector<8x1xf32>
    %c1_i32_366 = arith.constant 1 : i32
    %1113 = vector.broadcast %c1_i32_366 : i32 to vector<8x1xi32>
    %1114 = arith.cmpi slt, %21, %1113 : vector<8x1xi32>
    %1115 = vector.broadcast %1112 : vector<8x1xf32> to vector<8x32xf32>
    %1116 = arith.mulf %1108, %1115 : vector<8x32xf32>
    %cst_367 = arith.constant 0.000000e+00 : f32
    %1117 = vector.shape_cast %1114 : vector<8x1xi1> to vector<8x1xi1>
    %1118 = vector.broadcast %1117 : vector<8x1xi1> to vector<8x32xi1>
    %1119 = vector.broadcast %cst_367 : f32 to vector<8x32xf32>
    %1120 = arith.select %1118, %1116, %1119 : vector<8x32xi1>, vector<8x32xf32>
    %1121 = arith.mulf %1111, %1112 : vector<8x1xf32>
    %cst_368 = arith.constant 0.000000e+00 : f32
    %1122 = vector.broadcast %cst_368 : f32 to vector<8x1xf32>
    %1123 = arith.select %1114, %1121, %1122 : vector<8x1xi1>, vector<8x1xf32>
    %c7 = arith.constant 7 : index
    %c0_369 = arith.constant 0 : index
    %c0_370 = arith.constant 0 : index
    %1124 = vector.load %arg6[%c7, %c0_369, %c0_370] : memref<8x8x33xf32, #tpu.memory_space<vmem>>, vector<1x8x32xf32>
    %1125 = vector.shape_cast %1124 : vector<1x8x32xf32> to vector<8x32xf32>
    %1126 = vector.shape_cast %1120 : vector<8x32xf32> to vector<1x8x32xf32>
    tpu.vector_store %arg6[%c7, %c0_369, %c0_370], %1126 {strides = array<i32>} : memref<8x8x33xf32, #tpu.memory_space<vmem>>, vector<1x8x32xf32>,
    %c7_371 = arith.constant 7 : index
    %c0_372 = arith.constant 0 : index
    %c32_373 = arith.constant 32 : index
    %1127 = vector.load %arg6[%c7_371, %c0_372, %c32_373] : memref<8x8x33xf32, #tpu.memory_space<vmem>>, vector<1x8x1xf32>
    %1128 = vector.shape_cast %1127 : vector<1x8x1xf32> to vector<8x1xf32>
    %1129 = vector.shape_cast %1123 : vector<8x1xf32> to vector<1x8x1xf32>
    tpu.vector_store %arg6[%c7_371, %c0_372, %c32_373], %1129 {strides = array<i32>} : memref<8x8x33xf32, #tpu.memory_space<vmem>>, vector<1x8x1xf32>,
    %c0_374 = arith.constant 0 : index
    %c7_375 = arith.constant 7 : index
    %c0_376 = arith.constant 0 : index
    %c0_377 = arith.constant 0 : index
    %1130 = vector.load %arg5[%c0_374, %c7_375, %c0_376, %c0_377] : memref<1x8x8x32xf32, #tpu.memory_space<vmem>>, vector<1x1x8x32xf32>
    %1131 = vector.shape_cast %1130 : vector<1x1x8x32xf32> to vector<8x32xf32>
    %1132 = vector.shape_cast %1120 : vector<8x32xf32> to vector<1x1x8x32xf32>
    tpu.vector_store %arg5[%c0_374, %c7_375, %c0_376, %c0_377], %1132 {strides = array<i32>} : memref<1x8x8x32xf32, #tpu.memory_space<vmem>>, vector<1x1x8x32xf32>,
    return
  }
  func.func @transform_0(%arg0: i32) -> (i32, i32, i32) {
    %c0_i32 = arith.constant 0 : i32
    %c0_i32_0 = arith.constant 0 : i32
    %c0_i32_1 = arith.constant 0 : i32
    return %arg0, %c0_i32, %c0_i32_0 : i32, i32, i32
  }
  func.func @transform_1(%arg0: i32) -> (i32, i32) {
    %c0_i32 = arith.constant 0 : i32
    %c0_i32_0 = arith.constant 0 : i32
    %c0_i32_1 = arith.constant 0 : i32
    return %c0_i32, %c0_i32_0 : i32, i32
  }
  func.func @transform_2(%arg0: i32) -> (i32, i32) {
    %c0_i32 = arith.constant 0 : i32
    %c0_i32_0 = arith.constant 0 : i32
    %c0_i32_1 = arith.constant 0 : i32
    return %c0_i32, %c0_i32_0 : i32, i32
  }
  func.func @transform_3(%arg0: i32) -> (i32, i32) {
    %c0_i32 = arith.constant 0 : i32
    %c0_i32_0 = arith.constant 0 : i32
    %c0_i32_1 = arith.constant 0 : i32
    return %c0_i32, %c0_i32_0 : i32, i32
  }
  func.func @transform_4(%arg0: i32) -> (i32, i32, i32, i32) {
    %c0_i32 = arith.constant 0 : i32
    %c0_i32_0 = arith.constant 0 : i32
    %c0_i32_1 = arith.constant 0 : i32
    %c0_i32_2 = arith.constant 0 : i32
    return %arg0, %c0_i32, %c0_i32_0, %c0_i32_1 : i32, i32, i32, i32
  }
}

</mosaic_0001>

<llo_original>
// kernel: tpu_custom_call.1
$region0: #{tpu_custom_call.1}
  #allocation0 [shape = 'u32[]', space=smem, size = 0x4, offset = 0x4, fixed_abs, tag = 'smem constant byte address 0x4 - core index']
  #allocation1 [shape = 'u32[144,128]{1,0:T(1,128)}', space=vmem, size = 0x12000, scoped, tag = 'internal scratch']
  #allocation2 [shape = 'f32[8,8,33]{2,1,0:T(8,128)}', space=vmem, size = 0x8000, scoped, tag = 'scratch operand']
  %s0 = inlined_call_operand.hbm [shape: f32[2,8,32], index: 0, kind: input, shape index: {}]
  %s1 = inlined_call_operand.hbm [shape: bf16[33,33], index: 1, kind: input, shape index: {}]
  %s2 = inlined_call_operand.hbm [shape: bf16[33,33], index: 2, kind: input, shape index: {}]
  %s3 = inlined_call_operand.vmem [shape: f32[1,32], index: 3, kind: input, shape index: {}]
  %s4 = inlined_call_operand.hbm [shape: f32[2,8,8,32], index: 4, kind: output, shape index: {}]
  %s5 = sld [smem:[#allocation0]]
  $region61: #{tpu_custom_call.1} parent=0
    _
  %s7 = ssub.s32 1, %s5
  %s8 = scalar_select 0, %s7, %s5
  $region1: #{tpu_custom_call.1} parent=0
    #allocation3 [shape = 'u8[8192]{0}', space=vmem, size = 0x2000, scoped, tag = 'input window, operand 0']
    #allocation4 [shape = 's32[2]{0}', space=sflag, size = 0x8, scoped, tag = 'scoped memory for tpu_custom_call.1']
    #allocation5 [shape = 's32[2]{0}', space=sflag, size = 0x8, scoped, tag = 'scoped memory for tpu_custom_call.1']
    #allocation6 [shape = 'u8[10240]{0}', space=vmem, size = 0x2800, scoped, tag = 'input window, operand 1, single buffered']
    #allocation7 [shape = 's32[1]{0}', space=sflag, size = 0x4, scoped, tag = 'scoped memory for tpu_custom_call.1']
    #allocation8 [shape = 'u8[10240]{0}', space=vmem, size = 0x2800, scoped, tag = 'input window, operand 2, single buffered']
    #allocation9 [shape = 'u8[65536]{0}', space=vmem, size = 0x10000, scoped, tag = 'output window, operand 0']
    %9 = vsyncpa [#allocation4], 0
    %s10 = scalar_lea.sflag [#allocation4], 1
    %11 = vsyncpa %s10, 0
    %12 = vsyncpa [#allocation7], 0
    %13 = vsyncpa [#allocation5], 0
    %s14 = scalar_lea.sflag [#allocation5], 1
    %15 = vsyncpa %s14, 0
    loop: start=0, step=1, limit=4
    $region2: #{tpu_custom_call.1} parent=1 // loop_pre_header
      _
    $region3: #{tpu_custom_call.1} parent=1 // loop_header
      %s17 = sphi 0, %s21
      %p18 = scmp.ge.s32.totalorder %s17, 4
      %s27 = sphi 0, %s29
      %s30 = sphi 0, %s27
      %s31 = sphi 0, %s30
      %s47 = sphi 0, %s31
      %s51 = sphi 0, %s51
      %s53 = sphi 0, %s51
      %s54 = sphi 0, %s53
      %s68 = sphi 0, %s54
      %s72 = sphi 0, %s72
      %s74 = sphi 0, %s72
      %s75 = sphi 0, %s74
      %s89 = sphi 0, %s75
      %s93 = sphi 0, %s93
      %s95 = sphi 0, %s93
      %s96 = sphi 0, %s95
      %s110 = sphi 0, %s96
      %s116 = sphi 0, %s118
      %s119 = sphi 0, %s116
      %s120 = sphi 0, %s119
      %s136 = sphi 0, %s120
    $region4: #{tpu_custom_call.1} parent=1 // loop_header_branch
      %20 = sbr.rel (%p18) target = $region8
    $region5: #{tpu_custom_call.1} parent=1 // loop_body
      %s22 = ssub.s32 %s17, 1
      %s23 = ssub.s32 %s17, 2
      %s24 = sadd.s32 %s17, 1
      %s25 = ssub.s32 %s17, %s24
      %p26 = scmp.eq.s32.totalorder %s25, 0
      %s28 = sadd.s32 %s27, 1
      %s29 = scalar_select %p26, %s27, %s28
      %p32 = pneg %p26
      %p33 = scmp.eq.s32.totalorder %s17, 1
      %p34 = por %p32, %p33
      %p35 = scmp.ne.s32.totalorder %s27, %s30
      %p36 = scmp.eq.s32.totalorder %s17, 0
      %p37 = por %p35, %p36
      %p38 = scmp.ne.s32.totalorder %s27, %s30
      %p39 = scmp.eq.s32.totalorder %s22, 1
      %p40 = por %p38, %p39
      %p41 = scmp.ne.s32.totalorder %s30, %s31
      %p42 = scmp.eq.s32.totalorder %s22, 0
      %p43 = por %p41, %p42
      %p44 = scmp.ne.s32.totalorder %s30, %s31
      %p45 = scmp.eq.s32.totalorder %s23, 1
      %p46 = por %p44, %p45
      %p48 = scmp.ne.s32.totalorder %s31, %s47
      %p49 = scmp.eq.s32.totalorder %s23, 0
      %p50 = por %p48, %p49
      %s52 = sadd.s32 %s51, 1
      %p55 = scmp.eq.s32.totalorder %s17, 1
      %p56 = scmp.ne.s32.totalorder %s51, %s53
      %p57 = scmp.eq.s32.totalorder %s17, 0
      %p58 = por %p56, %p57
      %p59 = scmp.ne.s32.totalorder %s51, %s53
      %p60 = scmp.eq.s32.totalorder %s22, 1
      %p61 = por %p59, %p60
      %p62 = scmp.ne.s32.totalorder %s53, %s54
      %p63 = scmp.eq.s32.totalorder %s22, 0
      %p64 = por %p62, %p63
      %p65 = scmp.ne.s32.totalorder %s53, %s54
      %p66 = scmp.eq.s32.totalorder %s23, 1
      %p67 = por %p65, %p66
      %p69 = scmp.ne.s32.totalorder %s54, %s68
      %p70 = scmp.eq.s32.totalorder %s23, 0
      %p71 = por %p69, %p70
      %s73 = sadd.s32 %s72, 1
      %p76 = scmp.eq.s32.totalorder %s17, 1
      %p77 = scmp.ne.s32.totalorder %s72, %s74
      %p78 = scmp.eq.s32.totalorder %s17, 0
      %p79 = por %p77, %p78
      %p80 = scmp.ne.s32.totalorder %s72, %s74
      %p81 = scmp.eq.s32.totalorder %s22, 1
      %p82 = por %p80, %p81
      %p83 = scmp.ne.s32.totalorder %s74, %s75
      %p84 = scmp.eq.s32.totalorder %s22, 0
      %p85 = por %p83, %p84
      %p86 = scmp.ne.s32.totalorder %s74, %s75
      %p87 = scmp.eq.s32.totalorder %s23, 1
      %p88 = por %p86, %p87
      %p90 = scmp.ne.s32.totalorder %s75, %s89
      %p91 = scmp.eq.s32.totalorder %s23, 0
      %p92 = por %p90, %p91
      %s94 = sadd.s32 %s93, 1
      %p97 = scmp.eq.s32.totalorder %s17, 1
      %p98 = scmp.ne.s32.totalorder %s93, %s95
      %p99 = scmp.eq.s32.totalorder %s17, 0
      %p100 = por %p98, %p99
      %p101 = scmp.ne.s32.totalorder %s93, %s95
      %p102 = scmp.eq.s32.totalorder %s22, 1
      %p103 = por %p101, %p102
      %p104 = scmp.ne.s32.totalorder %s95, %s96
      %p105 = scmp.eq.s32.totalorder %s22, 0
      %p106 = por %p104, %p105
      %p107 = scmp.ne.s32.totalorder %s95, %s96
      %p108 = scmp.eq.s32.totalorder %s23, 1
      %p109 = por %p107, %p108
      %p111 = scmp.ne.s32.totalorder %s96, %s110
      %p112 = scmp.eq.s32.totalorder %s23, 0
      %p113 = por %p111, %p112
      %s114 = ssub.s32 %s17, %s24
      %p115 = scmp.eq.s32.totalorder %s114, 0
      %s117 = sadd.s32 %s116, 1
      %s118 = scalar_select %p115, %s116, %s117
      %p121 = pneg %p115
      %p122 = scmp.eq.s32.totalorder %s17, 1
      %p123 = por %p121, %p122
      %p124 = scmp.ne.s32.totalorder %s116, %s119
      %p125 = scmp.eq.s32.totalorder %s17, 0
      %p126 = por %p124, %p125
      %p127 = scmp.ne.s32.totalorder %s116, %s119
      %p128 = scmp.eq.s32.totalorder %s22, 1
      %p129 = por %p127, %p128
      %p130 = scmp.ne.s32.totalorder %s119, %s120
      %p131 = scmp.eq.s32.totalorder %s22, 0
      %p132 = por %p130, %p131
      %p133 = scmp.ne.s32.totalorder %s119, %s120
      %p134 = scmp.eq.s32.totalorder %s23, 1
      %p135 = por %p133, %p134
      %p137 = scmp.ne.s32.totalorder %s120, %s136
      %p138 = scmp.eq.s32.totalorder %s23, 0
      %p139 = por %p137, %p138
      %p140 = scmp.le.s32.totalorder 1, %s17
      %p141 = scmp.lt.s32.totalorder %s17, 3
      %p142 = pnand %p140, %p141
      %p143 = pneg %p142
      // Predicated region
      $region9: #{tpu_custom_call.1} parent=5 // pred_check
        _
      $region10: #{tpu_custom_call.1} parent=5 // pred_check_branch
        %145 = sbr.rel (%p142) target = $region12
      $region11: #{tpu_custom_call.1} parent=5 // pred_region
        %s146 = ssub.s32 %s17, 1
        // Predicated region
        $region13: #{tpu_custom_call.1} parent=11 // pred_check
          %p147 = pneg %p64
        $region14: #{tpu_custom_call.1} parent=11 // pred_check_branch
          %149 = sbr.rel (%p147) target = $region16
        $region15: #{tpu_custom_call.1} parent=11 // pred_region
          %s151 = ssub.s32 320, 320
          %152 = vsyncadd [#allocation7], %s151
          %s153 = sshll.u32 [#allocation6], 4
          %s154 = int_to_ptr.vmem [resolvable:$true] %s153
          %159 = dma.hbm_to_vmem [thread:$0]  %s1, 320, %s154, [#allocation7], 64, 64, 4
        $region16: #{tpu_custom_call.1} parent=11 // pred_fallthru
          _
        // Predicated region
        $region17: #{tpu_custom_call.1} parent=11 // pred_check
          %p160 = pneg %p85
        $region18: #{tpu_custom_call.1} parent=11 // pred_check_branch
          %162 = sbr.rel (%p160) target = $region20
        $region19: #{tpu_custom_call.1} parent=11 // pred_region
          %s164 = ssub.s32 320, 320
          %165 = vsyncadd [#allocation7], %s164
          %s166 = sshll.u32 [#allocation8], 4
          %s167 = int_to_ptr.vmem [resolvable:$true] %s166
          %172 = dma.hbm_to_vmem [thread:$0]  %s2, 320, %s167, [#allocation7], 64, 64, 4
        $region20: #{tpu_custom_call.1} parent=11 // pred_fallthru
          _
        // Predicated region
        $region21: #{tpu_custom_call.1} parent=11 // pred_check
          %p173 = pneg %p106
        $region22: #{tpu_custom_call.1} parent=11 // pred_check_branch
          %175 = sbr.rel (%p173) target = $region24
        $region23: #{tpu_custom_call.1} parent=11 // pred_region
          _
        $region24: #{tpu_custom_call.1} parent=11 // pred_fallthru
          _
      $region12: #{tpu_custom_call.1} parent=5 // pred_fallthru
        _
      %p176 = scmp.lt.s32.totalorder %s17, 2
      // Predicated region
      $region25: #{tpu_custom_call.1} parent=5 // pred_check
        %p177 = pneg %p176
      $region26: #{tpu_custom_call.1} parent=5 // pred_check_branch
        %179 = sbr.rel (%p177) target = $region28
      $region27: #{tpu_custom_call.1} parent=5 // pred_region
        // Predicated region
        $region29: #{tpu_custom_call.1} parent=27 // pred_check
          %p180 = pneg %p37
        $region30: #{tpu_custom_call.1} parent=27 // pred_check_branch
          %182 = sbr.rel (%p180) target = $region32
        $region31: #{tpu_custom_call.1} parent=27 // pred_region
          %s183 = sand.u32 %s27, 1
          %s184 = scalar_lea.sflag [#allocation4], %s183
          %s185 = sand.u32 %s27, 1
          %s186 = smul.addr %s185, 8
          %s187 = scalar_lea.vmem [#allocation3], %s186
          %s189 = ssub.s32 128, 128
          %190 = vsyncadd %s184, %s189
          %s191 = smul.addr %s17, 128
          %s192 = scalar_lea.hbm %s0, %s191
          %s194 = sshll.u32 %s187, 4
          %s195 = int_to_ptr.vmem [resolvable:$true] %s194
          %197 = dma.hbm_to_vmem [thread:$0]  %s192, 128, %s195, %s184
        $region32: #{tpu_custom_call.1} parent=27 // pred_fallthru
          _
      $region28: #{tpu_custom_call.1} parent=5 // pred_fallthru
        _
      %p198 = scmp.le.s32.totalorder 1, %s17
      %p199 = scmp.lt.s32.totalorder %s17, 3
      %p200 = pnand %p198, %p199
      %p201 = pneg %p200
      // Predicated region
      $region33: #{tpu_custom_call.1} parent=5 // pred_check
        _
      $region34: #{tpu_custom_call.1} parent=5 // pred_check_branch
        %203 = sbr.rel (%p200) target = $region36
      $region35: #{tpu_custom_call.1} parent=5 // pred_region
        %s204 = ssub.s32 %s17, 1
        %s205 = sand.u32 %s30, 1
        %s206 = scalar_lea.sflag [#allocation4], %s205
        %s207 = sand.u32 %s30, 1
        %s208 = smul.addr %s207, 8
        %s209 = scalar_lea.vmem [#allocation3], %s208
        // Predicated region
        $region37: #{tpu_custom_call.1} parent=35 // pred_check
          %p210 = pneg %p43
        $region38: #{tpu_custom_call.1} parent=35 // pred_check_branch
          %212 = sbr.rel (%p210) target = $region40
        $region39: #{tpu_custom_call.1} parent=35 // pred_region
          %213 = dma.done %s206, 128
        $region40: #{tpu_custom_call.1} parent=35 // pred_fallthru
          _
        // Predicated region
        $region41: #{tpu_custom_call.1} parent=35 // pred_check
          %p214 = pneg %p64
        $region42: #{tpu_custom_call.1} parent=35 // pred_check_branch
          %216 = sbr.rel (%p214) target = $region44
        $region43: #{tpu_custom_call.1} parent=35 // pred_region
          %217 = dma.done [#allocation7], 320
        $region44: #{tpu_custom_call.1} parent=35 // pred_fallthru
          _
        // Predicated region
        $region45: #{tpu_custom_call.1} parent=35 // pred_check
          %p218 = pneg %p85
        $region46: #{tpu_custom_call.1} parent=35 // pred_check_branch
          %220 = sbr.rel (%p218) target = $region48
        $region47: #{tpu_custom_call.1} parent=35 // pred_region
          %221 = dma.done [#allocation7], 320
        $region48: #{tpu_custom_call.1} parent=35 // pred_fallthru
          _
        %s222 = sand.u32 %s30, 1
        %s223 = scalar_lea.sflag [#allocation4], %s222
        %s224 = sand.u32 %s30, 1
        %s225 = smul.addr %s224, 8
        %s226 = scalar_lea.vmem [#allocation3], %s225
        %p227 = pneg %p43
        %p228 = pneg %p40
        %p229 = pneg %p64
        %p230 = pneg %p61
        %p231 = pneg %p85
        %p232 = pneg %p82
        %p233 = pneg %p106
        %p234 = pneg %p103
        %p235 = pneg %p132
        %p236 = pneg %p129
        %s237 = sand.u32 %s119, 1
        %s238 = scalar_lea.sflag [#allocation5], %s237
        %s239 = sand.u32 %s119, 1
        %s240 = smul.addr %s239, 64
        %s241 = scalar_lea.vmem [#allocation9], %s240
        %v243 = vld [vmem:[#allocation6] sm:$0xf]
        %v244 = vld [vmem:[#allocation6 + $0x4] sm:$0xf]
        %v245 = vld [vmem:[#allocation6 + $0x8] sm:$0xf]
        %v246 = vld [vmem:[#allocation6 + $0xc] sm:$0xf]
        %v247 = vld [vmem:[#allocation6 + $0x10] sm:$0x1]
        %v248 = vld [vmem:[#allocation8] sm:$0xf]
        %v249 = vld [vmem:[#allocation8 + $0x4] sm:$0xf]
        %v250 = vld [vmem:[#allocation8 + $0x8] sm:$0xf]
        %v251 = vld [vmem:[#allocation8 + $0xc] sm:$0xf]
        %v252 = vld [vmem:[#allocation8 + $0x10] sm:$0x1]
        %v253 = vld [vmem:[%s3] sm:$0x1]
        %v255 = vlaneseq
        %v256 = vshrl.u32 %v255, 7
        %v257 = vsub.s32 0, %v256
        %v258 = vrot.slane %v253, %v257
        %v260 = vlaneseq
        %v261 = vshrl.u32 %v260, 7
        %vm262 = vcmp.lt.s32.totalorder %v261, 0
        %v263 = vsub.s32 0, %v261
        %v264 = vsel %vm262, %v263, %v261
        %v265 = vshrl.u32 %v264, 3
        %v266 = vand.u32 %v264, 7
        %v267 = vsub.s32 0, %v266
        %v268 = vsel %vm262, %v267, %v266
        %vm269 = vcmp.ne.s32.totalorder %v268, 0
        %vm270 = vcmp.lt.s32.totalorder %v268, 0
        %vm271 = vmand %vm270, %vm269
        %v272 = vadd.s32 %v268, 8
        %v273 = vsel %vm271, %v272, %v268
        %v274 = vld [vmem:[%s209] sm:$0xff]
        %vm275 = vcmask 261120
        %276 = vst.msk [vmem:[#allocation2] sm:$0xff] %vm275, %v274
        %vm277 = vcmask 269568
        %278 = vst.msk [vmem:[#allocation2] sm:$0xff] %vm277, 0.0
        %279 = vst.msk [vmem:[%s241] sm:$0xff] %vm275, %v274
        %v280 = vld [vmem:[#allocation2] sm:$0xff]
        %v281 = vrot.slane %v280, 1
        %v282 = vpack.c.bf16 %v280, %v280
        %v283 = vpack.c.bf16 %v281, %v281
        %v289 = vunpack.c.l.b16 %v248
        %v290 = vunpack.c.l.b16 %v249
        %v291 = vunpack.c.l.b16 %v250
        %v292 = vunpack.c.l.b16 %v251
        %v293 = vunpack.c.l.b16 %v252
        %v294 = vpack.c.b16 %v290, %v289
        %v295 = vpack.c.b16 %v292, %v291
        %v296 = vpack.c.b16 %v293, %v293
        %vm299 = vcmask 269312
        %v301 = vsel %vm299, %v283, 0
        %vm303 = vcmask 1040384
        %v304 = vsel 0, 4294967295, 65535
        %v305 = vsel %vm303, %v304, 0
        %v307 = vand.u32 %v296, %v305
        %309 = vmatprep.subr.bf16.mxu0 0
        %310 = vmatpush1.bf16.msra.mxu0 0
        %311 = vmatprep.subr.bf16.mxu0 0
        %312 = vmatpush1.bf16.msra.mxu0 0
        %313 = vmatprep.subr.bf16.mxu0 0
        %314 = vmatpush1.bf16.msra.mxu0 0
        %315 = vmatprep.subr.bf16.mxu0 0
        %316 = vmatpush1.bf16.msra.mxu0 0
        %317 = vmatprep.subr.bf16.mxu0 0
        %318 = vmatpush1.bf16.msra.mxu0 0
        %319 = vmatprep.subr.bf16.mxu0 0
        %320 = vmatpush1.bf16.msra.mxu0 %v307
        %321 = vmatprep.subr.bf16.mxu0 0
        %322 = vmatpush1.bf16.msra.mxu0 %v295
        %323 = vmatprep.subr.bf16.mxu0 0
        %324 = vmatpush1.bf16.msra.mxu0 %v294
        %325 = vmatprep.subr.bf16.mxu0 0
        %326 = vmatpush2.bf16.msra.mxu0 0
        %327 = vmatprep.subr.bf16.mxu0 0
        %328 = vmatpush2.bf16.msra.mxu0 0
        %329 = vmatprep.subr.bf16.mxu0 0
        %330 = vmatpush2.bf16.msra.mxu0 0
        %331 = vmatprep.subr.bf16.mxu0 0
        %332 = vmatpush2.bf16.msra.mxu0 0
        %333 = vmatprep.subr.bf16.mxu0 0
        %334 = vmatpush2.bf16.msra.mxu0 0
        %335 = vmatprep.subr.bf16.mxu0 0
        %336 = vmatpush2.bf16.msra.mxu0 0
        %337 = vmatprep.subr.bf16.mxu0 0
        %338 = vmatpush2.bf16.msra.mxu0 0
        %339 = vmatprep.subr.bf16.mxu0 0
        %340 = vmatpush2.bf16.msra.mxu0 0
        %341 = vmatprep.mubr.bf16.mxu0 0
        %342 = vmatmul.mubr.bf16.gmra.mxu0 %v301
        %v343 = vpop.f32.mrf.mxu0
        %v344 = vadd.f32 0.0, %v343
        %v345 = vpop.f32.mrf.mxu0
        %v346 = vpop.f32.mrf.mxu0
        %v347 = vpop.f32.mrf.mxu0
        %348 = vdwg.mxu0
        %v354 = vunpack.c.l.b16 %v243
        %v355 = vunpack.c.l.b16 %v244
        %v356 = vunpack.c.l.b16 %v245
        %v357 = vunpack.c.l.b16 %v246
        %v358 = vunpack.c.l.b16 %v247
        %v359 = vpack.c.b16 %v355, %v354
        %v360 = vpack.c.b16 %v357, %v356
        %v361 = vpack.c.b16 %v358, %v358
        %v365 = vsel %vm299, %v282, 0
        %v368 = vand.u32 %v361, %v305
        %370 = vmatprep.subr.bf16.mxu0 0
        %371 = vmatpush1.bf16.msra.mxu0 0
        %372 = vmatprep.subr.bf16.mxu0 0
        %373 = vmatpush1.bf16.msra.mxu0 0
        %374 = vmatprep.subr.bf16.mxu0 0
        %375 = vmatpush1.bf16.msra.mxu0 0
        %376 = vmatprep.subr.bf16.mxu0 0
        %377 = vmatpush1.bf16.msra.mxu0 0
        %378 = vmatprep.subr.bf16.mxu0 0
        %379 = vmatpush1.bf16.msra.mxu0 0
        %380 = vmatprep.subr.bf16.mxu0 0
        %381 = vmatpush1.bf16.msra.mxu0 %v368
        %382 = vmatprep.subr.bf16.mxu0 0
        %383 = vmatpush1.bf16.msra.mxu0 %v360
        %384 = vmatprep.subr.bf16.mxu0 0
        %385 = vmatpush1.bf16.msra.mxu0 %v359
        %386 = vmatprep.subr.bf16.mxu0 0
        %387 = vmatpush2.bf16.msra.mxu0 0
        %388 = vmatprep.subr.bf16.mxu0 0
        %389 = vmatpush2.bf16.msra.mxu0 0
        %390 = vmatprep.subr.bf16.mxu0 0
        %391 = vmatpush2.bf16.msra.mxu0 0
        %392 = vmatprep.subr.bf16.mxu0 0
        %393 = vmatpush2.bf16.msra.mxu0 0
        %394 = vmatprep.subr.bf16.mxu0 0
        %395 = vmatpush2.bf16.msra.mxu0 0
        %396 = vmatprep.subr.bf16.mxu0 0
        %397 = vmatpush2.bf16.msra.mxu0 0
        %398 = vmatprep.subr.bf16.mxu0 0
        %399 = vmatpush2.bf16.msra.mxu0 0
        %400 = vmatprep.subr.bf16.mxu0 0
        %401 = vmatpush2.bf16.msra.mxu0 0
        %402 = vmatprep.mubr.bf16.mxu0 0
        %403 = vmatmul.mubr.bf16.gmra.mxu0 %v365
        %v404 = vpop.f32.mrf.mxu0
        %v405 = vadd.f32 %v344, %v404
        %v406 = vpop.f32.mrf.mxu0
        %v407 = vpop.f32.mrf.mxu0
        %v408 = vpop.f32.mrf.mxu0
        %409 = vdwg.mxu0
        %v410 = vadd.f32 %v405, %v258
        %v411 = vtanh.pop %v410
        %v412 = vadd.f32 %v405, %v280
        %v413 = vadd.f32 %v412, %v281
        %v414 = vsub.f32 -inf, %v413
        %v415 = vmul.f32 %v414, 1.442695
        %v416 = vpow.pop %v415
        %v417 = vsub.f32 %v413, %v413
        %v418 = vmul.f32 %v417, 1.442695
        %v419 = vpow.pop %v418
        %v420 = vmul.f32 %v416, 0.0
        %v421 = vadd.f32 %v420, %v419
        %423 = vset.pattern.permute.xlu0 32
        %424 = vperm.xlu0 %423, %v416
        %v425 = vpop.permute.xlu0 %424
        %v427 = vmul.f32 %v425, 0.0
        %429 = vset.pattern.permute.xlu0 32
        %430 = vperm.xlu0 %429, %v419
        %v431 = vpop.permute.xlu0 %430
        %v433 = vmul.f32 %v431, %v411
        %v434 = vadd.f32 %v427, %v433
        %v435 = vmul.f32 %v419, %v413
        %v436 = vadd.f32 %v420, %v435
        %v437 = vrcp.pop %v421
        %vm438 = vcmp.lt.s32.totalorder %v273, 7
        %440 = vset.pattern.permute.xlu0 32
        %441 = vperm.xlu0 %440, %v437
        %v442 = vpop.permute.xlu0 %441
        %v444 = vmul.f32 %v434, %v442
        %v445 = vsel %vm438, 1, 0
        %vm446 = vcmp.eq.s32.totalorder %v445, 1
        %v447 = vsel %vm446, %v444, 0.0
        %v448 = vmul.f32 %v436, %v437
        %v449 = vsel %vm438, %v448, 0.0
        %s450 = scalar_lea.vmem [#allocation2], 8
        %451 = vst.msk [vmem:[%s450] sm:$0xff] %vm275, %v447
        %452 = vst.msk [vmem:[%s450] sm:$0xff] %vm277, %v449
        %s453 = scalar_lea.vmem %s241, 8 [#allocation9]
        %454 = vst.msk [vmem:[%s453] sm:$0xff] %vm275, %v447
        %v455 = vld [vmem:[#allocation2] sm:$0xff]
        %v456 = vld [vmem:[%s450] sm:$0xff]
        %v457 = vrot.slane %v456, 1
        %v458 = vpack.c.bf16 %v455, %v455
        %v459 = vpack.c.bf16 %v457, %v457
        %v461 = vsel %vm299, %v459, 0
        %463 = vmatprep.subr.bf16.mxu0 0
        %464 = vmatpush1.bf16.msra.mxu0 0
        %465 = vmatprep.subr.bf16.mxu0 0
        %466 = vmatpush1.bf16.msra.mxu0 0
        %467 = vmatprep.subr.bf16.mxu0 0
        %468 = vmatpush1.bf16.msra.mxu0 0
        %469 = vmatprep.subr.bf16.mxu0 0
        %470 = vmatpush1.bf16.msra.mxu0 0
        %471 = vmatprep.subr.bf16.mxu0 0
        %472 = vmatpush1.bf16.msra.mxu0 0
        %473 = vmatprep.subr.bf16.mxu0 0
        %474 = vmatpush1.bf16.msra.mxu0 %v307
        %475 = vmatprep.subr.bf16.mxu0 0
        %476 = vmatpush1.bf16.msra.mxu0 %v295
        %477 = vmatprep.subr.bf16.mxu0 0
        %478 = vmatpush1.bf16.msra.mxu0 %v294
        %479 = vmatprep.subr.bf16.mxu0 0
        %480 = vmatpush2.bf16.msra.mxu0 0
        %481 = vmatprep.subr.bf16.mxu0 0
        %482 = vmatpush2.bf16.msra.mxu0 0
        %483 = vmatprep.subr.bf16.mxu0 0
        %484 = vmatpush2.bf16.msra.mxu0 0
        %485 = vmatprep.subr.bf16.mxu0 0
        %486 = vmatpush2.bf16.msra.mxu0 0
        %487 = vmatprep.subr.bf16.mxu0 0
        %488 = vmatpush2.bf16.msra.mxu0 0
        %489 = vmatprep.subr.bf16.mxu0 0
        %490 = vmatpush2.bf16.msra.mxu0 0
        %491 = vmatprep.subr.bf16.mxu0 0
        %492 = vmatpush2.bf16.msra.mxu0 0
        %493 = vmatprep.subr.bf16.mxu0 0
        %494 = vmatpush2.bf16.msra.mxu0 0
        %495 = vmatprep.mubr.bf16.mxu0 0
        %496 = vmatmul.mubr.bf16.gmra.mxu0 %v461
        %v497 = vpop.f32.mrf.mxu0
        %v498 = vadd.f32 0.0, %v497
        %v499 = vpop.f32.mrf.mxu0
        %v500 = vpop.f32.mrf.mxu0
        %v501 = vpop.f32.mrf.mxu0
        %502 = vdwg.mxu0
        %v504 = vsel %vm299, %v458, 0
        %506 = vmatprep.subr.bf16.mxu0 0
        %507 = vmatpush1.bf16.msra.mxu0 0
        %508 = vmatprep.subr.bf16.mxu0 0
        %509 = vmatpush1.bf16.msra.mxu0 0
        %510 = vmatprep.subr.bf16.mxu0 0
        %511 = vmatpush1.bf16.msra.mxu0 0
        %512 = vmatprep.subr.bf16.mxu0 0
        %513 = vmatpush1.bf16.msra.mxu0 0
        %514 = vmatprep.subr.bf16.mxu0 0
        %515 = vmatpush1.bf16.msra.mxu0 0
        %516 = vmatprep.subr.bf16.mxu0 0
        %517 = vmatpush1.bf16.msra.mxu0 %v368
        %518 = vmatprep.subr.bf16.mxu0 0
        %519 = vmatpush1.bf16.msra.mxu0 %v360
        %520 = vmatprep.subr.bf16.mxu0 0
        %521 = vmatpush1.bf16.msra.mxu0 %v359
        %522 = vmatprep.subr.bf16.mxu0 0
        %523 = vmatpush2.bf16.msra.mxu0 0
        %524 = vmatprep.subr.bf16.mxu0 0
        %525 = vmatpush2.bf16.msra.mxu0 0
        %526 = vmatprep.subr.bf16.mxu0 0
        %527 = vmatpush2.bf16.msra.mxu0 0
        %528 = vmatprep.subr.bf16.mxu0 0
        %529 = vmatpush2.bf16.msra.mxu0 0
        %530 = vmatprep.subr.bf16.mxu0 0
        %531 = vmatpush2.bf16.msra.mxu0 0
        %532 = vmatprep.subr.bf16.mxu0 0
        %533 = vmatpush2.bf16.msra.mxu0 0
        %534 = vmatprep.subr.bf16.mxu0 0
        %535 = vmatpush2.bf16.msra.mxu0 0
        %536 = vmatprep.subr.bf16.mxu0 0
        %537 = vmatpush2.bf16.msra.mxu0 0
        %538 = vmatprep.mubr.bf16.mxu0 0
        %539 = vmatmul.mubr.bf16.gmra.mxu0 %v504
        %v540 = vpop.f32.mrf.mxu0
        %v541 = vadd.f32 %v498, %v540
        %v542 = vpop.f32.mrf.mxu0
        %v543 = vpop.f32.mrf.mxu0
        %v544 = vpop.f32.mrf.mxu0
        %545 = vdwg.mxu0
        %v546 = vadd.f32 %v541, %v258
        %v547 = vtanh.pop %v546
        %v548 = vadd.f32 %v541, %v455
        %v549 = vadd.f32 %v548, %v457
        %v550 = vsub.f32 -inf, %v549
        %v551 = vmul.f32 %v550, 1.442695
        %v552 = vpow.pop %v551
        %v553 = vsub.f32 %v549, %v549
        %v554 = vmul.f32 %v553, 1.442695
        %v555 = vpow.pop %v554
        %v556 = vmul.f32 %v552, 0.0
        %v557 = vadd.f32 %v556, %v555
        %559 = vset.pattern.permute.xlu0 32
        %560 = vperm.xlu0 %559, %v552
        %v561 = vpop.permute.xlu0 %560
        %v563 = vmul.f32 %v561, 0.0
        %565 = vset.pattern.permute.xlu0 32
        %566 = vperm.xlu0 %565, %v555
        %v567 = vpop.permute.xlu0 %566
        %v569 = vmul.f32 %v567, %v547
        %v570 = vadd.f32 %v563, %v569
        %v571 = vmul.f32 %v555, %v549
        %v572 = vadd.f32 %v556, %v571
        %v573 = vrot.slane %v455, 2
        %v574 = vpack.c.bf16 %v456, %v456
        %v575 = vpack.c.bf16 %v573, %v573
        %v577 = vsel %vm299, %v575, 0
        %579 = vmatprep.subr.bf16.mxu0 0
        %580 = vmatpush1.bf16.msra.mxu0 0
        %581 = vmatprep.subr.bf16.mxu0 0
        %582 = vmatpush1.bf16.msra.mxu0 0
        %583 = vmatprep.subr.bf16.mxu0 0
        %584 = vmatpush1.bf16.msra.mxu0 0
        %585 = vmatprep.subr.bf16.mxu0 0
        %586 = vmatpush1.bf16.msra.mxu0 0
        %587 = vmatprep.subr.bf16.mxu0 0
        %588 = vmatpush1.bf16.msra.mxu0 0
        %589 = vmatprep.subr.bf16.mxu0 0
        %590 = vmatpush1.bf16.msra.mxu0 %v307
        %591 = vmatprep.subr.bf16.mxu0 0
        %592 = vmatpush1.bf16.msra.mxu0 %v295
        %593 = vmatprep.subr.bf16.mxu0 0
        %594 = vmatpush1.bf16.msra.mxu0 %v294
        %595 = vmatprep.subr.bf16.mxu0 0
        %596 = vmatpush2.bf16.msra.mxu0 0
        %597 = vmatprep.subr.bf16.mxu0 0
        %598 = vmatpush2.bf16.msra.mxu0 0
        %599 = vmatprep.subr.bf16.mxu0 0
        %600 = vmatpush2.bf16.msra.mxu0 0
        %601 = vmatprep.subr.bf16.mxu0 0
        %602 = vmatpush2.bf16.msra.mxu0 0
        %603 = vmatprep.subr.bf16.mxu0 0
        %604 = vmatpush2.bf16.msra.mxu0 0
        %605 = vmatprep.subr.bf16.mxu0 0
        %606 = vmatpush2.bf16.msra.mxu0 0
        %607 = vmatprep.subr.bf16.mxu0 0
        %608 = vmatpush2.bf16.msra.mxu0 0
        %609 = vmatprep.subr.bf16.mxu0 0
        %610 = vmatpush2.bf16.msra.mxu0 0
        %611 = vmatprep.mubr.bf16.mxu0 0
        %612 = vmatmul.mubr.bf16.gmra.mxu0 %v577
        %v613 = vpop.f32.mrf.mxu0
        %v614 = vadd.f32 0.0, %v613
        %v615 = vpop.f32.mrf.mxu0
        %v616 = vpop.f32.mrf.mxu0
        %v617 = vpop.f32.mrf.mxu0
        %618 = vdwg.mxu0
        %v620 = vsel %vm299, %v574, 0
        %622 = vmatprep.subr.bf16.mxu0 0
        %623 = vmatpush1.bf16.msra.mxu0 0
        %624 = vmatprep.subr.bf16.mxu0 0
        %625 = vmatpush1.bf16.msra.mxu0 0
        %626 = vmatprep.subr.bf16.mxu0 0
        %627 = vmatpush1.bf16.msra.mxu0 0
        %628 = vmatprep.subr.bf16.mxu0 0
        %629 = vmatpush1.bf16.msra.mxu0 0
        %630 = vmatprep.subr.bf16.mxu0 0
        %631 = vmatpush1.bf16.msra.mxu0 0
        %632 = vmatprep.subr.bf16.mxu0 0
        %633 = vmatpush1.bf16.msra.mxu0 %v368
        %634 = vmatprep.subr.bf16.mxu0 0
        %635 = vmatpush1.bf16.msra.mxu0 %v360
        %636 = vmatprep.subr.bf16.mxu0 0
        %637 = vmatpush1.bf16.msra.mxu0 %v359
        %638 = vmatprep.subr.bf16.mxu0 0
        %639 = vmatpush2.bf16.msra.mxu0 0
        %640 = vmatprep.subr.bf16.mxu0 0
        %641 = vmatpush2.bf16.msra.mxu0 0
        %642 = vmatprep.subr.bf16.mxu0 0
        %643 = vmatpush2.bf16.msra.mxu0 0
        %644 = vmatprep.subr.bf16.mxu0 0
        %645 = vmatpush2.bf16.msra.mxu0 0
        %646 = vmatprep.subr.bf16.mxu0 0
        %647 = vmatpush2.bf16.msra.mxu0 0
        %648 = vmatprep.subr.bf16.mxu0 0
        %649 = vmatpush2.bf16.msra.mxu0 0
        %650 = vmatprep.subr.bf16.mxu0 0
        %651 = vmatpush2.bf16.msra.mxu0 0
        %652 = vmatprep.subr.bf16.mxu0 0
        %653 = vmatpush2.bf16.msra.mxu0 0
        %654 = vmatprep.mubr.bf16.mxu0 0
        %655 = vmatmul.mubr.bf16.gmra.mxu0 %v620
        %v656 = vpop.f32.mrf.mxu0
        %v657 = vadd.f32 %v614, %v656
        %v658 = vpop.f32.mrf.mxu0
        %v659 = vpop.f32.mrf.mxu0
        %v660 = vpop.f32.mrf.mxu0
        %661 = vdwg.mxu0
        %v662 = vadd.f32 %v657, %v258
        %v663 = vtanh.pop %v662
        %v664 = vadd.f32 %v657, %v456
        %v665 = vadd.f32 %v664, %v573
        %v666 = vmax.f32 %v549, %v665
        %v667 = vsub.f32 %v549, %v666
        %v668 = vmul.f32 %v667, 1.442695
        %v669 = vpow.pop %v668
        %v670 = vsub.f32 %v665, %v666
        %v671 = vmul.f32 %v670, 1.442695
        %v672 = vpow.pop %v671
        %v673 = vmul.f32 %v669, %v557
        %v674 = vadd.f32 %v673, %v672
        %676 = vset.pattern.permute.xlu0 32
        %677 = vperm.xlu0 %676, %v669
        %v678 = vpop.permute.xlu0 %677
        %v680 = vmul.f32 %v678, %v570
        %682 = vset.pattern.permute.xlu0 32
        %683 = vperm.xlu0 %682, %v672
        %v684 = vpop.permute.xlu0 %683
        %v686 = vmul.f32 %v684, %v663
        %v687 = vadd.f32 %v680, %v686
        %v688 = vmul.f32 %v669, %v572
        %v689 = vmul.f32 %v672, %v665
        %v690 = vadd.f32 %v688, %v689
        %v691 = vrcp.pop %v674
        %vm692 = vcmp.lt.s32.totalorder %v273, 6
        %694 = vset.pattern.permute.xlu0 32
        %695 = vperm.xlu0 %694, %v691
        %v696 = vpop.permute.xlu0 %695
        %v698 = vmul.f32 %v687, %v696
        %v699 = vsel %vm692, 1, 0
        %vm700 = vcmp.eq.s32.totalorder %v699, 1
        %v701 = vsel %vm700, %v698, 0.0
        %v702 = vmul.f32 %v690, %v691
        %v703 = vsel %vm692, %v702, 0.0
        %s704 = scalar_lea.vmem [#allocation2], 16
        %705 = vst.msk [vmem:[%s704] sm:$0xff] %vm275, %v701
        %706 = vst.msk [vmem:[%s704] sm:$0xff] %vm277, %v703
        %s707 = scalar_lea.vmem %s241, 16 [#allocation9]
        %708 = vst.msk [vmem:[%s707] sm:$0xff] %vm275, %v701
        %v709 = vld [vmem:[#allocation2] sm:$0xff]
        %v710 = vld [vmem:[%s704] sm:$0xff]
        %v711 = vrot.slane %v710, 1
        %v712 = vpack.c.bf16 %v709, %v709
        %v713 = vpack.c.bf16 %v711, %v711
        %v715 = vsel %vm299, %v713, 0
        %717 = vmatprep.subr.bf16.mxu0 0
        %718 = vmatpush1.bf16.msra.mxu0 0
        %719 = vmatprep.subr.bf16.mxu0 0
        %720 = vmatpush1.bf16.msra.mxu0 0
        %721 = vmatprep.subr.bf16.mxu0 0
        %722 = vmatpush1.bf16.msra.mxu0 0
        %723 = vmatprep.subr.bf16.mxu0 0
        %724 = vmatpush1.bf16.msra.mxu0 0
        %725 = vmatprep.subr.bf16.mxu0 0
        %726 = vmatpush1.bf16.msra.mxu0 0
        %727 = vmatprep.subr.bf16.mxu0 0
        %728 = vmatpush1.bf16.msra.mxu0 %v307
        %729 = vmatprep.subr.bf16.mxu0 0
        %730 = vmatpush1.bf16.msra.mxu0 %v295
        %731 = vmatprep.subr.bf16.mxu0 0
        %732 = vmatpush1.bf16.msra.mxu0 %v294
        %733 = vmatprep.subr.bf16.mxu0 0
        %734 = vmatpush2.bf16.msra.mxu0 0
        %735 = vmatprep.subr.bf16.mxu0 0
        %736 = vmatpush2.bf16.msra.mxu0 0
        %737 = vmatprep.subr.bf16.mxu0 0
        %738 = vmatpush2.bf16.msra.mxu0 0
        %739 = vmatprep.subr.bf16.mxu0 0
        %740 = vmatpush2.bf16.msra.mxu0 0
        %741 = vmatprep.subr.bf16.mxu0 0
        %742 = vmatpush2.bf16.msra.mxu0 0
        %743 = vmatprep.subr.bf16.mxu0 0
        %744 = vmatpush2.bf16.msra.mxu0 0
        %745 = vmatprep.subr.bf16.mxu0 0
        %746 = vmatpush2.bf16.msra.mxu0 0
        %747 = vmatprep.subr.bf16.mxu0 0
        %748 = vmatpush2.bf16.msra.mxu0 0
        %749 = vmatprep.mubr.bf16.mxu0 0
        %750 = vmatmul.mubr.bf16.gmra.mxu0 %v715
        %v751 = vpop.f32.mrf.mxu0
        %v752 = vadd.f32 0.0, %v751
        %v753 = vpop.f32.mrf.mxu0
        %v754 = vpop.f32.mrf.mxu0
        %v755 = vpop.f32.mrf.mxu0
        %756 = vdwg.mxu0
        %v758 = vsel %vm299, %v712, 0
        %760 = vmatprep.subr.bf16.mxu0 0
        %761 = vmatpush1.bf16.msra.mxu0 0
        %762 = vmatprep.subr.bf16.mxu0 0
        %763 = vmatpush1.bf16.msra.mxu0 0
        %764 = vmatprep.subr.bf16.mxu0 0
        %765 = vmatpush1.bf16.msra.mxu0 0
        %766 = vmatprep.subr.bf16.mxu0 0
        %767 = vmatpush1.bf16.msra.mxu0 0
        %768 = vmatprep.subr.bf16.mxu0 0
        %769 = vmatpush1.bf16.msra.mxu0 0
        %770 = vmatprep.subr.bf16.mxu0 0
        %771 = vmatpush1.bf16.msra.mxu0 %v368
        %772 = vmatprep.subr.bf16.mxu0 0
        %773 = vmatpush1.bf16.msra.mxu0 %v360
        %774 = vmatprep.subr.bf16.mxu0 0
        %775 = vmatpush1.bf16.msra.mxu0 %v359
        %776 = vmatprep.subr.bf16.mxu0 0
        %777 = vmatpush2.bf16.msra.mxu0 0
        %778 = vmatprep.subr.bf16.mxu0 0
        %779 = vmatpush2.bf16.msra.mxu0 0
        %780 = vmatprep.subr.bf16.mxu0 0
        %781 = vmatpush2.bf16.msra.mxu0 0
        %782 = vmatprep.subr.bf16.mxu0 0
        %783 = vmatpush2.bf16.msra.mxu0 0
        %784 = vmatprep.subr.bf16.mxu0 0
        %785 = vmatpush2.bf16.msra.mxu0 0
        %786 = vmatprep.subr.bf16.mxu0 0
        %787 = vmatpush2.bf16.msra.mxu0 0
        %788 = vmatprep.subr.bf16.mxu0 0
        %789 = vmatpush2.bf16.msra.mxu0 0
        %790 = vmatprep.subr.bf16.mxu0 0
        %791 = vmatpush2.bf16.msra.mxu0 0
        %792 = vmatprep.mubr.bf16.mxu0 0
        %793 = vmatmul.mubr.bf16.gmra.mxu0 %v758
        %v794 = vpop.f32.mrf.mxu0
        %v795 = vadd.f32 %v752, %v794
        %v796 = vpop.f32.mrf.mxu0
        %v797 = vpop.f32.mrf.mxu0
        %v798 = vpop.f32.mrf.mxu0
        %799 = vdwg.mxu0
        %v800 = vadd.f32 %v795, %v258
        %v801 = vtanh.pop %v800
        %v802 = vadd.f32 %v795, %v709
        %v803 = vadd.f32 %v802, %v711
        %v804 = vsub.f32 -inf, %v803
        %v805 = vmul.f32 %v804, 1.442695
        %v806 = vpow.pop %v805
        %v807 = vsub.f32 %v803, %v803
        %v808 = vmul.f32 %v807, 1.442695
        %v809 = vpow.pop %v808
        %v810 = vmul.f32 %v806, 0.0
        %v811 = vadd.f32 %v810, %v809
        %813 = vset.pattern.permute.xlu0 32
        %814 = vperm.xlu0 %813, %v806
        %v815 = vpop.permute.xlu0 %814
        %v817 = vmul.f32 %v815, 0.0
        %819 = vset.pattern.permute.xlu0 32
        %820 = vperm.xlu0 %819, %v809
        %v821 = vpop.permute.xlu0 %820
        %v823 = vmul.f32 %v821, %v801
        %v824 = vadd.f32 %v817, %v823
        %v825 = vmul.f32 %v809, %v803
        %v826 = vadd.f32 %v810, %v825
        %v827 = vld [vmem:[%s450] sm:$0xff]
        %v828 = vrot.slane %v827, 2
        %v829 = vpack.c.bf16 %v827, %v827
        %v830 = vpack.c.bf16 %v828, %v828
        %v832 = vsel %vm299, %v830, 0
        %834 = vmatprep.subr.bf16.mxu0 0
        %835 = vmatpush1.bf16.msra.mxu0 0
        %836 = vmatprep.subr.bf16.mxu0 0
        %837 = vmatpush1.bf16.msra.mxu0 0
        %838 = vmatprep.subr.bf16.mxu0 0
        %839 = vmatpush1.bf16.msra.mxu0 0
        %840 = vmatprep.subr.bf16.mxu0 0
        %841 = vmatpush1.bf16.msra.mxu0 0
        %842 = vmatprep.subr.bf16.mxu0 0
        %843 = vmatpush1.bf16.msra.mxu0 0
        %844 = vmatprep.subr.bf16.mxu0 0
        %845 = vmatpush1.bf16.msra.mxu0 %v307
        %846 = vmatprep.subr.bf16.mxu0 0
        %847 = vmatpush1.bf16.msra.mxu0 %v295
        %848 = vmatprep.subr.bf16.mxu0 0
        %849 = vmatpush1.bf16.msra.mxu0 %v294
        %850 = vmatprep.subr.bf16.mxu0 0
        %851 = vmatpush2.bf16.msra.mxu0 0
        %852 = vmatprep.subr.bf16.mxu0 0
        %853 = vmatpush2.bf16.msra.mxu0 0
        %854 = vmatprep.subr.bf16.mxu0 0
        %855 = vmatpush2.bf16.msra.mxu0 0
        %856 = vmatprep.subr.bf16.mxu0 0
        %857 = vmatpush2.bf16.msra.mxu0 0
        %858 = vmatprep.subr.bf16.mxu0 0
        %859 = vmatpush2.bf16.msra.mxu0 0
        %860 = vmatprep.subr.bf16.mxu0 0
        %861 = vmatpush2.bf16.msra.mxu0 0
        %862 = vmatprep.subr.bf16.mxu0 0
        %863 = vmatpush2.bf16.msra.mxu0 0
        %864 = vmatprep.subr.bf16.mxu0 0
        %865 = vmatpush2.bf16.msra.mxu0 0
        %866 = vmatprep.mubr.bf16.mxu0 0
        %867 = vmatmul.mubr.bf16.gmra.mxu0 %v832
        %v868 = vpop.f32.mrf.mxu0
        %v869 = vadd.f32 0.0, %v868
        %v870 = vpop.f32.mrf.mxu0
        %v871 = vpop.f32.mrf.mxu0
        %v872 = vpop.f32.mrf.mxu0
        %873 = vdwg.mxu0
        %v875 = vsel %vm299, %v829, 0
        %877 = vmatprep.subr.bf16.mxu0 0
        %878 = vmatpush1.bf16.msra.mxu0 0
        %879 = vmatprep.subr.bf16.mxu0 0
        %880 = vmatpush1.bf16.msra.mxu0 0
        %881 = vmatprep.subr.bf16.mxu0 0
        %882 = vmatpush1.bf16.msra.mxu0 0
        %883 = vmatprep.subr.bf16.mxu0 0
        %884 = vmatpush1.bf16.msra.mxu0 0
        %885 = vmatprep.subr.bf16.mxu0 0
        %886 = vmatpush1.bf16.msra.mxu0 0
        %887 = vmatprep.subr.bf16.mxu0 0
        %888 = vmatpush1.bf16.msra.mxu0 %v368
        %889 = vmatprep.subr.bf16.mxu0 0
        %890 = vmatpush1.bf16.msra.mxu0 %v360
        %891 = vmatprep.subr.bf16.mxu0 0
        %892 = vmatpush1.bf16.msra.mxu0 %v359
        %893 = vmatprep.subr.bf16.mxu0 0
        %894 = vmatpush2.bf16.msra.mxu0 0
        %895 = vmatprep.subr.bf16.mxu0 0
        %896 = vmatpush2.bf16.msra.mxu0 0
        %897 = vmatprep.subr.bf16.mxu0 0
        %898 = vmatpush2.bf16.msra.mxu0 0
        %899 = vmatprep.subr.bf16.mxu0 0
        %900 = vmatpush2.bf16.msra.mxu0 0
        %901 = vmatprep.subr.bf16.mxu0 0
        %902 = vmatpush2.bf16.msra.mxu0 0
        %903 = vmatprep.subr.bf16.mxu0 0
        %904 = vmatpush2.bf16.msra.mxu0 0
        %905 = vmatprep.subr.bf16.mxu0 0
        %906 = vmatpush2.bf16.msra.mxu0 0
        %907 = vmatprep.subr.bf16.mxu0 0
        %908 = vmatpush2.bf16.msra.mxu0 0
        %909 = vmatprep.mubr.bf16.mxu0 0
        %910 = vmatmul.mubr.bf16.gmra.mxu0 %v875
        %v911 = vpop.f32.mrf.mxu0
        %v912 = vadd.f32 %v869, %v911
        %v913 = vpop.f32.mrf.mxu0
        %v914 = vpop.f32.mrf.mxu0
        %v915 = vpop.f32.mrf.mxu0
        %916 = vdwg.mxu0
        %v917 = vadd.f32 %v912, %v258
        %v918 = vtanh.pop %v917
        %v919 = vadd.f32 %v912, %v827
        %v920 = vadd.f32 %v919, %v828
        %v921 = vmax.f32 %v803, %v920
        %v922 = vsub.f32 %v803, %v921
        %v923 = vmul.f32 %v922, 1.442695
        %v924 = vpow.pop %v923
        %v925 = vsub.f32 %v920, %v921
        %v926 = vmul.f32 %v925, 1.442695
        %v927 = vpow.pop %v926
        %v928 = vmul.f32 %v924, %v811
        %v929 = vadd.f32 %v928, %v927
        %931 = vset.pattern.permute.xlu0 32
        %932 = vperm.xlu0 %931, %v924
        %v933 = vpop.permute.xlu0 %932
        %v935 = vmul.f32 %v933, %v824
        %937 = vset.pattern.permute.xlu0 32
        %938 = vperm.xlu0 %937, %v927
        %v939 = vpop.permute.xlu0 %938
        %v941 = vmul.f32 %v939, %v918
        %v942 = vadd.f32 %v935, %v941
        %v943 = vmul.f32 %v924, %v826
        %v944 = vmul.f32 %v927, %v920
        %v945 = vadd.f32 %v943, %v944
        %v946 = vrot.slane %v709, 3
        %v947 = vpack.c.bf16 %v710, %v710
        %v948 = vpack.c.bf16 %v946, %v946
        %v950 = vsel %vm299, %v948, 0
        %952 = vmatprep.subr.bf16.mxu0 0
        %953 = vmatpush1.bf16.msra.mxu0 0
        %954 = vmatprep.subr.bf16.mxu0 0
        %955 = vmatpush1.bf16.msra.mxu0 0
        %956 = vmatprep.subr.bf16.mxu0 0
        %957 = vmatpush1.bf16.msra.mxu0 0
        %958 = vmatprep.subr.bf16.mxu0 0
        %959 = vmatpush1.bf16.msra.mxu0 0
        %960 = vmatprep.subr.bf16.mxu0 0
        %961 = vmatpush1.bf16.msra.mxu0 0
        %962 = vmatprep.subr.bf16.mxu0 0
        %963 = vmatpush1.bf16.msra.mxu0 %v307
        %964 = vmatprep.subr.bf16.mxu0 0
        %965 = vmatpush1.bf16.msra.mxu0 %v295
        %966 = vmatprep.subr.bf16.mxu0 0
        %967 = vmatpush1.bf16.msra.mxu0 %v294
        %968 = vmatprep.subr.bf16.mxu0 0
        %969 = vmatpush2.bf16.msra.mxu0 0
        %970 = vmatprep.subr.bf16.mxu0 0
        %971 = vmatpush2.bf16.msra.mxu0 0
        %972 = vmatprep.subr.bf16.mxu0 0
        %973 = vmatpush2.bf16.msra.mxu0 0
        %974 = vmatprep.subr.bf16.mxu0 0
        %975 = vmatpush2.bf16.msra.mxu0 0
        %976 = vmatprep.subr.bf16.mxu0 0
        %977 = vmatpush2.bf16.msra.mxu0 0
        %978 = vmatprep.subr.bf16.mxu0 0
        %979 = vmatpush2.bf16.msra.mxu0 0
        %980 = vmatprep.subr.bf16.mxu0 0
        %981 = vmatpush2.bf16.msra.mxu0 0
        %982 = vmatprep.subr.bf16.mxu0 0
        %983 = vmatpush2.bf16.msra.mxu0 0
        %984 = vmatprep.mubr.bf16.mxu0 0
        %985 = vmatmul.mubr.bf16.gmra.mxu0 %v950
        %v986 = vpop.f32.mrf.mxu0
        %v987 = vadd.f32 0.0, %v986
        %v988 = vpop.f32.mrf.mxu0
        %v989 = vpop.f32.mrf.mxu0
        %v990 = vpop.f32.mrf.mxu0
        %991 = vdwg.mxu0
        %v993 = vsel %vm299, %v947, 0
        %995 = vmatprep.subr.bf16.mxu0 0
        %996 = vmatpush1.bf16.msra.mxu0 0
        %997 = vmatprep.subr.bf16.mxu0 0
        %998 = vmatpush1.bf16.msra.mxu0 0
        %999 = vmatprep.subr.bf16.mxu0 0
        %1000 = vmatpush1.bf16.msra.mxu0 0
        %1001 = vmatprep.subr.bf16.mxu0 0
        %1002 = vmatpush1.bf16.msra.mxu0 0
        %1003 = vmatprep.subr.bf16.mxu0 0
        %1004 = vmatpush1.bf16.msra.mxu0 0
        %1005 = vmatprep.subr.bf16.mxu0 0
        %1006 = vmatpush1.bf16.msra.mxu0 %v368
        %1007 = vmatprep.subr.bf16.mxu0 0
        %1008 = vmatpush1.bf16.msra.mxu0 %v360
        %1009 = vmatprep.subr.bf16.mxu0 0
        %1010 = vmatpush1.bf16.msra.mxu0 %v359
        %1011 = vmatprep.subr.bf16.mxu0 0
        %1012 = vmatpush2.bf16.msra.mxu0 0
        %1013 = vmatprep.subr.bf16.mxu0 0
        %1014 = vmatpush2.bf16.msra.mxu0 0
        %1015 = vmatprep.subr.bf16.mxu0 0
        %1016 = vmatpush2.bf16.msra.mxu0 0
        %1017 = vmatprep.subr.bf16.mxu0 0
        %1018 = vmatpush2.bf16.msra.mxu0 0
        %1019 = vmatprep.subr.bf16.mxu0 0
        %1020 = vmatpush2.bf16.msra.mxu0 0
        %1021 = vmatprep.subr.bf16.mxu0 0
        %1022 = vmatpush2.bf16.msra.mxu0 0
        %1023 = vmatprep.subr.bf16.mxu0 0
        %1024 = vmatpush2.bf16.msra.mxu0 0
        %1025 = vmatprep.subr.bf16.mxu0 0
        %1026 = vmatpush2.bf16.msra.mxu0 0
        %1027 = vmatprep.mubr.bf16.mxu0 0
        %1028 = vmatmul.mubr.bf16.gmra.mxu0 %v993
        %v1029 = vpop.f32.mrf.mxu0
        %v1030 = vadd.f32 %v987, %v1029
        %v1031 = vpop.f32.mrf.mxu0
        %v1032 = vpop.f32.mrf.mxu0
        %v1033 = vpop.f32.mrf.mxu0
        %1034 = vdwg.mxu0
        %v1035 = vadd.f32 %v1030, %v258
        %v1036 = vtanh.pop %v1035
        %v1037 = vadd.f32 %v1030, %v710
        %v1038 = vadd.f32 %v1037, %v946
        %v1039 = vmax.f32 %v921, %v1038
        %v1040 = vsub.f32 %v921, %v1039
        %v1041 = vmul.f32 %v1040, 1.442695
        %v1042 = vpow.pop %v1041
        %v1043 = vsub.f32 %v1038, %v1039
        %v1044 = vmul.f32 %v1043, 1.442695
        %v1045 = vpow.pop %v1044
        %v1046 = vmul.f32 %v1042, %v929
        %v1047 = vadd.f32 %v1046, %v1045
        %1049 = vset.pattern.permute.xlu0 32
        %1050 = vperm.xlu0 %1049, %v1042
        %v1051 = vpop.permute.xlu0 %1050
        %v1053 = vmul.f32 %v1051, %v942
        %1055 = vset.pattern.permute.xlu0 32
        %1056 = vperm.xlu0 %1055, %v1045
        %v1057 = vpop.permute.xlu0 %1056
        %v1059 = vmul.f32 %v1057, %v1036
        %v1060 = vadd.f32 %v1053, %v1059
        %v1061 = vmul.f32 %v1042, %v945
        %v1062 = vmul.f32 %v1045, %v1038
        %v1063 = vadd.f32 %v1061, %v1062
        %v1064 = vrcp.pop %v1047
        %vm1065 = vcmp.lt.s32.totalorder %v273, 5
        %1067 = vset.pattern.permute.xlu0 32
        %1068 = vperm.xlu0 %1067, %v1064
        %v1069 = vpop.permute.xlu0 %1068
        %v1071 = vmul.f32 %v1060, %v1069
        %v1072 = vsel %vm1065, 1, 0
        %vm1073 = vcmp.eq.s32.totalorder %v1072, 1
        %v1074 = vsel %vm1073, %v1071, 0.0
        %v1075 = vmul.f32 %v1063, %v1064
        %v1076 = vsel %vm1065, %v1075, 0.0
        %s1077 = scalar_lea.vmem [#allocation2], 24
        %1078 = vst.msk [vmem:[%s1077] sm:$0xff] %vm275, %v1074
        %1079 = vst.msk [vmem:[%s1077] sm:$0xff] %vm277, %v1076
        %s1080 = scalar_lea.vmem %s241, 24 [#allocation9]
        %1081 = vst.msk [vmem:[%s1080] sm:$0xff] %vm275, %v1074
        %v1082 = vld [vmem:[#allocation2] sm:$0xff]
        %v1083 = vld [vmem:[%s1077] sm:$0xff]
        %v1084 = vrot.slane %v1083, 1
        %v1085 = vpack.c.bf16 %v1082, %v1082
        %v1086 = vpack.c.bf16 %v1084, %v1084
        %v1088 = vsel %vm299, %v1086, 0
        %1090 = vmatprep.subr.bf16.mxu0 0
        %1091 = vmatpush1.bf16.msra.mxu0 0
        %1092 = vmatprep.subr.bf16.mxu0 0
        %1093 = vmatpush1.bf16.msra.mxu0 0
        %1094 = vmatprep.subr.bf16.mxu0 0
        %1095 = vmatpush1.bf16.msra.mxu0 0
        %1096 = vmatprep.subr.bf16.mxu0 0
        %1097 = vmatpush1.bf16.msra.mxu0 0
        %1098 = vmatprep.subr.bf16.mxu0 0
        %1099 = vmatpush1.bf16.msra.mxu0 0
        %1100 = vmatprep.subr.bf16.mxu0 0
        %1101 = vmatpush1.bf16.msra.mxu0 %v307
        %1102 = vmatprep.subr.bf16.mxu0 0
        %1103 = vmatpush1.bf16.msra.mxu0 %v295
        %1104 = vmatprep.subr.bf16.mxu0 0
        %1105 = vmatpush1.bf16.msra.mxu0 %v294
        %1106 = vmatprep.subr.bf16.mxu0 0
        %1107 = vmatpush2.bf16.msra.mxu0 0
        %1108 = vmatprep.subr.bf16.mxu0 0
        %1109 = vmatpush2.bf16.msra.mxu0 0
        %1110 = vmatprep.subr.bf16.mxu0 0
        %1111 = vmatpush2.bf16.msra.mxu0 0
        %1112 = vmatprep.subr.bf16.mxu0 0
        %1113 = vmatpush2.bf16.msra.mxu0 0
        %1114 = vmatprep.subr.bf16.mxu0 0
        %1115 = vmatpush2.bf16.msra.mxu0 0
        %1116 = vmatprep.subr.bf16.mxu0 0
        %1117 = vmatpush2.bf16.msra.mxu0 0
        %1118 = vmatprep.subr.bf16.mxu0 0
        %1119 = vmatpush2.bf16.msra.mxu0 0
        %1120 = vmatprep.subr.bf16.mxu0 0
        %1121 = vmatpush2.bf16.msra.mxu0 0
        %1122 = vmatprep.mubr.bf16.mxu0 0
        %1123 = vmatmul.mubr.bf16.gmra.mxu0 %v1088
        %v1124 = vpop.f32.mrf.mxu0
        %v1125 = vadd.f32 0.0, %v1124
        %v1126 = vpop.f32.mrf.mxu0
        %v1127 = vpop.f32.mrf.mxu0
        %v1128 = vpop.f32.mrf.mxu0
        %1129 = vdwg.mxu0
        %v1131 = vsel %vm299, %v1085, 0
        %1133 = vmatprep.subr.bf16.mxu0 0
        %1134 = vmatpush1.bf16.msra.mxu0 0
        %1135 = vmatprep.subr.bf16.mxu0 0
        %1136 = vmatpush1.bf16.msra.mxu0 0
        %1137 = vmatprep.subr.bf16.mxu0 0
        %1138 = vmatpush1.bf16.msra.mxu0 0
        %1139 = vmatprep.subr.bf16.mxu0 0
        %1140 = vmatpush1.bf16.msra.mxu0 0
        %1141 = vmatprep.subr.bf16.mxu0 0
        %1142 = vmatpush1.bf16.msra.mxu0 0
        %1143 = vmatprep.subr.bf16.mxu0 0
        %1144 = vmatpush1.bf16.msra.mxu0 %v368
        %1145 = vmatprep.subr.bf16.mxu0 0
        %1146 = vmatpush1.bf16.msra.mxu0 %v360
        %1147 = vmatprep.subr.bf16.mxu0 0
        %1148 = vmatpush1.bf16.msra.mxu0 %v359
        %1149 = vmatprep.subr.bf16.mxu0 0
        %1150 = vmatpush2.bf16.msra.mxu0 0
        %1151 = vmatprep.subr.bf16.mxu0 0
        %1152 = vmatpush2.bf16.msra.mxu0 0
        %1153 = vmatprep.subr.bf16.mxu0 0
        %1154 = vmatpush2.bf16.msra.mxu0 0
        %1155 = vmatprep.subr.bf16.mxu0 0
        %1156 = vmatpush2.bf16.msra.mxu0 0
        %1157 = vmatprep.subr.bf16.mxu0 0
        %1158 = vmatpush2.bf16.msra.mxu0 0
        %1159 = vmatprep.subr.bf16.mxu0 0
        %1160 = vmatpush2.bf16.msra.mxu0 0
        %1161 = vmatprep.subr.bf16.mxu0 0
        %1162 = vmatpush2.bf16.msra.mxu0 0
        %1163 = vmatprep.subr.bf16.mxu0 0
        %1164 = vmatpush2.bf16.msra.mxu0 0
        %1165 = vmatprep.mubr.bf16.mxu0 0
        %1166 = vmatmul.mubr.bf16.gmra.mxu0 %v1131
        %v1167 = vpop.f32.mrf.mxu0
        %v1168 = vadd.f32 %v1125, %v1167
        %v1169 = vpop.f32.mrf.mxu0
        %v1170 = vpop.f32.mrf.mxu0
        %v1171 = vpop.f32.mrf.mxu0
        %1172 = vdwg.mxu0
        %v1173 = vadd.f32 %v1168, %v258
        %v1174 = vtanh.pop %v1173
        %v1175 = vadd.f32 %v1168, %v1082
        %v1176 = vadd.f32 %v1175, %v1084
        %v1177 = vsub.f32 -inf, %v1176
        %v1178 = vmul.f32 %v1177, 1.442695
        %v1179 = vpow.pop %v1178
        %v1180 = vsub.f32 %v1176, %v1176
        %v1181 = vmul.f32 %v1180, 1.442695
        %v1182 = vpow.pop %v1181
        %v1183 = vmul.f32 %v1179, 0.0
        %v1184 = vadd.f32 %v1183, %v1182
        %1186 = vset.pattern.permute.xlu0 32
        %1187 = vperm.xlu0 %1186, %v1179
        %v1188 = vpop.permute.xlu0 %1187
        %v1190 = vmul.f32 %v1188, 0.0
        %1192 = vset.pattern.permute.xlu0 32
        %1193 = vperm.xlu0 %1192, %v1182
        %v1194 = vpop.permute.xlu0 %1193
        %v1196 = vmul.f32 %v1194, %v1174
        %v1197 = vadd.f32 %v1190, %v1196
        %v1198 = vmul.f32 %v1182, %v1176
        %v1199 = vadd.f32 %v1183, %v1198
        %v1200 = vld [vmem:[%s450] sm:$0xff]
        %v1201 = vld [vmem:[%s704] sm:$0xff]
        %v1202 = vrot.slane %v1201, 2
        %v1203 = vpack.c.bf16 %v1200, %v1200
        %v1204 = vpack.c.bf16 %v1202, %v1202
        %v1206 = vsel %vm299, %v1204, 0
        %1208 = vmatprep.subr.bf16.mxu0 0
        %1209 = vmatpush1.bf16.msra.mxu0 0
        %1210 = vmatprep.subr.bf16.mxu0 0
        %1211 = vmatpush1.bf16.msra.mxu0 0
        %1212 = vmatprep.subr.bf16.mxu0 0
        %1213 = vmatpush1.bf16.msra.mxu0 0
        %1214 = vmatprep.subr.bf16.mxu0 0
        %1215 = vmatpush1.bf16.msra.mxu0 0
        %1216 = vmatprep.subr.bf16.mxu0 0
        %1217 = vmatpush1.bf16.msra.mxu0 0
        %1218 = vmatprep.subr.bf16.mxu0 0
        %1219 = vmatpush1.bf16.msra.mxu0 %v307
        %1220 = vmatprep.subr.bf16.mxu0 0
        %1221 = vmatpush1.bf16.msra.mxu0 %v295
        %1222 = vmatprep.subr.bf16.mxu0 0
        %1223 = vmatpush1.bf16.msra.mxu0 %v294
        %1224 = vmatprep.subr.bf16.mxu0 0
        %1225 = vmatpush2.bf16.msra.mxu0 0
        %1226 = vmatprep.subr.bf16.mxu0 0
        %1227 = vmatpush2.bf16.msra.mxu0 0
        %1228 = vmatprep.subr.bf16.mxu0 0
        %1229 = vmatpush2.bf16.msra.mxu0 0
        %1230 = vmatprep.subr.bf16.mxu0 0
        %1231 = vmatpush2.bf16.msra.mxu0 0
        %1232 = vmatprep.subr.bf16.mxu0 0
        %1233 = vmatpush2.bf16.msra.mxu0 0
        %1234 = vmatprep.subr.bf16.mxu0 0
        %1235 = vmatpush2.bf16.msra.mxu0 0
        %1236 = vmatprep.subr.bf16.mxu0 0
        %1237 = vmatpush2.bf16.msra.mxu0 0
        %1238 = vmatprep.subr.bf16.mxu0 0
        %1239 = vmatpush2.bf16.msra.mxu0 0
        %1240 = vmatprep.mubr.bf16.mxu0 0
        %1241 = vmatmul.mubr.bf16.gmra.mxu0 %v1206
        %v1242 = vpop.f32.mrf.mxu0
        %v1243 = vadd.f32 0.0, %v1242
        %v1244 = vpop.f32.mrf.mxu0
        %v1245 = vpop.f32.mrf.mxu0
        %v1246 = vpop.f32.mrf.mxu0
        %1247 = vdwg.mxu0
        %v1249 = vsel %vm299, %v1203, 0
        %1251 = vmatprep.subr.bf16.mxu0 0
        %1252 = vmatpush1.bf16.msra.mxu0 0
        %1253 = vmatprep.subr.bf16.mxu0 0
        %1254 = vmatpush1.bf16.msra.mxu0 0
        %1255 = vmatprep.subr.bf16.mxu0 0
        %1256 = vmatpush1.bf16.msra.mxu0 0
        %1257 = vmatprep.subr.bf16.mxu0 0
        %1258 = vmatpush1.bf16.msra.mxu0 0
        %1259 = vmatprep.subr.bf16.mxu0 0
        %1260 = vmatpush1.bf16.msra.mxu0 0
        %1261 = vmatprep.subr.bf16.mxu0 0
        %1262 = vmatpush1.bf16.msra.mxu0 %v368
        %1263 = vmatprep.subr.bf16.mxu0 0
        %1264 = vmatpush1.bf16.msra.mxu0 %v360
        %1265 = vmatprep.subr.bf16.mxu0 0
        %1266 = vmatpush1.bf16.msra.mxu0 %v359
        %1267 = vmatprep.subr.bf16.mxu0 0
        %1268 = vmatpush2.bf16.msra.mxu0 0
        %1269 = vmatprep.subr.bf16.mxu0 0
        %1270 = vmatpush2.bf16.msra.mxu0 0
        %1271 = vmatprep.subr.bf16.mxu0 0
        %1272 = vmatpush2.bf16.msra.mxu0 0
        %1273 = vmatprep.subr.bf16.mxu0 0
        %1274 = vmatpush2.bf16.msra.mxu0 0
        %1275 = vmatprep.subr.bf16.mxu0 0
        %1276 = vmatpush2.bf16.msra.mxu0 0
        %1277 = vmatprep.subr.bf16.mxu0 0
        %1278 = vmatpush2.bf16.msra.mxu0 0
        %1279 = vmatprep.subr.bf16.mxu0 0
        %1280 = vmatpush2.bf16.msra.mxu0 0
        %1281 = vmatprep.subr.bf16.mxu0 0
        %1282 = vmatpush2.bf16.msra.mxu0 0
        %1283 = vmatprep.mubr.bf16.mxu0 0
        %1284 = vmatmul.mubr.bf16.gmra.mxu0 %v1249
        %v1285 = vpop.f32.mrf.mxu0
        %v1286 = vadd.f32 %v1243, %v1285
        %v1287 = vpop.f32.mrf.mxu0
        %v1288 = vpop.f32.mrf.mxu0
        %v1289 = vpop.f32.mrf.mxu0
        %1290 = vdwg.mxu0
        %v1291 = vadd.f32 %v1286, %v258
        %v1292 = vtanh.pop %v1291
        %v1293 = vadd.f32 %v1286, %v1200
        %v1294 = vadd.f32 %v1293, %v1202
        %v1295 = vmax.f32 %v1176, %v1294
        %v1296 = vsub.f32 %v1176, %v1295
        %v1297 = vmul.f32 %v1296, 1.442695
        %v1298 = vpow.pop %v1297
        %v1299 = vsub.f32 %v1294, %v1295
        %v1300 = vmul.f32 %v1299, 1.442695
        %v1301 = vpow.pop %v1300
        %v1302 = vmul.f32 %v1298, %v1184
        %v1303 = vadd.f32 %v1302, %v1301
        %1305 = vset.pattern.permute.xlu0 32
        %1306 = vperm.xlu0 %1305, %v1298
        %v1307 = vpop.permute.xlu0 %1306
        %v1309 = vmul.f32 %v1307, %v1197
        %1311 = vset.pattern.permute.xlu0 32
        %1312 = vperm.xlu0 %1311, %v1301
        %v1313 = vpop.permute.xlu0 %1312
        %v1315 = vmul.f32 %v1313, %v1292
        %v1316 = vadd.f32 %v1309, %v1315
        %v1317 = vmul.f32 %v1298, %v1199
        %v1318 = vmul.f32 %v1301, %v1294
        %v1319 = vadd.f32 %v1317, %v1318
        %v1320 = vrot.slane %v1200, 3
        %v1321 = vpack.c.bf16 %v1201, %v1201
        %v1322 = vpack.c.bf16 %v1320, %v1320
        %v1324 = vsel %vm299, %v1322, 0
        %1326 = vmatprep.subr.bf16.mxu0 0
        %1327 = vmatpush1.bf16.msra.mxu0 0
        %1328 = vmatprep.subr.bf16.mxu0 0
        %1329 = vmatpush1.bf16.msra.mxu0 0
        %1330 = vmatprep.subr.bf16.mxu0 0
        %1331 = vmatpush1.bf16.msra.mxu0 0
        %1332 = vmatprep.subr.bf16.mxu0 0
        %1333 = vmatpush1.bf16.msra.mxu0 0
        %1334 = vmatprep.subr.bf16.mxu0 0
        %1335 = vmatpush1.bf16.msra.mxu0 0
        %1336 = vmatprep.subr.bf16.mxu0 0
        %1337 = vmatpush1.bf16.msra.mxu0 %v307
        %1338 = vmatprep.subr.bf16.mxu0 0
        %1339 = vmatpush1.bf16.msra.mxu0 %v295
        %1340 = vmatprep.subr.bf16.mxu0 0
        %1341 = vmatpush1.bf16.msra.mxu0 %v294
        %1342 = vmatprep.subr.bf16.mxu0 0
        %1343 = vmatpush2.bf16.msra.mxu0 0
        %1344 = vmatprep.subr.bf16.mxu0 0
        %1345 = vmatpush2.bf16.msra.mxu0 0
        %1346 = vmatprep.subr.bf16.mxu0 0
        %1347 = vmatpush2.bf16.msra.mxu0 0
        %1348 = vmatprep.subr.bf16.mxu0 0
        %1349 = vmatpush2.bf16.msra.mxu0 0
        %1350 = vmatprep.subr.bf16.mxu0 0
        %1351 = vmatpush2.bf16.msra.mxu0 0
        %1352 = vmatprep.subr.bf16.mxu0 0
        %1353 = vmatpush2.bf16.msra.mxu0 0
        %1354 = vmatprep.subr.bf16.mxu0 0
        %1355 = vmatpush2.bf16.msra.mxu0 0
        %1356 = vmatprep.subr.bf16.mxu0 0
        %1357 = vmatpush2.bf16.msra.mxu0 0
        %1358 = vmatprep.mubr.bf16.mxu0 0
        %1359 = vmatmul.mubr.bf16.gmra.mxu0 %v1324
        %v1360 = vpop.f32.mrf.mxu0
        %v1361 = vadd.f32 0.0, %v1360
        %v1362 = vpop.f32.mrf.mxu0
        %v1363 = vpop.f32.mrf.mxu0
        %v1364 = vpop.f32.mrf.mxu0
        %1365 = vdwg.mxu0
        %v1367 = vsel %vm299, %v1321, 0
        %1369 = vmatprep.subr.bf16.mxu0 0
        %1370 = vmatpush1.bf16.msra.mxu0 0
        %1371 = vmatprep.subr.bf16.mxu0 0
        %1372 = vmatpush1.bf16.msra.mxu0 0
        %1373 = vmatprep.subr.bf16.mxu0 0
        %1374 = vmatpush1.bf16.msra.mxu0 0
        %1375 = vmatprep.subr.bf16.mxu0 0
        %1376 = vmatpush1.bf16.msra.mxu0 0
        %1377 = vmatprep.subr.bf16.mxu0 0
        %1378 = vmatpush1.bf16.msra.mxu0 0
        %1379 = vmatprep.subr.bf16.mxu0 0
        %1380 = vmatpush1.bf16.msra.mxu0 %v368
        %1381 = vmatprep.subr.bf16.mxu0 0
        %1382 = vmatpush1.bf16.msra.mxu0 %v360
        %1383 = vmatprep.subr.bf16.mxu0 0
        %1384 = vmatpush1.bf16.msra.mxu0 %v359
        %1385 = vmatprep.subr.bf16.mxu0 0
        %1386 = vmatpush2.bf16.msra.mxu0 0
        %1387 = vmatprep.subr.bf16.mxu0 0
        %1388 = vmatpush2.bf16.msra.mxu0 0
        %1389 = vmatprep.subr.bf16.mxu0 0
        %1390 = vmatpush2.bf16.msra.mxu0 0
        %1391 = vmatprep.subr.bf16.mxu0 0
        %1392 = vmatpush2.bf16.msra.mxu0 0
        %1393 = vmatprep.subr.bf16.mxu0 0
        %1394 = vmatpush2.bf16.msra.mxu0 0
        %1395 = vmatprep.subr.bf16.mxu0 0
        %1396 = vmatpush2.bf16.msra.mxu0 0
        %1397 = vmatprep.subr.bf16.mxu0 0
        %1398 = vmatpush2.bf16.msra.mxu0 0
        %1399 = vmatprep.subr.bf16.mxu0 0
        %1400 = vmatpush2.bf16.msra.mxu0 0
        %1401 = vmatprep.mubr.bf16.mxu0 0
        %1402 = vmatmul.mubr.bf16.gmra.mxu0 %v1367
        %v1403 = vpop.f32.mrf.mxu0
        %v1404 = vadd.f32 %v1361, %v1403
        %v1405 = vpop.f32.mrf.mxu0
        %v1406 = vpop.f32.mrf.mxu0
        %v1407 = vpop.f32.mrf.mxu0
        %1408 = vdwg.mxu0
        %v1409 = vadd.f32 %v1404, %v258
        %v1410 = vtanh.pop %v1409
        %v1411 = vadd.f32 %v1404, %v1201
        %v1412 = vadd.f32 %v1411, %v1320
        %v1413 = vmax.f32 %v1295, %v1412
        %v1414 = vsub.f32 %v1295, %v1413
        %v1415 = vmul.f32 %v1414, 1.442695
        %v1416 = vpow.pop %v1415
        %v1417 = vsub.f32 %v1412, %v1413
        %v1418 = vmul.f32 %v1417, 1.442695
        %v1419 = vpow.pop %v1418
        %v1420 = vmul.f32 %v1416, %v1303
        %v1421 = vadd.f32 %v1420, %v1419
        %1423 = vset.pattern.permute.xlu0 32
        %1424 = vperm.xlu0 %1423, %v1416
        %v1425 = vpop.permute.xlu0 %1424
        %v1427 = vmul.f32 %v1425, %v1316
        %1429 = vset.pattern.permute.xlu0 32
        %1430 = vperm.xlu0 %1429, %v1419
        %v1431 = vpop.permute.xlu0 %1430
        %v1433 = vmul.f32 %v1431, %v1410
        %v1434 = vadd.f32 %v1427, %v1433
        %v1435 = vmul.f32 %v1416, %v1319
        %v1436 = vmul.f32 %v1419, %v1412
        %v1437 = vadd.f32 %v1435, %v1436
        %v1438 = vrot.slane %v1082, 4
        %v1439 = vpack.c.bf16 %v1083, %v1083
        %v1440 = vpack.c.bf16 %v1438, %v1438
        %v1442 = vsel %vm299, %v1440, 0
        %1444 = vmatprep.subr.bf16.mxu0 0
        %1445 = vmatpush1.bf16.msra.mxu0 0
        %1446 = vmatprep.subr.bf16.mxu0 0
        %1447 = vmatpush1.bf16.msra.mxu0 0
        %1448 = vmatprep.subr.bf16.mxu0 0
        %1449 = vmatpush1.bf16.msra.mxu0 0
        %1450 = vmatprep.subr.bf16.mxu0 0
        %1451 = vmatpush1.bf16.msra.mxu0 0
        %1452 = vmatprep.subr.bf16.mxu0 0
        %1453 = vmatpush1.bf16.msra.mxu0 0
        %1454 = vmatprep.subr.bf16.mxu0 0
        %1455 = vmatpush1.bf16.msra.mxu0 %v307
        %1456 = vmatprep.subr.bf16.mxu0 0
        %1457 = vmatpush1.bf16.msra.mxu0 %v295
        %1458 = vmatprep.subr.bf16.mxu0 0
        %1459 = vmatpush1.bf16.msra.mxu0 %v294
        %1460 = vmatprep.subr.bf16.mxu0 0
        %1461 = vmatpush2.bf16.msra.mxu0 0
        %1462 = vmatprep.subr.bf16.mxu0 0
        %1463 = vmatpush2.bf16.msra.mxu0 0
        %1464 = vmatprep.subr.bf16.mxu0 0
        %1465 = vmatpush2.bf16.msra.mxu0 0
        %1466 = vmatprep.subr.bf16.mxu0 0
        %1467 = vmatpush2.bf16.msra.mxu0 0
        %1468 = vmatprep.subr.bf16.mxu0 0
        %1469 = vmatpush2.bf16.msra.mxu0 0
        %1470 = vmatprep.subr.bf16.mxu0 0
        %1471 = vmatpush2.bf16.msra.mxu0 0
        %1472 = vmatprep.subr.bf16.mxu0 0
        %1473 = vmatpush2.bf16.msra.mxu0 0
        %1474 = vmatprep.subr.bf16.mxu0 0
        %1475 = vmatpush2.bf16.msra.mxu0 0
        %1476 = vmatprep.mubr.bf16.mxu0 0
        %1477 = vmatmul.mubr.bf16.gmra.mxu0 %v1442
        %v1478 = vpop.f32.mrf.mxu0
        %v1479 = vadd.f32 0.0, %v1478
        %v1480 = vpop.f32.mrf.mxu0
        %v1481 = vpop.f32.mrf.mxu0
        %v1482 = vpop.f32.mrf.mxu0
        %1483 = vdwg.mxu0
        %v1485 = vsel %vm299, %v1439, 0
        %1487 = vmatprep.subr.bf16.mxu0 0
        %1488 = vmatpush1.bf16.msra.mxu0 0
        %1489 = vmatprep.subr.bf16.mxu0 0
        %1490 = vmatpush1.bf16.msra.mxu0 0
        %1491 = vmatprep.subr.bf16.mxu0 0
        %1492 = vmatpush1.bf16.msra.mxu0 0
        %1493 = vmatprep.subr.bf16.mxu0 0
        %1494 = vmatpush1.bf16.msra.mxu0 0
        %1495 = vmatprep.subr.bf16.mxu0 0
        %1496 = vmatpush1.bf16.msra.mxu0 0
        %1497 = vmatprep.subr.bf16.mxu0 0
        %1498 = vmatpush1.bf16.msra.mxu0 %v368
        %1499 = vmatprep.subr.bf16.mxu0 0
        %1500 = vmatpush1.bf16.msra.mxu0 %v360
        %1501 = vmatprep.subr.bf16.mxu0 0
        %1502 = vmatpush1.bf16.msra.mxu0 %v359
        %1503 = vmatprep.subr.bf16.mxu0 0
        %1504 = vmatpush2.bf16.msra.mxu0 0
        %1505 = vmatprep.subr.bf16.mxu0 0
        %1506 = vmatpush2.bf16.msra.mxu0 0
        %1507 = vmatprep.subr.bf16.mxu0 0
        %1508 = vmatpush2.bf16.msra.mxu0 0
        %1509 = vmatprep.subr.bf16.mxu0 0
        %1510 = vmatpush2.bf16.msra.mxu0 0
        %1511 = vmatprep.subr.bf16.mxu0 0
        %1512 = vmatpush2.bf16.msra.mxu0 0
        %1513 = vmatprep.subr.bf16.mxu0 0
        %1514 = vmatpush2.bf16.msra.mxu0 0
        %1515 = vmatprep.subr.bf16.mxu0 0
        %1516 = vmatpush2.bf16.msra.mxu0 0
        %1517 = vmatprep.subr.bf16.mxu0 0
        %1518 = vmatpush2.bf16.msra.mxu0 0
        %1519 = vmatprep.mubr.bf16.mxu0 0
        %1520 = vmatmul.mubr.bf16.gmra.mxu0 %v1485
        %v1521 = vpop.f32.mrf.mxu0
        %v1522 = vadd.f32 %v1479, %v1521
        %v1523 = vpop.f32.mrf.mxu0
        %v1524 = vpop.f32.mrf.mxu0
        %v1525 = vpop.f32.mrf.mxu0
        %1526 = vdwg.mxu0
        %v1527 = vadd.f32 %v1522, %v258
        %v1528 = vtanh.pop %v1527
        %v1529 = vadd.f32 %v1522, %v1083
        %v1530 = vadd.f32 %v1529, %v1438
        %v1531 = vmax.f32 %v1413, %v1530
        %v1532 = vsub.f32 %v1413, %v1531
        %v1533 = vmul.f32 %v1532, 1.442695
        %v1534 = vpow.pop %v1533
        %v1535 = vsub.f32 %v1530, %v1531
        %v1536 = vmul.f32 %v1535, 1.442695
        %v1537 = vpow.pop %v1536
        %v1538 = vmul.f32 %v1534, %v1421
        %v1539 = vadd.f32 %v1538, %v1537
        %1541 = vset.pattern.permute.xlu0 32
        %1542 = vperm.xlu0 %1541, %v1534
        %v1543 = vpop.permute.xlu0 %1542
        %v1545 = vmul.f32 %v1543, %v1434
        %1547 = vset.pattern.permute.xlu0 32
        %1548 = vperm.xlu0 %1547, %v1537
        %v1549 = vpop.permute.xlu0 %1548
        %v1551 = vmul.f32 %v1549, %v1528
        %v1552 = vadd.f32 %v1545, %v1551
        %v1553 = vmul.f32 %v1534, %v1437
        %v1554 = vmul.f32 %v1537, %v1530
        %v1555 = vadd.f32 %v1553, %v1554
        %v1556 = vrcp.pop %v1539
        %vm1557 = vcmp.lt.s32.totalorder %v273, 4
        %1559 = vset.pattern.permute.xlu0 32
        %1560 = vperm.xlu0 %1559, %v1556
        %v1561 = vpop.permute.xlu0 %1560
        %v1563 = vmul.f32 %v1552, %v1561
        %v1564 = vsel %vm1557, 1, 0
        %vm1565 = vcmp.eq.s32.totalorder %v1564, 1
        %v1566 = vsel %vm1565, %v1563, 0.0
        %v1567 = vmul.f32 %v1555, %v1556
        %v1568 = vsel %vm1557, %v1567, 0.0
        %s1569 = scalar_lea.vmem [#allocation2], 32
        %1570 = vst.msk [vmem:[%s1569] sm:$0xff] %vm275, %v1566
        %1571 = vst.msk [vmem:[%s1569] sm:$0xff] %vm277, %v1568
        %s1572 = scalar_lea.vmem %s241, 32 [#allocation9]
        %1573 = vst.msk [vmem:[%s1572] sm:$0xff] %vm275, %v1566
        %v1574 = vld [vmem:[#allocation2] sm:$0xff]
        %v1575 = vld [vmem:[%s1569] sm:$0xff]
        %v1576 = vrot.slane %v1575, 1
        %v1577 = vpack.c.bf16 %v1574, %v1574
        %v1578 = vpack.c.bf16 %v1576, %v1576
        %v1580 = vsel %vm299, %v1578, 0
        %1582 = vmatprep.subr.bf16.mxu0 0
        %1583 = vmatpush1.bf16.msra.mxu0 0
        %1584 = vmatprep.subr.bf16.mxu0 0
        %1585 = vmatpush1.bf16.msra.mxu0 0
        %1586 = vmatprep.subr.bf16.mxu0 0
        %1587 = vmatpush1.bf16.msra.mxu0 0
        %1588 = vmatprep.subr.bf16.mxu0 0
        %1589 = vmatpush1.bf16.msra.mxu0 0
        %1590 = vmatprep.subr.bf16.mxu0 0
        %1591 = vmatpush1.bf16.msra.mxu0 0
        %1592 = vmatprep.subr.bf16.mxu0 0
        %1593 = vmatpush1.bf16.msra.mxu0 %v307
        %1594 = vmatprep.subr.bf16.mxu0 0
        %1595 = vmatpush1.bf16.msra.mxu0 %v295
        %1596 = vmatprep.subr.bf16.mxu0 0
        %1597 = vmatpush1.bf16.msra.mxu0 %v294
        %1598 = vmatprep.subr.bf16.mxu0 0
        %1599 = vmatpush2.bf16.msra.mxu0 0
        %1600 = vmatprep.subr.bf16.mxu0 0
        %1601 = vmatpush2.bf16.msra.mxu0 0
        %1602 = vmatprep.subr.bf16.mxu0 0
        %1603 = vmatpush2.bf16.msra.mxu0 0
        %1604 = vmatprep.subr.bf16.mxu0 0
        %1605 = vmatpush2.bf16.msra.mxu0 0
        %1606 = vmatprep.subr.bf16.mxu0 0
        %1607 = vmatpush2.bf16.msra.mxu0 0
        %1608 = vmatprep.subr.bf16.mxu0 0
        %1609 = vmatpush2.bf16.msra.mxu0 0
        %1610 = vmatprep.subr.bf16.mxu0 0
        %1611 = vmatpush2.bf16.msra.mxu0 0
        %1612 = vmatprep.subr.bf16.mxu0 0
        %1613 = vmatpush2.bf16.msra.mxu0 0
        %1614 = vmatprep.mubr.bf16.mxu0 0
        %1615 = vmatmul.mubr.bf16.gmra.mxu0 %v1580
        %v1616 = vpop.f32.mrf.mxu0
        %v1617 = vadd.f32 0.0, %v1616
        %v1618 = vpop.f32.mrf.mxu0
        %v1619 = vpop.f32.mrf.mxu0
        %v1620 = vpop.f32.mrf.mxu0
        %1621 = vdwg.mxu0
        %v1623 = vsel %vm299, %v1577, 0
        %1625 = vmatprep.subr.bf16.mxu0 0
        %1626 = vmatpush1.bf16.msra.mxu0 0
        %1627 = vmatprep.subr.bf16.mxu0 0
        %1628 = vmatpush1.bf16.msra.mxu0 0
        %1629 = vmatprep.subr.bf16.mxu0 0
        %1630 = vmatpush1.bf16.msra.mxu0 0
        %1631 = vmatprep.subr.bf16.mxu0 0
        %1632 = vmatpush1.bf16.msra.mxu0 0
        %1633 = vmatprep.subr.bf16.mxu0 0
        %1634 = vmatpush1.bf16.msra.mxu0 0
        %1635 = vmatprep.subr.bf16.mxu0 0
        %1636 = vmatpush1.bf16.msra.mxu0 %v368
        %1637 = vmatprep.subr.bf16.mxu0 0
        %1638 = vmatpush1.bf16.msra.mxu0 %v360
        %1639 = vmatprep.subr.bf16.mxu0 0
        %1640 = vmatpush1.bf16.msra.mxu0 %v359
        %1641 = vmatprep.subr.bf16.mxu0 0
        %1642 = vmatpush2.bf16.msra.mxu0 0
        %1643 = vmatprep.subr.bf16.mxu0 0
        %1644 = vmatpush2.bf16.msra.mxu0 0
        %1645 = vmatprep.subr.bf16.mxu0 0
        %1646 = vmatpush2.bf16.msra.mxu0 0
        %1647 = vmatprep.subr.bf16.mxu0 0
        %1648 = vmatpush2.bf16.msra.mxu0 0
        %1649 = vmatprep.subr.bf16.mxu0 0
        %1650 = vmatpush2.bf16.msra.mxu0 0
        %1651 = vmatprep.subr.bf16.mxu0 0
        %1652 = vmatpush2.bf16.msra.mxu0 0
        %1653 = vmatprep.subr.bf16.mxu0 0
        %1654 = vmatpush2.bf16.msra.mxu0 0
        %1655 = vmatprep.subr.bf16.mxu0 0
        %1656 = vmatpush2.bf16.msra.mxu0 0
        %1657 = vmatprep.mubr.bf16.mxu0 0
        %1658 = vmatmul.mubr.bf16.gmra.mxu0 %v1623
        %v1659 = vpop.f32.mrf.mxu0
        %v1660 = vadd.f32 %v1617, %v1659
        %v1661 = vpop.f32.mrf.mxu0
        %v1662 = vpop.f32.mrf.mxu0
        %v1663 = vpop.f32.mrf.mxu0
        %1664 = vdwg.mxu0
        %v1665 = vadd.f32 %v1660, %v258
        %v1666 = vtanh.pop %v1665
        %v1667 = vadd.f32 %v1660, %v1574
        %v1668 = vadd.f32 %v1667, %v1576
        %v1669 = vsub.f32 -inf, %v1668
        %v1670 = vmul.f32 %v1669, 1.442695
        %v1671 = vpow.pop %v1670
        %v1672 = vsub.f32 %v1668, %v1668
        %v1673 = vmul.f32 %v1672, 1.442695
        %v1674 = vpow.pop %v1673
        %v1675 = vmul.f32 %v1671, 0.0
        %v1676 = vadd.f32 %v1675, %v1674
        %1678 = vset.pattern.permute.xlu0 32
        %1679 = vperm.xlu0 %1678, %v1671
        %v1680 = vpop.permute.xlu0 %1679
        %v1682 = vmul.f32 %v1680, 0.0
        %1684 = vset.pattern.permute.xlu0 32
        %1685 = vperm.xlu0 %1684, %v1674
        %v1686 = vpop.permute.xlu0 %1685
        %v1688 = vmul.f32 %v1686, %v1666
        %v1689 = vadd.f32 %v1682, %v1688
        %v1690 = vmul.f32 %v1674, %v1668
        %v1691 = vadd.f32 %v1675, %v1690
        %v1692 = vld [vmem:[%s450] sm:$0xff]
        %v1693 = vld [vmem:[%s1077] sm:$0xff]
        %v1694 = vrot.slane %v1693, 2
        %v1695 = vpack.c.bf16 %v1692, %v1692
        %v1696 = vpack.c.bf16 %v1694, %v1694
        %v1698 = vsel %vm299, %v1696, 0
        %1700 = vmatprep.subr.bf16.mxu0 0
        %1701 = vmatpush1.bf16.msra.mxu0 0
        %1702 = vmatprep.subr.bf16.mxu0 0
        %1703 = vmatpush1.bf16.msra.mxu0 0
        %1704 = vmatprep.subr.bf16.mxu0 0
        %1705 = vmatpush1.bf16.msra.mxu0 0
        %1706 = vmatprep.subr.bf16.mxu0 0
        %1707 = vmatpush1.bf16.msra.mxu0 0
        %1708 = vmatprep.subr.bf16.mxu0 0
        %1709 = vmatpush1.bf16.msra.mxu0 0
        %1710 = vmatprep.subr.bf16.mxu0 0
        %1711 = vmatpush1.bf16.msra.mxu0 %v307
        %1712 = vmatprep.subr.bf16.mxu0 0
        %1713 = vmatpush1.bf16.msra.mxu0 %v295
        %1714 = vmatprep.subr.bf16.mxu0 0
        %1715 = vmatpush1.bf16.msra.mxu0 %v294
        %1716 = vmatprep.subr.bf16.mxu0 0
        %1717 = vmatpush2.bf16.msra.mxu0 0
        %1718 = vmatprep.subr.bf16.mxu0 0
        %1719 = vmatpush2.bf16.msra.mxu0 0
        %1720 = vmatprep.subr.bf16.mxu0 0
        %1721 = vmatpush2.bf16.msra.mxu0 0
        %1722 = vmatprep.subr.bf16.mxu0 0
        %1723 = vmatpush2.bf16.msra.mxu0 0
        %1724 = vmatprep.subr.bf16.mxu0 0
        %1725 = vmatpush2.bf16.msra.mxu0 0
        %1726 = vmatprep.subr.bf16.mxu0 0
        %1727 = vmatpush2.bf16.msra.mxu0 0
        %1728 = vmatprep.subr.bf16.mxu0 0
        %1729 = vmatpush2.bf16.msra.mxu0 0
        %1730 = vmatprep.subr.bf16.mxu0 0
        %1731 = vmatpush2.bf16.msra.mxu0 0
        %1732 = vmatprep.mubr.bf16.mxu0 0
        %1733 = vmatmul.mubr.bf16.gmra.mxu0 %v1698
        %v1734 = vpop.f32.mrf.mxu0
        %v1735 = vadd.f32 0.0, %v1734
        %v1736 = vpop.f32.mrf.mxu0
        %v1737 = vpop.f32.mrf.mxu0
        %v1738 = vpop.f32.mrf.mxu0
        %1739 = vdwg.mxu0
        %v1741 = vsel %vm299, %v1695, 0
        %1743 = vmatprep.subr.bf16.mxu0 0
        %1744 = vmatpush1.bf16.msra.mxu0 0
        %1745 = vmatprep.subr.bf16.mxu0 0
        %1746 = vmatpush1.bf16.msra.mxu0 0
        %1747 = vmatprep.subr.bf16.mxu0 0
        %1748 = vmatpush1.bf16.msra.mxu0 0
        %1749 = vmatprep.subr.bf16.mxu0 0
        %1750 = vmatpush1.bf16.msra.mxu0 0
        %1751 = vmatprep.subr.bf16.mxu0 0
        %1752 = vmatpush1.bf16.msra.mxu0 0
        %1753 = vmatprep.subr.bf16.mxu0 0
        %1754 = vmatpush1.bf16.msra.mxu0 %v368
        %1755 = vmatprep.subr.bf16.mxu0 0
        %1756 = vmatpush1.bf16.msra.mxu0 %v360
        %1757 = vmatprep.subr.bf16.mxu0 0
        %1758 = vmatpush1.bf16.msra.mxu0 %v359
        %1759 = vmatprep.subr.bf16.mxu0 0
        %1760 = vmatpush2.bf16.msra.mxu0 0
        %1761 = vmatprep.subr.bf16.mxu0 0
        %1762 = vmatpush2.bf16.msra.mxu0 0
        %1763 = vmatprep.subr.bf16.mxu0 0
        %1764 = vmatpush2.bf16.msra.mxu0 0
        %1765 = vmatprep.subr.bf16.mxu0 0
        %1766 = vmatpush2.bf16.msra.mxu0 0
        %1767 = vmatprep.subr.bf16.mxu0 0
        %1768 = vmatpush2.bf16.msra.mxu0 0
        %1769 = vmatprep.subr.bf16.mxu0 0
        %1770 = vmatpush2.bf16.msra.mxu0 0
        %1771 = vmatprep.subr.bf16.mxu0 0
        %1772 = vmatpush2.bf16.msra.mxu0 0
        %1773 = vmatprep.subr.bf16.mxu0 0
        %1774 = vmatpush2.bf16.msra.mxu0 0
        %1775 = vmatprep.mubr.bf16.mxu0 0
        %1776 = vmatmul.mubr.bf16.gmra.mxu0 %v1741
        %v1777 = vpop.f32.mrf.mxu0
        %v1778 = vadd.f32 %v1735, %v1777
        %v1779 = vpop.f32.mrf.mxu0
        %v1780 = vpop.f32.mrf.mxu0
        %v1781 = vpop.f32.mrf.mxu0
        %1782 = vdwg.mxu0
        %v1783 = vadd.f32 %v1778, %v258
        %v1784 = vtanh.pop %v1783
        %v1785 = vadd.f32 %v1778, %v1692
        %v1786 = vadd.f32 %v1785, %v1694
        %v1787 = vmax.f32 %v1668, %v1786
        %v1788 = vsub.f32 %v1668, %v1787
        %v1789 = vmul.f32 %v1788, 1.442695
        %v1790 = vpow.pop %v1789
        %v1791 = vsub.f32 %v1786, %v1787
        %v1792 = vmul.f32 %v1791, 1.442695
        %v1793 = vpow.pop %v1792
        %v1794 = vmul.f32 %v1790, %v1676
        %v1795 = vadd.f32 %v1794, %v1793
        %1797 = vset.pattern.permute.xlu0 32
        %1798 = vperm.xlu0 %1797, %v1790
        %v1799 = vpop.permute.xlu0 %1798
        %v1801 = vmul.f32 %v1799, %v1689
        %1803 = vset.pattern.permute.xlu0 32
        %1804 = vperm.xlu0 %1803, %v1793
        %v1805 = vpop.permute.xlu0 %1804
        %v1807 = vmul.f32 %v1805, %v1784
        %v1808 = vadd.f32 %v1801, %v1807
        %v1809 = vmul.f32 %v1790, %v1691
        %v1810 = vmul.f32 %v1793, %v1786
        %v1811 = vadd.f32 %v1809, %v1810
        %v1812 = vld [vmem:[%s704] sm:$0xff]
        %v1813 = vrot.slane %v1812, 3
        %v1814 = vpack.c.bf16 %v1812, %v1812
        %v1815 = vpack.c.bf16 %v1813, %v1813
        %v1817 = vsel %vm299, %v1815, 0
        %1819 = vmatprep.subr.bf16.mxu0 0
        %1820 = vmatpush1.bf16.msra.mxu0 0
        %1821 = vmatprep.subr.bf16.mxu0 0
        %1822 = vmatpush1.bf16.msra.mxu0 0
        %1823 = vmatprep.subr.bf16.mxu0 0
        %1824 = vmatpush1.bf16.msra.mxu0 0
        %1825 = vmatprep.subr.bf16.mxu0 0
        %1826 = vmatpush1.bf16.msra.mxu0 0
        %1827 = vmatprep.subr.bf16.mxu0 0
        %1828 = vmatpush1.bf16.msra.mxu0 0
        %1829 = vmatprep.subr.bf16.mxu0 0
        %1830 = vmatpush1.bf16.msra.mxu0 %v307
        %1831 = vmatprep.subr.bf16.mxu0 0
        %1832 = vmatpush1.bf16.msra.mxu0 %v295
        %1833 = vmatprep.subr.bf16.mxu0 0
        %1834 = vmatpush1.bf16.msra.mxu0 %v294
        %1835 = vmatprep.subr.bf16.mxu0 0
        %1836 = vmatpush2.bf16.msra.mxu0 0
        %1837 = vmatprep.subr.bf16.mxu0 0
        %1838 = vmatpush2.bf16.msra.mxu0 0
        %1839 = vmatprep.subr.bf16.mxu0 0
        %1840 = vmatpush2.bf16.msra.mxu0 0
        %1841 = vmatprep.subr.bf16.mxu0 0
        %1842 = vmatpush2.bf16.msra.mxu0 0
        %1843 = vmatprep.subr.bf16.mxu0 0
        %1844 = vmatpush2.bf16.msra.mxu0 0
        %1845 = vmatprep.subr.bf16.mxu0 0
        %1846 = vmatpush2.bf16.msra.mxu0 0
        %1847 = vmatprep.subr.bf16.mxu0 0
        %1848 = vmatpush2.bf16.msra.mxu0 0
        %1849 = vmatprep.subr.bf16.mxu0 0
        %1850 = vmatpush2.bf16.msra.mxu0 0
        %1851 = vmatprep.mubr.bf16.mxu0 0
        %1852 = vmatmul.mubr.bf16.gmra.mxu0 %v1817
        %v1853 = vpop.f32.mrf.mxu0
        %v1854 = vadd.f32 0.0, %v1853
        %v1855 = vpop.f32.mrf.mxu0
        %v1856 = vpop.f32.mrf.mxu0
        %v1857 = vpop.f32.mrf.mxu0
        %1858 = vdwg.mxu0
        %v1860 = vsel %vm299, %v1814, 0
        %1862 = vmatprep.subr.bf16.mxu0 0
        %1863 = vmatpush1.bf16.msra.mxu0 0
        %1864 = vmatprep.subr.bf16.mxu0 0
        %1865 = vmatpush1.bf16.msra.mxu0 0
        %1866 = vmatprep.subr.bf16.mxu0 0
        %1867 = vmatpush1.bf16.msra.mxu0 0
        %1868 = vmatprep.subr.bf16.mxu0 0
        %1869 = vmatpush1.bf16.msra.mxu0 0
        %1870 = vmatprep.subr.bf16.mxu0 0
        %1871 = vmatpush1.bf16.msra.mxu0 0
        %1872 = vmatprep.subr.bf16.mxu0 0
        %1873 = vmatpush1.bf16.msra.mxu0 %v368
        %1874 = vmatprep.subr.bf16.mxu0 0
        %1875 = vmatpush1.bf16.msra.mxu0 %v360
        %1876 = vmatprep.subr.bf16.mxu0 0
        %1877 = vmatpush1.bf16.msra.mxu0 %v359
        %1878 = vmatprep.subr.bf16.mxu0 0
        %1879 = vmatpush2.bf16.msra.mxu0 0
        %1880 = vmatprep.subr.bf16.mxu0 0
        %1881 = vmatpush2.bf16.msra.mxu0 0
        %1882 = vmatprep.subr.bf16.mxu0 0
        %1883 = vmatpush2.bf16.msra.mxu0 0
        %1884 = vmatprep.subr.bf16.mxu0 0
        %1885 = vmatpush2.bf16.msra.mxu0 0
        %1886 = vmatprep.subr.bf16.mxu0 0
        %1887 = vmatpush2.bf16.msra.mxu0 0
        %1888 = vmatprep.subr.bf16.mxu0 0
        %1889 = vmatpush2.bf16.msra.mxu0 0
        %1890 = vmatprep.subr.bf16.mxu0 0
        %1891 = vmatpush2.bf16.msra.mxu0 0
        %1892 = vmatprep.subr.bf16.mxu0 0
        %1893 = vmatpush2.bf16.msra.mxu0 0
        %1894 = vmatprep.mubr.bf16.mxu0 0
        %1895 = vmatmul.mubr.bf16.gmra.mxu0 %v1860
        %v1896 = vpop.f32.mrf.mxu0
        %v1897 = vadd.f32 %v1854, %v1896
        %v1898 = vpop.f32.mrf.mxu0
        %v1899 = vpop.f32.mrf.mxu0
        %v1900 = vpop.f32.mrf.mxu0
        %1901 = vdwg.mxu0
        %v1902 = vadd.f32 %v1897, %v258
        %v1903 = vtanh.pop %v1902
        %v1904 = vadd.f32 %v1897, %v1812
        %v1905 = vadd.f32 %v1904, %v1813
        %v1906 = vmax.f32 %v1787, %v1905
        %v1907 = vsub.f32 %v1787, %v1906
        %v1908 = vmul.f32 %v1907, 1.442695
        %v1909 = vpow.pop %v1908
        %v1910 = vsub.f32 %v1905, %v1906
        %v1911 = vmul.f32 %v1910, 1.442695
        %v1912 = vpow.pop %v1911
        %v1913 = vmul.f32 %v1909, %v1795
        %v1914 = vadd.f32 %v1913, %v1912
        %1916 = vset.pattern.permute.xlu0 32
        %1917 = vperm.xlu0 %1916, %v1909
        %v1918 = vpop.permute.xlu0 %1917
        %v1920 = vmul.f32 %v1918, %v1808
        %1922 = vset.pattern.permute.xlu0 32
        %1923 = vperm.xlu0 %1922, %v1912
        %v1924 = vpop.permute.xlu0 %1923
        %v1926 = vmul.f32 %v1924, %v1903
        %v1927 = vadd.f32 %v1920, %v1926
        %v1928 = vmul.f32 %v1909, %v1811
        %v1929 = vmul.f32 %v1912, %v1905
        %v1930 = vadd.f32 %v1928, %v1929
        %v1931 = vrot.slane %v1692, 4
        %v1932 = vpack.c.bf16 %v1693, %v1693
        %v1933 = vpack.c.bf16 %v1931, %v1931
        %v1935 = vsel %vm299, %v1933, 0
        %1937 = vmatprep.subr.bf16.mxu0 0
        %1938 = vmatpush1.bf16.msra.mxu0 0
        %1939 = vmatprep.subr.bf16.mxu0 0
        %1940 = vmatpush1.bf16.msra.mxu0 0
        %1941 = vmatprep.subr.bf16.mxu0 0
        %1942 = vmatpush1.bf16.msra.mxu0 0
        %1943 = vmatprep.subr.bf16.mxu0 0
        %1944 = vmatpush1.bf16.msra.mxu0 0
        %1945 = vmatprep.subr.bf16.mxu0 0
        %1946 = vmatpush1.bf16.msra.mxu0 0
        %1947 = vmatprep.subr.bf16.mxu0 0
        %1948 = vmatpush1.bf16.msra.mxu0 %v307
        %1949 = vmatprep.subr.bf16.mxu0 0
        %1950 = vmatpush1.bf16.msra.mxu0 %v295
        %1951 = vmatprep.subr.bf16.mxu0 0
        %1952 = vmatpush1.bf16.msra.mxu0 %v294
        %1953 = vmatprep.subr.bf16.mxu0 0
        %1954 = vmatpush2.bf16.msra.mxu0 0
        %1955 = vmatprep.subr.bf16.mxu0 0
        %1956 = vmatpush2.bf16.msra.mxu0 0
        %1957 = vmatprep.subr.bf16.mxu0 0
        %1958 = vmatpush2.bf16.msra.mxu0 0
        %1959 = vmatprep.subr.bf16.mxu0 0
        %1960 = vmatpush2.bf16.msra.mxu0 0
        %1961 = vmatprep.subr.bf16.mxu0 0
        %1962 = vmatpush2.bf16.msra.mxu0 0
        %1963 = vmatprep.subr.bf16.mxu0 0
        %1964 = vmatpush2.bf16.msra.mxu0 0
        %1965 = vmatprep.subr.bf16.mxu0 0
        %1966 = vmatpush2.bf16.msra.mxu0 0
        %1967 = vmatprep.subr.bf16.mxu0 0
        %1968 = vmatpush2.bf16.msra.mxu0 0
        %1969 = vmatprep.mubr.bf16.mxu0 0
        %1970 = vmatmul.mubr.bf16.gmra.mxu0 %v1935
        %v1971 = vpop.f32.mrf.mxu0
        %v1972 = vadd.f32 0.0, %v1971
        %v1973 = vpop.f32.mrf.mxu0
        %v1974 = vpop.f32.mrf.mxu0
        %v1975 = vpop.f32.mrf.mxu0
        %1976 = vdwg.mxu0
        %v1978 = vsel %vm299, %v1932, 0
        %1980 = vmatprep.subr.bf16.mxu0 0
        %1981 = vmatpush1.bf16.msra.mxu0 0
        %1982 = vmatprep.subr.bf16.mxu0 0
        %1983 = vmatpush1.bf16.msra.mxu0 0
        %1984 = vmatprep.subr.bf16.mxu0 0
        %1985 = vmatpush1.bf16.msra.mxu0 0
        %1986 = vmatprep.subr.bf16.mxu0 0
        %1987 = vmatpush1.bf16.msra.mxu0 0
        %1988 = vmatprep.subr.bf16.mxu0 0
        %1989 = vmatpush1.bf16.msra.mxu0 0
        %1990 = vmatprep.subr.bf16.mxu0 0
        %1991 = vmatpush1.bf16.msra.mxu0 %v368
        %1992 = vmatprep.subr.bf16.mxu0 0
        %1993 = vmatpush1.bf16.msra.mxu0 %v360
        %1994 = vmatprep.subr.bf16.mxu0 0
        %1995 = vmatpush1.bf16.msra.mxu0 %v359
        %1996 = vmatprep.subr.bf16.mxu0 0
        %1997 = vmatpush2.bf16.msra.mxu0 0
        %1998 = vmatprep.subr.bf16.mxu0 0
        %1999 = vmatpush2.bf16.msra.mxu0 0
        %2000 = vmatprep.subr.bf16.mxu0 0
        %2001 = vmatpush2.bf16.msra.mxu0 0
        %2002 = vmatprep.subr.bf16.mxu0 0
        %2003 = vmatpush2.bf16.msra.mxu0 0
        %2004 = vmatprep.subr.bf16.mxu0 0
        %2005 = vmatpush2.bf16.msra.mxu0 0
        %2006 = vmatprep.subr.bf16.mxu0 0
        %2007 = vmatpush2.bf16.msra.mxu0 0
        %2008 = vmatprep.subr.bf16.mxu0 0
        %2009 = vmatpush2.bf16.msra.mxu0 0
        %2010 = vmatprep.subr.bf16.mxu0 0
        %2011 = vmatpush2.bf16.msra.mxu0 0
        %2012 = vmatprep.mubr.bf16.mxu0 0
        %2013 = vmatmul.mubr.bf16.gmra.mxu0 %v1978
        %v2014 = vpop.f32.mrf.mxu0
        %v2015 = vadd.f32 %v1972, %v2014
        %v2016 = vpop.f32.mrf.mxu0
        %v2017 = vpop.f32.mrf.mxu0
        %v2018 = vpop.f32.mrf.mxu0
        %2019 = vdwg.mxu0
        %v2020 = vadd.f32 %v2015, %v258
        %v2021 = vtanh.pop %v2020
        %v2022 = vadd.f32 %v2015, %v1693
        %v2023 = vadd.f32 %v2022, %v1931
        %v2024 = vmax.f32 %v1906, %v2023
        %v2025 = vsub.f32 %v1906, %v2024
        %v2026 = vmul.f32 %v2025, 1.442695
        %v2027 = vpow.pop %v2026
        %v2028 = vsub.f32 %v2023, %v2024
        %v2029 = vmul.f32 %v2028, 1.442695
        %v2030 = vpow.pop %v2029
        %v2031 = vmul.f32 %v2027, %v1914
        %v2032 = vadd.f32 %v2031, %v2030
        %2034 = vset.pattern.permute.xlu0 32
        %2035 = vperm.xlu0 %2034, %v2027
        %v2036 = vpop.permute.xlu0 %2035
        %v2038 = vmul.f32 %v2036, %v1927
        %2040 = vset.pattern.permute.xlu0 32
        %2041 = vperm.xlu0 %2040, %v2030
        %v2042 = vpop.permute.xlu0 %2041
        %v2044 = vmul.f32 %v2042, %v2021
        %v2045 = vadd.f32 %v2038, %v2044
        %v2046 = vmul.f32 %v2027, %v1930
        %v2047 = vmul.f32 %v2030, %v2023
        %v2048 = vadd.f32 %v2046, %v2047
        %v2049 = vrot.slane %v1574, 5
        %v2050 = vpack.c.bf16 %v1575, %v1575
        %v2051 = vpack.c.bf16 %v2049, %v2049
        %v2053 = vsel %vm299, %v2051, 0
        %2055 = vmatprep.subr.bf16.mxu0 0
        %2056 = vmatpush1.bf16.msra.mxu0 0
        %2057 = vmatprep.subr.bf16.mxu0 0
        %2058 = vmatpush1.bf16.msra.mxu0 0
        %2059 = vmatprep.subr.bf16.mxu0 0
        %2060 = vmatpush1.bf16.msra.mxu0 0
        %2061 = vmatprep.subr.bf16.mxu0 0
        %2062 = vmatpush1.bf16.msra.mxu0 0
        %2063 = vmatprep.subr.bf16.mxu0 0
        %2064 = vmatpush1.bf16.msra.mxu0 0
        %2065 = vmatprep.subr.bf16.mxu0 0
        %2066 = vmatpush1.bf16.msra.mxu0 %v307
        %2067 = vmatprep.subr.bf16.mxu0 0
        %2068 = vmatpush1.bf16.msra.mxu0 %v295
        %2069 = vmatprep.subr.bf16.mxu0 0
        %2070 = vmatpush1.bf16.msra.mxu0 %v294
        %2071 = vmatprep.subr.bf16.mxu0 0
        %2072 = vmatpush2.bf16.msra.mxu0 0
        %2073 = vmatprep.subr.bf16.mxu0 0
        %2074 = vmatpush2.bf16.msra.mxu0 0
        %2075 = vmatprep.subr.bf16.mxu0 0
        %2076 = vmatpush2.bf16.msra.mxu0 0
        %2077 = vmatprep.subr.bf16.mxu0 0
        %2078 = vmatpush2.bf16.msra.mxu0 0
        %2079 = vmatprep.subr.bf16.mxu0 0
        %2080 = vmatpush2.bf16.msra.mxu0 0
        %2081 = vmatprep.subr.bf16.mxu0 0
        %2082 = vmatpush2.bf16.msra.mxu0 0
        %2083 = vmatprep.subr.bf16.mxu0 0
        %2084 = vmatpush2.bf16.msra.mxu0 0
        %2085 = vmatprep.subr.bf16.mxu0 0
        %2086 = vmatpush2.bf16.msra.mxu0 0
        %2087 = vmatprep.mubr.bf16.mxu0 0
        %2088 = vmatmul.mubr.bf16.gmra.mxu0 %v2053
        %v2089 = vpop.f32.mrf.mxu0
        %v2090 = vadd.f32 0.0, %v2089
        %v2091 = vpop.f32.mrf.mxu0
        %v2092 = vpop.f32.mrf.mxu0
        %v2093 = vpop.f32.mrf.mxu0
        %2094 = vdwg.mxu0
        %v2096 = vsel %vm299, %v2050, 0
        %2098 = vmatprep.subr.bf16.mxu0 0
        %2099 = vmatpush1.bf16.msra.mxu0 0
        %2100 = vmatprep.subr.bf16.mxu0 0
        %2101 = vmatpush1.bf16.msra.mxu0 0
        %2102 = vmatprep.subr.bf16.mxu0 0
        %2103 = vmatpush1.bf16.msra.mxu0 0
        %2104 = vmatprep.subr.bf16.mxu0 0
        %2105 = vmatpush1.bf16.msra.mxu0 0
        %2106 = vmatprep.subr.bf16.mxu0 0
        %2107 = vmatpush1.bf16.msra.mxu0 0
        %2108 = vmatprep.subr.bf16.mxu0 0
        %2109 = vmatpush1.bf16.msra.mxu0 %v368
        %2110 = vmatprep.subr.bf16.mxu0 0
        %2111 = vmatpush1.bf16.msra.mxu0 %v360
        %2112 = vmatprep.subr.bf16.mxu0 0
        %2113 = vmatpush1.bf16.msra.mxu0 %v359
        %2114 = vmatprep.subr.bf16.mxu0 0
        %2115 = vmatpush2.bf16.msra.mxu0 0
        %2116 = vmatprep.subr.bf16.mxu0 0
        %2117 = vmatpush2.bf16.msra.mxu0 0
        %2118 = vmatprep.subr.bf16.mxu0 0
        %2119 = vmatpush2.bf16.msra.mxu0 0
        %2120 = vmatprep.subr.bf16.mxu0 0
        %2121 = vmatpush2.bf16.msra.mxu0 0
        %2122 = vmatprep.subr.bf16.mxu0 0
        %2123 = vmatpush2.bf16.msra.mxu0 0
        %2124 = vmatprep.subr.bf16.mxu0 0
        %2125 = vmatpush2.bf16.msra.mxu0 0
        %2126 = vmatprep.subr.bf16.mxu0 0
        %2127 = vmatpush2.bf16.msra.mxu0 0
        %2128 = vmatprep.subr.bf16.mxu0 0
        %2129 = vmatpush2.bf16.msra.mxu0 0
        %2130 = vmatprep.mubr.bf16.mxu0 0
        %2131 = vmatmul.mubr.bf16.gmra.mxu0 %v2096
        %v2132 = vpop.f32.mrf.mxu0
        %v2133 = vadd.f32 %v2090, %v2132
        %v2134 = vpop.f32.mrf.mxu0
        %v2135 = vpop.f32.mrf.mxu0
        %v2136 = vpop.f32.mrf.mxu0
        %2137 = vdwg.mxu0
        %v2138 = vadd.f32 %v2133, %v258
        %v2139 = vtanh.pop %v2138
        %v2140 = vadd.f32 %v2133, %v1575
        %v2141 = vadd.f32 %v2140, %v2049
        %v2142 = vmax.f32 %v2024, %v2141
        %v2143 = vsub.f32 %v2024, %v2142
        %v2144 = vmul.f32 %v2143, 1.442695
        %v2145 = vpow.pop %v2144
        %v2146 = vsub.f32 %v2141, %v2142
        %v2147 = vmul.f32 %v2146, 1.442695
        %v2148 = vpow.pop %v2147
        %v2149 = vmul.f32 %v2145, %v2032
        %v2150 = vadd.f32 %v2149, %v2148
        %2152 = vset.pattern.permute.xlu0 32
        %2153 = vperm.xlu0 %2152, %v2145
        %v2154 = vpop.permute.xlu0 %2153
        %v2156 = vmul.f32 %v2154, %v2045
        %2158 = vset.pattern.permute.xlu0 32
        %2159 = vperm.xlu0 %2158, %v2148
        %v2160 = vpop.permute.xlu0 %2159
        %v2162 = vmul.f32 %v2160, %v2139
        %v2163 = vadd.f32 %v2156, %v2162
        %v2164 = vmul.f32 %v2145, %v2048
        %v2165 = vmul.f32 %v2148, %v2141
        %v2166 = vadd.f32 %v2164, %v2165
        %v2167 = vrcp.pop %v2150
        %vm2168 = vcmp.lt.s32.totalorder %v273, 3
        %2170 = vset.pattern.permute.xlu0 32
        %2171 = vperm.xlu0 %2170, %v2167
        %v2172 = vpop.permute.xlu0 %2171
        %v2174 = vmul.f32 %v2163, %v2172
        %v2175 = vsel %vm2168, 1, 0
        %vm2176 = vcmp.eq.s32.totalorder %v2175, 1
        %v2177 = vsel %vm2176, %v2174, 0.0
        %v2178 = vmul.f32 %v2166, %v2167
        %v2179 = vsel %vm2168, %v2178, 0.0
        %s2180 = scalar_lea.vmem [#allocation2], 40
        %2181 = vst.msk [vmem:[%s2180] sm:$0xff] %vm275, %v2177
        %2182 = vst.msk [vmem:[%s2180] sm:$0xff] %vm277, %v2179
        %s2183 = scalar_lea.vmem %s241, 40 [#allocation9]
        %2184 = vst.msk [vmem:[%s2183] sm:$0xff] %vm275, %v2177
        %v2185 = vld [vmem:[#allocation2] sm:$0xff]
        %v2186 = vld [vmem:[%s2180] sm:$0xff]
        %v2187 = vrot.slane %v2186, 1
        %v2188 = vpack.c.bf16 %v2185, %v2185
        %v2189 = vpack.c.bf16 %v2187, %v2187
        %v2191 = vsel %vm299, %v2189, 0
        %2193 = vmatprep.subr.bf16.mxu0 0
        %2194 = vmatpush1.bf16.msra.mxu0 0
        %2195 = vmatprep.subr.bf16.mxu0 0
        %2196 = vmatpush1.bf16.msra.mxu0 0
        %2197 = vmatprep.subr.bf16.mxu0 0
        %2198 = vmatpush1.bf16.msra.mxu0 0
        %2199 = vmatprep.subr.bf16.mxu0 0
        %2200 = vmatpush1.bf16.msra.mxu0 0
        %2201 = vmatprep.subr.bf16.mxu0 0
        %2202 = vmatpush1.bf16.msra.mxu0 0
        %2203 = vmatprep.subr.bf16.mxu0 0
        %2204 = vmatpush1.bf16.msra.mxu0 %v307
        %2205 = vmatprep.subr.bf16.mxu0 0
        %2206 = vmatpush1.bf16.msra.mxu0 %v295
        %2207 = vmatprep.subr.bf16.mxu0 0
        %2208 = vmatpush1.bf16.msra.mxu0 %v294
        %2209 = vmatprep.subr.bf16.mxu0 0
        %2210 = vmatpush2.bf16.msra.mxu0 0
        %2211 = vmatprep.subr.bf16.mxu0 0
        %2212 = vmatpush2.bf16.msra.mxu0 0
        %2213 = vmatprep.subr.bf16.mxu0 0
        %2214 = vmatpush2.bf16.msra.mxu0 0
        %2215 = vmatprep.subr.bf16.mxu0 0
        %2216 = vmatpush2.bf16.msra.mxu0 0
        %2217 = vmatprep.subr.bf16.mxu0 0
        %2218 = vmatpush2.bf16.msra.mxu0 0
        %2219 = vmatprep.subr.bf16.mxu0 0
        %2220 = vmatpush2.bf16.msra.mxu0 0
        %2221 = vmatprep.subr.bf16.mxu0 0
        %2222 = vmatpush2.bf16.msra.mxu0 0
        %2223 = vmatprep.subr.bf16.mxu0 0
        %2224 = vmatpush2.bf16.msra.mxu0 0
        %2225 = vmatprep.mubr.bf16.mxu0 0
        %2226 = vmatmul.mubr.bf16.gmra.mxu0 %v2191
        %v2227 = vpop.f32.mrf.mxu0
        %v2228 = vadd.f32 0.0, %v2227
        %v2229 = vpop.f32.mrf.mxu0
        %v2230 = vpop.f32.mrf.mxu0
        %v2231 = vpop.f32.mrf.mxu0
        %2232 = vdwg.mxu0
        %v2234 = vsel %vm299, %v2188, 0
        %2236 = vmatprep.subr.bf16.mxu0 0
        %2237 = vmatpush1.bf16.msra.mxu0 0
        %2238 = vmatprep.subr.bf16.mxu0 0
        %2239 = vmatpush1.bf16.msra.mxu0 0
        %2240 = vmatprep.subr.bf16.mxu0 0
        %2241 = vmatpush1.bf16.msra.mxu0 0
        %2242 = vmatprep.subr.bf16.mxu0 0
        %2243 = vmatpush1.bf16.msra.mxu0 0
        %2244 = vmatprep.subr.bf16.mxu0 0
        %2245 = vmatpush1.bf16.msra.mxu0 0
        %2246 = vmatprep.subr.bf16.mxu0 0
        %2247 = vmatpush1.bf16.msra.mxu0 %v368
        %2248 = vmatprep.subr.bf16.mxu0 0
        %2249 = vmatpush1.bf16.msra.mxu0 %v360
        %2250 = vmatprep.subr.bf16.mxu0 0
        %2251 = vmatpush1.bf16.msra.mxu0 %v359
        %2252 = vmatprep.subr.bf16.mxu0 0
        %2253 = vmatpush2.bf16.msra.mxu0 0
        %2254 = vmatprep.subr.bf16.mxu0 0
        %2255 = vmatpush2.bf16.msra.mxu0 0
        %2256 = vmatprep.subr.bf16.mxu0 0
        %2257 = vmatpush2.bf16.msra.mxu0 0
        %2258 = vmatprep.subr.bf16.mxu0 0
        %2259 = vmatpush2.bf16.msra.mxu0 0
        %2260 = vmatprep.subr.bf16.mxu0 0
        %2261 = vmatpush2.bf16.msra.mxu0 0
        %2262 = vmatprep.subr.bf16.mxu0 0
        %2263 = vmatpush2.bf16.msra.mxu0 0
        %2264 = vmatprep.subr.bf16.mxu0 0
        %2265 = vmatpush2.bf16.msra.mxu0 0
        %2266 = vmatprep.subr.bf16.mxu0 0
        %2267 = vmatpush2.bf16.msra.mxu0 0
        %2268 = vmatprep.mubr.bf16.mxu0 0
        %2269 = vmatmul.mubr.bf16.gmra.mxu0 %v2234
        %v2270 = vpop.f32.mrf.mxu0
        %v2271 = vadd.f32 %v2228, %v2270
        %v2272 = vpop.f32.mrf.mxu0
        %v2273 = vpop.f32.mrf.mxu0
        %v2274 = vpop.f32.mrf.mxu0
        %2275 = vdwg.mxu0
        %v2276 = vadd.f32 %v2271, %v258
        %v2277 = vtanh.pop %v2276
        %v2278 = vadd.f32 %v2271, %v2185
        %v2279 = vadd.f32 %v2278, %v2187
        %v2280 = vsub.f32 -inf, %v2279
        %v2281 = vmul.f32 %v2280, 1.442695
        %v2282 = vpow.pop %v2281
        %v2283 = vsub.f32 %v2279, %v2279
        %v2284 = vmul.f32 %v2283, 1.442695
        %v2285 = vpow.pop %v2284
        %v2286 = vmul.f32 %v2282, 0.0
        %v2287 = vadd.f32 %v2286, %v2285
        %2289 = vset.pattern.permute.xlu0 32
        %2290 = vperm.xlu0 %2289, %v2282
        %v2291 = vpop.permute.xlu0 %2290
        %v2293 = vmul.f32 %v2291, 0.0
        %2295 = vset.pattern.permute.xlu0 32
        %2296 = vperm.xlu0 %2295, %v2285
        %v2297 = vpop.permute.xlu0 %2296
        %v2299 = vmul.f32 %v2297, %v2277
        %v2300 = vadd.f32 %v2293, %v2299
        %v2301 = vmul.f32 %v2285, %v2279
        %v2302 = vadd.f32 %v2286, %v2301
        %v2303 = vld [vmem:[%s450] sm:$0xff]
        %v2304 = vld [vmem:[%s1569] sm:$0xff]
        %v2305 = vrot.slane %v2304, 2
        %v2306 = vpack.c.bf16 %v2303, %v2303
        %v2307 = vpack.c.bf16 %v2305, %v2305
        %v2309 = vsel %vm299, %v2307, 0
        %2311 = vmatprep.subr.bf16.mxu0 0
        %2312 = vmatpush1.bf16.msra.mxu0 0
        %2313 = vmatprep.subr.bf16.mxu0 0
        %2314 = vmatpush1.bf16.msra.mxu0 0
        %2315 = vmatprep.subr.bf16.mxu0 0
        %2316 = vmatpush1.bf16.msra.mxu0 0
        %2317 = vmatprep.subr.bf16.mxu0 0
        %2318 = vmatpush1.bf16.msra.mxu0 0
        %2319 = vmatprep.subr.bf16.mxu0 0
        %2320 = vmatpush1.bf16.msra.mxu0 0
        %2321 = vmatprep.subr.bf16.mxu0 0
        %2322 = vmatpush1.bf16.msra.mxu0 %v307
        %2323 = vmatprep.subr.bf16.mxu0 0
        %2324 = vmatpush1.bf16.msra.mxu0 %v295
        %2325 = vmatprep.subr.bf16.mxu0 0
        %2326 = vmatpush1.bf16.msra.mxu0 %v294
        %2327 = vmatprep.subr.bf16.mxu0 0
        %2328 = vmatpush2.bf16.msra.mxu0 0
        %2329 = vmatprep.subr.bf16.mxu0 0
        %2330 = vmatpush2.bf16.msra.mxu0 0
        %2331 = vmatprep.subr.bf16.mxu0 0
        %2332 = vmatpush2.bf16.msra.mxu0 0
        %2333 = vmatprep.subr.bf16.mxu0 0
        %2334 = vmatpush2.bf16.msra.mxu0 0
        %2335 = vmatprep.subr.bf16.mxu0 0
        %2336 = vmatpush2.bf16.msra.mxu0 0
        %2337 = vmatprep.subr.bf16.mxu0 0
        %2338 = vmatpush2.bf16.msra.mxu0 0
        %2339 = vmatprep.subr.bf16.mxu0 0
        %2340 = vmatpush2.bf16.msra.mxu0 0
        %2341 = vmatprep.subr.bf16.mxu0 0
        %2342 = vmatpush2.bf16.msra.mxu0 0
        %2343 = vmatprep.mubr.bf16.mxu0 0
        %2344 = vmatmul.mubr.bf16.gmra.mxu0 %v2309
        %v2345 = vpop.f32.mrf.mxu0
        %v2346 = vadd.f32 0.0, %v2345
        %v2347 = vpop.f32.mrf.mxu0
        %v2348 = vpop.f32.mrf.mxu0
        %v2349 = vpop.f32.mrf.mxu0
        %2350 = vdwg.mxu0
        %v2352 = vsel %vm299, %v2306, 0
        %2354 = vmatprep.subr.bf16.mxu0 0
        %2355 = vmatpush1.bf16.msra.mxu0 0
        %2356 = vmatprep.subr.bf16.mxu0 0
        %2357 = vmatpush1.bf16.msra.mxu0 0
        %2358 = vmatprep.subr.bf16.mxu0 0
        %2359 = vmatpush1.bf16.msra.mxu0 0
        %2360 = vmatprep.subr.bf16.mxu0 0
        %2361 = vmatpush1.bf16.msra.mxu0 0
        %2362 = vmatprep.subr.bf16.mxu0 0
        %2363 = vmatpush1.bf16.msra.mxu0 0
        %2364 = vmatprep.subr.bf16.mxu0 0
        %2365 = vmatpush1.bf16.msra.mxu0 %v368
        %2366 = vmatprep.subr.bf16.mxu0 0
        %2367 = vmatpush1.bf16.msra.mxu0 %v360
        %2368 = vmatprep.subr.bf16.mxu0 0
        %2369 = vmatpush1.bf16.msra.mxu0 %v359
        %2370 = vmatprep.subr.bf16.mxu0 0
        %2371 = vmatpush2.bf16.msra.mxu0 0
        %2372 = vmatprep.subr.bf16.mxu0 0
        %2373 = vmatpush2.bf16.msra.mxu0 0
        %2374 = vmatprep.subr.bf16.mxu0 0
        %2375 = vmatpush2.bf16.msra.mxu0 0
        %2376 = vmatprep.subr.bf16.mxu0 0
        %2377 = vmatpush2.bf16.msra.mxu0 0
        %2378 = vmatprep.subr.bf16.mxu0 0
        %2379 = vmatpush2.bf16.msra.mxu0 0
        %2380 = vmatprep.subr.bf16.mxu0 0
        %2381 = vmatpush2.bf16.msra.mxu0 0
        %2382 = vmatprep.subr.bf16.mxu0 0
        %2383 = vmatpush2.bf16.msra.mxu0 0
        %2384 = vmatprep.subr.bf16.mxu0 0
        %2385 = vmatpush2.bf16.msra.mxu0 0
        %2386 = vmatprep.mubr.bf16.mxu0 0
        %2387 = vmatmul.mubr.bf16.gmra.mxu0 %v2352
        %v2388 = vpop.f32.mrf.mxu0
        %v2389 = vadd.f32 %v2346, %v2388
        %v2390 = vpop.f32.mrf.mxu0
        %v2391 = vpop.f32.mrf.mxu0
        %v2392 = vpop.f32.mrf.mxu0
        %2393 = vdwg.mxu0
        %v2394 = vadd.f32 %v2389, %v258
        %v2395 = vtanh.pop %v2394
        %v2396 = vadd.f32 %v2389, %v2303
        %v2397 = vadd.f32 %v2396, %v2305
        %v2398 = vmax.f32 %v2279, %v2397
        %v2399 = vsub.f32 %v2279, %v2398
        %v2400 = vmul.f32 %v2399, 1.442695
        %v2401 = vpow.pop %v2400
        %v2402 = vsub.f32 %v2397, %v2398
        %v2403 = vmul.f32 %v2402, 1.442695
        %v2404 = vpow.pop %v2403
        %v2405 = vmul.f32 %v2401, %v2287
        %v2406 = vadd.f32 %v2405, %v2404
        %2408 = vset.pattern.permute.xlu0 32
        %2409 = vperm.xlu0 %2408, %v2401
        %v2410 = vpop.permute.xlu0 %2409
        %v2412 = vmul.f32 %v2410, %v2300
        %2414 = vset.pattern.permute.xlu0 32
        %2415 = vperm.xlu0 %2414, %v2404
        %v2416 = vpop.permute.xlu0 %2415
        %v2418 = vmul.f32 %v2416, %v2395
        %v2419 = vadd.f32 %v2412, %v2418
        %v2420 = vmul.f32 %v2401, %v2302
        %v2421 = vmul.f32 %v2404, %v2397
        %v2422 = vadd.f32 %v2420, %v2421
        %v2423 = vld [vmem:[%s704] sm:$0xff]
        %v2424 = vld [vmem:[%s1077] sm:$0xff]
        %v2425 = vrot.slane %v2424, 3
        %v2426 = vpack.c.bf16 %v2423, %v2423
        %v2427 = vpack.c.bf16 %v2425, %v2425
        %v2429 = vsel %vm299, %v2427, 0
        %2431 = vmatprep.subr.bf16.mxu0 0
        %2432 = vmatpush1.bf16.msra.mxu0 0
        %2433 = vmatprep.subr.bf16.mxu0 0
        %2434 = vmatpush1.bf16.msra.mxu0 0
        %2435 = vmatprep.subr.bf16.mxu0 0
        %2436 = vmatpush1.bf16.msra.mxu0 0
        %2437 = vmatprep.subr.bf16.mxu0 0
        %2438 = vmatpush1.bf16.msra.mxu0 0
        %2439 = vmatprep.subr.bf16.mxu0 0
        %2440 = vmatpush1.bf16.msra.mxu0 0
        %2441 = vmatprep.subr.bf16.mxu0 0
        %2442 = vmatpush1.bf16.msra.mxu0 %v307
        %2443 = vmatprep.subr.bf16.mxu0 0
        %2444 = vmatpush1.bf16.msra.mxu0 %v295
        %2445 = vmatprep.subr.bf16.mxu0 0
        %2446 = vmatpush1.bf16.msra.mxu0 %v294
        %2447 = vmatprep.subr.bf16.mxu0 0
        %2448 = vmatpush2.bf16.msra.mxu0 0
        %2449 = vmatprep.subr.bf16.mxu0 0
        %2450 = vmatpush2.bf16.msra.mxu0 0
        %2451 = vmatprep.subr.bf16.mxu0 0
        %2452 = vmatpush2.bf16.msra.mxu0 0
        %2453 = vmatprep.subr.bf16.mxu0 0
        %2454 = vmatpush2.bf16.msra.mxu0 0
        %2455 = vmatprep.subr.bf16.mxu0 0
        %2456 = vmatpush2.bf16.msra.mxu0 0
        %2457 = vmatprep.subr.bf16.mxu0 0
        %2458 = vmatpush2.bf16.msra.mxu0 0
        %2459 = vmatprep.subr.bf16.mxu0 0
        %2460 = vmatpush2.bf16.msra.mxu0 0
        %2461 = vmatprep.subr.bf16.mxu0 0
        %2462 = vmatpush2.bf16.msra.mxu0 0
        %2463 = vmatprep.mubr.bf16.mxu0 0
        %2464 = vmatmul.mubr.bf16.gmra.mxu0 %v2429
        %v2465 = vpop.f32.mrf.mxu0
        %v2466 = vadd.f32 0.0, %v2465
        %v2467 = vpop.f32.mrf.mxu0
        %v2468 = vpop.f32.mrf.mxu0
        %v2469 = vpop.f32.mrf.mxu0
        %2470 = vdwg.mxu0
        %v2472 = vsel %vm299, %v2426, 0
        %2474 = vmatprep.subr.bf16.mxu0 0
        %2475 = vmatpush1.bf16.msra.mxu0 0
        %2476 = vmatprep.subr.bf16.mxu0 0
        %2477 = vmatpush1.bf16.msra.mxu0 0
        %2478 = vmatprep.subr.bf16.mxu0 0
        %2479 = vmatpush1.bf16.msra.mxu0 0
        %2480 = vmatprep.subr.bf16.mxu0 0
        %2481 = vmatpush1.bf16.msra.mxu0 0
        %2482 = vmatprep.subr.bf16.mxu0 0
        %2483 = vmatpush1.bf16.msra.mxu0 0
        %2484 = vmatprep.subr.bf16.mxu0 0
        %2485 = vmatpush1.bf16.msra.mxu0 %v368
        %2486 = vmatprep.subr.bf16.mxu0 0
        %2487 = vmatpush1.bf16.msra.mxu0 %v360
        %2488 = vmatprep.subr.bf16.mxu0 0
        %2489 = vmatpush1.bf16.msra.mxu0 %v359
        %2490 = vmatprep.subr.bf16.mxu0 0
        %2491 = vmatpush2.bf16.msra.mxu0 0
        %2492 = vmatprep.subr.bf16.mxu0 0
        %2493 = vmatpush2.bf16.msra.mxu0 0
        %2494 = vmatprep.subr.bf16.mxu0 0
        %2495 = vmatpush2.bf16.msra.mxu0 0
        %2496 = vmatprep.subr.bf16.mxu0 0
        %2497 = vmatpush2.bf16.msra.mxu0 0
        %2498 = vmatprep.subr.bf16.mxu0 0
        %2499 = vmatpush2.bf16.msra.mxu0 0
        %2500 = vmatprep.subr.bf16.mxu0 0
        %2501 = vmatpush2.bf16.msra.mxu0 0
        %2502 = vmatprep.subr.bf16.mxu0 0
        %2503 = vmatpush2.bf16.msra.mxu0 0
        %2504 = vmatprep.subr.bf16.mxu0 0
        %2505 = vmatpush2.bf16.msra.mxu0 0
        %2506 = vmatprep.mubr.bf16.mxu0 0
        %2507 = vmatmul.mubr.bf16.gmra.mxu0 %v2472
        %v2508 = vpop.f32.mrf.mxu0
        %v2509 = vadd.f32 %v2466, %v2508
        %v2510 = vpop.f32.mrf.mxu0
        %v2511 = vpop.f32.mrf.mxu0
        %v2512 = vpop.f32.mrf.mxu0
        %2513 = vdwg.mxu0
        %v2514 = vadd.f32 %v2509, %v258
        %v2515 = vtanh.pop %v2514
        %v2516 = vadd.f32 %v2509, %v2423
        %v2517 = vadd.f32 %v2516, %v2425
        %v2518 = vmax.f32 %v2398, %v2517
        %v2519 = vsub.f32 %v2398, %v2518
        %v2520 = vmul.f32 %v2519, 1.442695
        %v2521 = vpow.pop %v2520
        %v2522 = vsub.f32 %v2517, %v2518
        %v2523 = vmul.f32 %v2522, 1.442695
        %v2524 = vpow.pop %v2523
        %v2525 = vmul.f32 %v2521, %v2406
        %v2526 = vadd.f32 %v2525, %v2524
        %2528 = vset.pattern.permute.xlu0 32
        %2529 = vperm.xlu0 %2528, %v2521
        %v2530 = vpop.permute.xlu0 %2529
        %v2532 = vmul.f32 %v2530, %v2419
        %2534 = vset.pattern.permute.xlu0 32
        %2535 = vperm.xlu0 %2534, %v2524
        %v2536 = vpop.permute.xlu0 %2535
        %v2538 = vmul.f32 %v2536, %v2515
        %v2539 = vadd.f32 %v2532, %v2538
        %v2540 = vmul.f32 %v2521, %v2422
        %v2541 = vmul.f32 %v2524, %v2517
        %v2542 = vadd.f32 %v2540, %v2541
        %v2543 = vrot.slane %v2423, 4
        %v2544 = vpack.c.bf16 %v2424, %v2424
        %v2545 = vpack.c.bf16 %v2543, %v2543
        %v2547 = vsel %vm299, %v2545, 0
        %2549 = vmatprep.subr.bf16.mxu0 0
        %2550 = vmatpush1.bf16.msra.mxu0 0
        %2551 = vmatprep.subr.bf16.mxu0 0
        %2552 = vmatpush1.bf16.msra.mxu0 0
        %2553 = vmatprep.subr.bf16.mxu0 0
        %2554 = vmatpush1.bf16.msra.mxu0 0
        %2555 = vmatprep.subr.bf16.mxu0 0
        %2556 = vmatpush1.bf16.msra.mxu0 0
        %2557 = vmatprep.subr.bf16.mxu0 0
        %2558 = vmatpush1.bf16.msra.mxu0 0
        %2559 = vmatprep.subr.bf16.mxu0 0
        %2560 = vmatpush1.bf16.msra.mxu0 %v307
        %2561 = vmatprep.subr.bf16.mxu0 0
        %2562 = vmatpush1.bf16.msra.mxu0 %v295
        %2563 = vmatprep.subr.bf16.mxu0 0
        %2564 = vmatpush1.bf16.msra.mxu0 %v294
        %2565 = vmatprep.subr.bf16.mxu0 0
        %2566 = vmatpush2.bf16.msra.mxu0 0
        %2567 = vmatprep.subr.bf16.mxu0 0
        %2568 = vmatpush2.bf16.msra.mxu0 0
        %2569 = vmatprep.subr.bf16.mxu0 0
        %2570 = vmatpush2.bf16.msra.mxu0 0
        %2571 = vmatprep.subr.bf16.mxu0 0
        %2572 = vmatpush2.bf16.msra.mxu0 0
        %2573 = vmatprep.subr.bf16.mxu0 0
        %2574 = vmatpush2.bf16.msra.mxu0 0
        %2575 = vmatprep.subr.bf16.mxu0 0
        %2576 = vmatpush2.bf16.msra.mxu0 0
        %2577 = vmatprep.subr.bf16.mxu0 0
        %2578 = vmatpush2.bf16.msra.mxu0 0
        %2579 = vmatprep.subr.bf16.mxu0 0
        %2580 = vmatpush2.bf16.msra.mxu0 0
        %2581 = vmatprep.mubr.bf16.mxu0 0
        %2582 = vmatmul.mubr.bf16.gmra.mxu0 %v2547
        %v2583 = vpop.f32.mrf.mxu0
        %v2584 = vadd.f32 0.0, %v2583
        %v2585 = vpop.f32.mrf.mxu0
        %v2586 = vpop.f32.mrf.mxu0
        %v2587 = vpop.f32.mrf.mxu0
        %2588 = vdwg.mxu0
        %v2590 = vsel %vm299, %v2544, 0
        %2592 = vmatprep.subr.bf16.mxu0 0
        %2593 = vmatpush1.bf16.msra.mxu0 0
        %2594 = vmatprep.subr.bf16.mxu0 0
        %2595 = vmatpush1.bf16.msra.mxu0 0
        %2596 = vmatprep.subr.bf16.mxu0 0
        %2597 = vmatpush1.bf16.msra.mxu0 0
        %2598 = vmatprep.subr.bf16.mxu0 0
        %2599 = vmatpush1.bf16.msra.mxu0 0
        %2600 = vmatprep.subr.bf16.mxu0 0
        %2601 = vmatpush1.bf16.msra.mxu0 0
        %2602 = vmatprep.subr.bf16.mxu0 0
        %2603 = vmatpush1.bf16.msra.mxu0 %v368
        %2604 = vmatprep.subr.bf16.mxu0 0
        %2605 = vmatpush1.bf16.msra.mxu0 %v360
        %2606 = vmatprep.subr.bf16.mxu0 0
        %2607 = vmatpush1.bf16.msra.mxu0 %v359
        %2608 = vmatprep.subr.bf16.mxu0 0
        %2609 = vmatpush2.bf16.msra.mxu0 0
        %2610 = vmatprep.subr.bf16.mxu0 0
        %2611 = vmatpush2.bf16.msra.mxu0 0
        %2612 = vmatprep.subr.bf16.mxu0 0
        %2613 = vmatpush2.bf16.msra.mxu0 0
        %2614 = vmatprep.subr.bf16.mxu0 0
        %2615 = vmatpush2.bf16.msra.mxu0 0
        %2616 = vmatprep.subr.bf16.mxu0 0
        %2617 = vmatpush2.bf16.msra.mxu0 0
        %2618 = vmatprep.subr.bf16.mxu0 0
        %2619 = vmatpush2.bf16.msra.mxu0 0
        %2620 = vmatprep.subr.bf16.mxu0 0
        %2621 = vmatpush2.bf16.msra.mxu0 0
        %2622 = vmatprep.subr.bf16.mxu0 0
        %2623 = vmatpush2.bf16.msra.mxu0 0
        %2624 = vmatprep.mubr.bf16.mxu0 0
        %2625 = vmatmul.mubr.bf16.gmra.mxu0 %v2590
        %v2626 = vpop.f32.mrf.mxu0
        %v2627 = vadd.f32 %v2584, %v2626
        %v2628 = vpop.f32.mrf.mxu0
        %v2629 = vpop.f32.mrf.mxu0
        %v2630 = vpop.f32.mrf.mxu0
        %2631 = vdwg.mxu0
        %v2632 = vadd.f32 %v2627, %v258
        %v2633 = vtanh.pop %v2632
        %v2634 = vadd.f32 %v2627, %v2424
        %v2635 = vadd.f32 %v2634, %v2543
        %v2636 = vmax.f32 %v2518, %v2635
        %v2637 = vsub.f32 %v2518, %v2636
        %v2638 = vmul.f32 %v2637, 1.442695
        %v2639 = vpow.pop %v2638
        %v2640 = vsub.f32 %v2635, %v2636
        %v2641 = vmul.f32 %v2640, 1.442695
        %v2642 = vpow.pop %v2641
        %v2643 = vmul.f32 %v2639, %v2526
        %v2644 = vadd.f32 %v2643, %v2642
        %2646 = vset.pattern.permute.xlu0 32
        %2647 = vperm.xlu0 %2646, %v2639
        %v2648 = vpop.permute.xlu0 %2647
        %v2650 = vmul.f32 %v2648, %v2539
        %2652 = vset.pattern.permute.xlu0 32
        %2653 = vperm.xlu0 %2652, %v2642
        %v2654 = vpop.permute.xlu0 %2653
        %v2656 = vmul.f32 %v2654, %v2633
        %v2657 = vadd.f32 %v2650, %v2656
        %v2658 = vmul.f32 %v2639, %v2542
        %v2659 = vmul.f32 %v2642, %v2635
        %v2660 = vadd.f32 %v2658, %v2659
        %v2661 = vrot.slane %v2303, 5
        %v2662 = vpack.c.bf16 %v2304, %v2304
        %v2663 = vpack.c.bf16 %v2661, %v2661
        %v2665 = vsel %vm299, %v2663, 0
        %2667 = vmatprep.subr.bf16.mxu0 0
        %2668 = vmatpush1.bf16.msra.mxu0 0
        %2669 = vmatprep.subr.bf16.mxu0 0
        %2670 = vmatpush1.bf16.msra.mxu0 0
        %2671 = vmatprep.subr.bf16.mxu0 0
        %2672 = vmatpush1.bf16.msra.mxu0 0
        %2673 = vmatprep.subr.bf16.mxu0 0
        %2674 = vmatpush1.bf16.msra.mxu0 0
        %2675 = vmatprep.subr.bf16.mxu0 0
        %2676 = vmatpush1.bf16.msra.mxu0 0
        %2677 = vmatprep.subr.bf16.mxu0 0
        %2678 = vmatpush1.bf16.msra.mxu0 %v307
        %2679 = vmatprep.subr.bf16.mxu0 0
        %2680 = vmatpush1.bf16.msra.mxu0 %v295
        %2681 = vmatprep.subr.bf16.mxu0 0
        %2682 = vmatpush1.bf16.msra.mxu0 %v294
        %2683 = vmatprep.subr.bf16.mxu0 0
        %2684 = vmatpush2.bf16.msra.mxu0 0
        %2685 = vmatprep.subr.bf16.mxu0 0
        %2686 = vmatpush2.bf16.msra.mxu0 0
        %2687 = vmatprep.subr.bf16.mxu0 0
        %2688 = vmatpush2.bf16.msra.mxu0 0
        %2689 = vmatprep.subr.bf16.mxu0 0
        %2690 = vmatpush2.bf16.msra.mxu0 0
        %2691 = vmatprep.subr.bf16.mxu0 0
        %2692 = vmatpush2.bf16.msra.mxu0 0
        %2693 = vmatprep.subr.bf16.mxu0 0
        %2694 = vmatpush2.bf16.msra.mxu0 0
        %2695 = vmatprep.subr.bf16.mxu0 0
        %2696 = vmatpush2.bf16.msra.mxu0 0
        %2697 = vmatprep.subr.bf16.mxu0 0
        %2698 = vmatpush2.bf16.msra.mxu0 0
        %2699 = vmatprep.mubr.bf16.mxu0 0
        %2700 = vmatmul.mubr.bf16.gmra.mxu0 %v2665
        %v2701 = vpop.f32.mrf.mxu0
        %v2702 = vadd.f32 0.0, %v2701
        %v2703 = vpop.f32.mrf.mxu0
        %v2704 = vpop.f32.mrf.mxu0
        %v2705 = vpop.f32.mrf.mxu0
        %2706 = vdwg.mxu0
        %v2708 = vsel %vm299, %v2662, 0
        %2710 = vmatprep.subr.bf16.mxu0 0
        %2711 = vmatpush1.bf16.msra.mxu0 0
        %2712 = vmatprep.subr.bf16.mxu0 0
        %2713 = vmatpush1.bf16.msra.mxu0 0
        %2714 = vmatprep.subr.bf16.mxu0 0
        %2715 = vmatpush1.bf16.msra.mxu0 0
        %2716 = vmatprep.subr.bf16.mxu0 0
        %2717 = vmatpush1.bf16.msra.mxu0 0
        %2718 = vmatprep.subr.bf16.mxu0 0
        %2719 = vmatpush1.bf16.msra.mxu0 0
        %2720 = vmatprep.subr.bf16.mxu0 0
        %2721 = vmatpush1.bf16.msra.mxu0 %v368
        %2722 = vmatprep.subr.bf16.mxu0 0
        %2723 = vmatpush1.bf16.msra.mxu0 %v360
        %2724 = vmatprep.subr.bf16.mxu0 0
        %2725 = vmatpush1.bf16.msra.mxu0 %v359
        %2726 = vmatprep.subr.bf16.mxu0 0
        %2727 = vmatpush2.bf16.msra.mxu0 0
        %2728 = vmatprep.subr.bf16.mxu0 0
        %2729 = vmatpush2.bf16.msra.mxu0 0
        %2730 = vmatprep.subr.bf16.mxu0 0
        %2731 = vmatpush2.bf16.msra.mxu0 0
        %2732 = vmatprep.subr.bf16.mxu0 0
        %2733 = vmatpush2.bf16.msra.mxu0 0
        %2734 = vmatprep.subr.bf16.mxu0 0
        %2735 = vmatpush2.bf16.msra.mxu0 0
        %2736 = vmatprep.subr.bf16.mxu0 0
        %2737 = vmatpush2.bf16.msra.mxu0 0
        %2738 = vmatprep.subr.bf16.mxu0 0
        %2739 = vmatpush2.bf16.msra.mxu0 0
        %2740 = vmatprep.subr.bf16.mxu0 0
        %2741 = vmatpush2.bf16.msra.mxu0 0
        %2742 = vmatprep.mubr.bf16.mxu0 0
        %2743 = vmatmul.mubr.bf16.gmra.mxu0 %v2708
        %v2744 = vpop.f32.mrf.mxu0
        %v2745 = vadd.f32 %v2702, %v2744
        %v2746 = vpop.f32.mrf.mxu0
        %v2747 = vpop.f32.mrf.mxu0
        %v2748 = vpop.f32.mrf.mxu0
        %2749 = vdwg.mxu0
        %v2750 = vadd.f32 %v2745, %v258
        %v2751 = vtanh.pop %v2750
        %v2752 = vadd.f32 %v2745, %v2304
        %v2753 = vadd.f32 %v2752, %v2661
        %v2754 = vmax.f32 %v2636, %v2753
        %v2755 = vsub.f32 %v2636, %v2754
        %v2756 = vmul.f32 %v2755, 1.442695
        %v2757 = vpow.pop %v2756
        %v2758 = vsub.f32 %v2753, %v2754
        %v2759 = vmul.f32 %v2758, 1.442695
        %v2760 = vpow.pop %v2759
        %v2761 = vmul.f32 %v2757, %v2644
        %v2762 = vadd.f32 %v2761, %v2760
        %2764 = vset.pattern.permute.xlu0 32
        %2765 = vperm.xlu0 %2764, %v2757
        %v2766 = vpop.permute.xlu0 %2765
        %v2768 = vmul.f32 %v2766, %v2657
        %2770 = vset.pattern.permute.xlu0 32
        %2771 = vperm.xlu0 %2770, %v2760
        %v2772 = vpop.permute.xlu0 %2771
        %v2774 = vmul.f32 %v2772, %v2751
        %v2775 = vadd.f32 %v2768, %v2774
        %v2776 = vmul.f32 %v2757, %v2660
        %v2777 = vmul.f32 %v2760, %v2753
        %v2778 = vadd.f32 %v2776, %v2777
        %v2779 = vrot.slane %v2185, 6
        %v2780 = vpack.c.bf16 %v2186, %v2186
        %v2781 = vpack.c.bf16 %v2779, %v2779
        %v2783 = vsel %vm299, %v2781, 0
        %2785 = vmatprep.subr.bf16.mxu0 0
        %2786 = vmatpush1.bf16.msra.mxu0 0
        %2787 = vmatprep.subr.bf16.mxu0 0
        %2788 = vmatpush1.bf16.msra.mxu0 0
        %2789 = vmatprep.subr.bf16.mxu0 0
        %2790 = vmatpush1.bf16.msra.mxu0 0
        %2791 = vmatprep.subr.bf16.mxu0 0
        %2792 = vmatpush1.bf16.msra.mxu0 0
        %2793 = vmatprep.subr.bf16.mxu0 0
        %2794 = vmatpush1.bf16.msra.mxu0 0
        %2795 = vmatprep.subr.bf16.mxu0 0
        %2796 = vmatpush1.bf16.msra.mxu0 %v307
        %2797 = vmatprep.subr.bf16.mxu0 0
        %2798 = vmatpush1.bf16.msra.mxu0 %v295
        %2799 = vmatprep.subr.bf16.mxu0 0
        %2800 = vmatpush1.bf16.msra.mxu0 %v294
        %2801 = vmatprep.subr.bf16.mxu0 0
        %2802 = vmatpush2.bf16.msra.mxu0 0
        %2803 = vmatprep.subr.bf16.mxu0 0
        %2804 = vmatpush2.bf16.msra.mxu0 0
        %2805 = vmatprep.subr.bf16.mxu0 0
        %2806 = vmatpush2.bf16.msra.mxu0 0
        %2807 = vmatprep.subr.bf16.mxu0 0
        %2808 = vmatpush2.bf16.msra.mxu0 0
        %2809 = vmatprep.subr.bf16.mxu0 0
        %2810 = vmatpush2.bf16.msra.mxu0 0
        %2811 = vmatprep.subr.bf16.mxu0 0
        %2812 = vmatpush2.bf16.msra.mxu0 0
        %2813 = vmatprep.subr.bf16.mxu0 0
        %2814 = vmatpush2.bf16.msra.mxu0 0
        %2815 = vmatprep.subr.bf16.mxu0 0
        %2816 = vmatpush2.bf16.msra.mxu0 0
        %2817 = vmatprep.mubr.bf16.mxu0 0
        %2818 = vmatmul.mubr.bf16.gmra.mxu0 %v2783
        %v2819 = vpop.f32.mrf.mxu0
        %v2820 = vadd.f32 0.0, %v2819
        %v2821 = vpop.f32.mrf.mxu0
        %v2822 = vpop.f32.mrf.mxu0
        %v2823 = vpop.f32.mrf.mxu0
        %2824 = vdwg.mxu0
        %v2826 = vsel %vm299, %v2780, 0
        %2828 = vmatprep.subr.bf16.mxu0 0
        %2829 = vmatpush1.bf16.msra.mxu0 0
        %2830 = vmatprep.subr.bf16.mxu0 0
        %2831 = vmatpush1.bf16.msra.mxu0 0
        %2832 = vmatprep.subr.bf16.mxu0 0
        %2833 = vmatpush1.bf16.msra.mxu0 0
        %2834 = vmatprep.subr.bf16.mxu0 0
        %2835 = vmatpush1.bf16.msra.mxu0 0
        %2836 = vmatprep.subr.bf16.mxu0 0
        %2837 = vmatpush1.bf16.msra.mxu0 0
        %2838 = vmatprep.subr.bf16.mxu0 0
        %2839 = vmatpush1.bf16.msra.mxu0 %v368
        %2840 = vmatprep.subr.bf16.mxu0 0
        %2841 = vmatpush1.bf16.msra.mxu0 %v360
        %2842 = vmatprep.subr.bf16.mxu0 0
        %2843 = vmatpush1.bf16.msra.mxu0 %v359
        %2844 = vmatprep.subr.bf16.mxu0 0
        %2845 = vmatpush2.bf16.msra.mxu0 0
        %2846 = vmatprep.subr.bf16.mxu0 0
        %2847 = vmatpush2.bf16.msra.mxu0 0
        %2848 = vmatprep.subr.bf16.mxu0 0
        %2849 = vmatpush2.bf16.msra.mxu0 0
        %2850 = vmatprep.subr.bf16.mxu0 0
        %2851 = vmatpush2.bf16.msra.mxu0 0
        %2852 = vmatprep.subr.bf16.mxu0 0
        %2853 = vmatpush2.bf16.msra.mxu0 0
        %2854 = vmatprep.subr.bf16.mxu0 0
        %2855 = vmatpush2.bf16.msra.mxu0 0
        %2856 = vmatprep.subr.bf16.mxu0 0
        %2857 = vmatpush2.bf16.msra.mxu0 0
        %2858 = vmatprep.subr.bf16.mxu0 0
        %2859 = vmatpush2.bf16.msra.mxu0 0
        %2860 = vmatprep.mubr.bf16.mxu0 0
        %2861 = vmatmul.mubr.bf16.gmra.mxu0 %v2826
        %v2862 = vpop.f32.mrf.mxu0
        %v2863 = vadd.f32 %v2820, %v2862
        %v2864 = vpop.f32.mrf.mxu0
        %v2865 = vpop.f32.mrf.mxu0
        %v2866 = vpop.f32.mrf.mxu0
        %2867 = vdwg.mxu0
        %v2868 = vadd.f32 %v2863, %v258
        %v2869 = vtanh.pop %v2868
        %v2870 = vadd.f32 %v2863, %v2186
        %v2871 = vadd.f32 %v2870, %v2779
        %v2872 = vmax.f32 %v2754, %v2871
        %v2873 = vsub.f32 %v2754, %v2872
        %v2874 = vmul.f32 %v2873, 1.442695
        %v2875 = vpow.pop %v2874
        %v2876 = vsub.f32 %v2871, %v2872
        %v2877 = vmul.f32 %v2876, 1.442695
        %v2878 = vpow.pop %v2877
        %v2879 = vmul.f32 %v2875, %v2762
        %v2880 = vadd.f32 %v2879, %v2878
        %2882 = vset.pattern.permute.xlu0 32
        %2883 = vperm.xlu0 %2882, %v2875
        %v2884 = vpop.permute.xlu0 %2883
        %v2886 = vmul.f32 %v2884, %v2775
        %2888 = vset.pattern.permute.xlu0 32
        %2889 = vperm.xlu0 %2888, %v2878
        %v2890 = vpop.permute.xlu0 %2889
        %v2892 = vmul.f32 %v2890, %v2869
        %v2893 = vadd.f32 %v2886, %v2892
        %v2894 = vmul.f32 %v2875, %v2778
        %v2895 = vmul.f32 %v2878, %v2871
        %v2896 = vadd.f32 %v2894, %v2895
        %v2897 = vrcp.pop %v2880
        %vm2898 = vcmp.lt.s32.totalorder %v273, 2
        %2900 = vset.pattern.permute.xlu0 32
        %2901 = vperm.xlu0 %2900, %v2897
        %v2902 = vpop.permute.xlu0 %2901
        %v2904 = vmul.f32 %v2893, %v2902
        %v2905 = vsel %vm2898, 1, 0
        %vm2906 = vcmp.eq.s32.totalorder %v2905, 1
        %v2907 = vsel %vm2906, %v2904, 0.0
        %v2908 = vmul.f32 %v2896, %v2897
        %v2909 = vsel %vm2898, %v2908, 0.0
        %s2910 = scalar_lea.vmem [#allocation2], 48
        %2911 = vst.msk [vmem:[%s2910] sm:$0xff] %vm275, %v2907
        %2912 = vst.msk [vmem:[%s2910] sm:$0xff] %vm277, %v2909
        %s2913 = scalar_lea.vmem %s241, 48 [#allocation9]
        %2914 = vst.msk [vmem:[%s2913] sm:$0xff] %vm275, %v2907
        %v2915 = vld [vmem:[#allocation2] sm:$0xff]
        %v2916 = vld [vmem:[%s2910] sm:$0xff]
        %v2917 = vrot.slane %v2916, 1
        %v2918 = vpack.c.bf16 %v2915, %v2915
        %v2919 = vpack.c.bf16 %v2917, %v2917
        %v2921 = vsel %vm299, %v2919, 0
        %2923 = vmatprep.subr.bf16.mxu0 0
        %2924 = vmatpush1.bf16.msra.mxu0 0
        %2925 = vmatprep.subr.bf16.mxu0 0
        %2926 = vmatpush1.bf16.msra.mxu0 0
        %2927 = vmatprep.subr.bf16.mxu0 0
        %2928 = vmatpush1.bf16.msra.mxu0 0
        %2929 = vmatprep.subr.bf16.mxu0 0
        %2930 = vmatpush1.bf16.msra.mxu0 0
        %2931 = vmatprep.subr.bf16.mxu0 0
        %2932 = vmatpush1.bf16.msra.mxu0 0
        %2933 = vmatprep.subr.bf16.mxu0 0
        %2934 = vmatpush1.bf16.msra.mxu0 %v307
        %2935 = vmatprep.subr.bf16.mxu0 0
        %2936 = vmatpush1.bf16.msra.mxu0 %v295
        %2937 = vmatprep.subr.bf16.mxu0 0
        %2938 = vmatpush1.bf16.msra.mxu0 %v294
        %2939 = vmatprep.subr.bf16.mxu0 0
        %2940 = vmatpush2.bf16.msra.mxu0 0
        %2941 = vmatprep.subr.bf16.mxu0 0
        %2942 = vmatpush2.bf16.msra.mxu0 0
        %2943 = vmatprep.subr.bf16.mxu0 0
        %2944 = vmatpush2.bf16.msra.mxu0 0
        %2945 = vmatprep.subr.bf16.mxu0 0
        %2946 = vmatpush2.bf16.msra.mxu0 0
        %2947 = vmatprep.subr.bf16.mxu0 0
        %2948 = vmatpush2.bf16.msra.mxu0 0
        %2949 = vmatprep.subr.bf16.mxu0 0
        %2950 = vmatpush2.bf16.msra.mxu0 0
        %2951 = vmatprep.subr.bf16.mxu0 0
        %2952 = vmatpush2.bf16.msra.mxu0 0
        %2953 = vmatprep.subr.bf16.mxu0 0
        %2954 = vmatpush2.bf16.msra.mxu0 0
        %2955 = vmatprep.mubr.bf16.mxu0 0
        %2956 = vmatmul.mubr.bf16.gmra.mxu0 %v2921
        %v2957 = vpop.f32.mrf.mxu0
        %v2958 = vadd.f32 0.0, %v2957
        %v2959 = vpop.f32.mrf.mxu0
        %v2960 = vpop.f32.mrf.mxu0
        %v2961 = vpop.f32.mrf.mxu0
        %2962 = vdwg.mxu0
        %v2964 = vsel %vm299, %v2918, 0
        %2966 = vmatprep.subr.bf16.mxu0 0
        %2967 = vmatpush1.bf16.msra.mxu0 0
        %2968 = vmatprep.subr.bf16.mxu0 0
        %2969 = vmatpush1.bf16.msra.mxu0 0
        %2970 = vmatprep.subr.bf16.mxu0 0
        %2971 = vmatpush1.bf16.msra.mxu0 0
        %2972 = vmatprep.subr.bf16.mxu0 0
        %2973 = vmatpush1.bf16.msra.mxu0 0
        %2974 = vmatprep.subr.bf16.mxu0 0
        %2975 = vmatpush1.bf16.msra.mxu0 0
        %2976 = vmatprep.subr.bf16.mxu0 0
        %2977 = vmatpush1.bf16.msra.mxu0 %v368
        %2978 = vmatprep.subr.bf16.mxu0 0
        %2979 = vmatpush1.bf16.msra.mxu0 %v360
        %2980 = vmatprep.subr.bf16.mxu0 0
        %2981 = vmatpush1.bf16.msra.mxu0 %v359
        %2982 = vmatprep.subr.bf16.mxu0 0
        %2983 = vmatpush2.bf16.msra.mxu0 0
        %2984 = vmatprep.subr.bf16.mxu0 0
        %2985 = vmatpush2.bf16.msra.mxu0 0
        %2986 = vmatprep.subr.bf16.mxu0 0
        %2987 = vmatpush2.bf16.msra.mxu0 0
        %2988 = vmatprep.subr.bf16.mxu0 0
        %2989 = vmatpush2.bf16.msra.mxu0 0
        %2990 = vmatprep.subr.bf16.mxu0 0
        %2991 = vmatpush2.bf16.msra.mxu0 0
        %2992 = vmatprep.subr.bf16.mxu0 0
        %2993 = vmatpush2.bf16.msra.mxu0 0
        %2994 = vmatprep.subr.bf16.mxu0 0
        %2995 = vmatpush2.bf16.msra.mxu0 0
        %2996 = vmatprep.subr.bf16.mxu0 0
        %2997 = vmatpush2.bf16.msra.mxu0 0
        %2998 = vmatprep.mubr.bf16.mxu0 0
        %2999 = vmatmul.mubr.bf16.gmra.mxu0 %v2964
        %v3000 = vpop.f32.mrf.mxu0
        %v3001 = vadd.f32 %v2958, %v3000
        %v3002 = vpop.f32.mrf.mxu0
        %v3003 = vpop.f32.mrf.mxu0
        %v3004 = vpop.f32.mrf.mxu0
        %3005 = vdwg.mxu0
        %v3006 = vadd.f32 %v3001, %v258
        %v3007 = vtanh.pop %v3006
        %v3008 = vadd.f32 %v3001, %v2915
        %v3009 = vadd.f32 %v3008, %v2917
        %v3010 = vsub.f32 -inf, %v3009
        %v3011 = vmul.f32 %v3010, 1.442695
        %v3012 = vpow.pop %v3011
        %v3013 = vsub.f32 %v3009, %v3009
        %v3014 = vmul.f32 %v3013, 1.442695
        %v3015 = vpow.pop %v3014
        %v3016 = vmul.f32 %v3012, 0.0
        %v3017 = vadd.f32 %v3016, %v3015
        %3019 = vset.pattern.permute.xlu0 32
        %3020 = vperm.xlu0 %3019, %v3012
        %v3021 = vpop.permute.xlu0 %3020
        %v3023 = vmul.f32 %v3021, 0.0
        %3025 = vset.pattern.permute.xlu0 32
        %3026 = vperm.xlu0 %3025, %v3015
        %v3027 = vpop.permute.xlu0 %3026
        %v3029 = vmul.f32 %v3027, %v3007
        %v3030 = vadd.f32 %v3023, %v3029
        %v3031 = vmul.f32 %v3015, %v3009
        %v3032 = vadd.f32 %v3016, %v3031
        %v3033 = vld [vmem:[%s450] sm:$0xff]
        %v3034 = vld [vmem:[%s2180] sm:$0xff]
        %v3035 = vrot.slane %v3034, 2
        %v3036 = vpack.c.bf16 %v3033, %v3033
        %v3037 = vpack.c.bf16 %v3035, %v3035
        %v3039 = vsel %vm299, %v3037, 0
        %3041 = vmatprep.subr.bf16.mxu0 0
        %3042 = vmatpush1.bf16.msra.mxu0 0
        %3043 = vmatprep.subr.bf16.mxu0 0
        %3044 = vmatpush1.bf16.msra.mxu0 0
        %3045 = vmatprep.subr.bf16.mxu0 0
        %3046 = vmatpush1.bf16.msra.mxu0 0
        %3047 = vmatprep.subr.bf16.mxu0 0
        %3048 = vmatpush1.bf16.msra.mxu0 0
        %3049 = vmatprep.subr.bf16.mxu0 0
        %3050 = vmatpush1.bf16.msra.mxu0 0
        %3051 = vmatprep.subr.bf16.mxu0 0
        %3052 = vmatpush1.bf16.msra.mxu0 %v307
        %3053 = vmatprep.subr.bf16.mxu0 0
        %3054 = vmatpush1.bf16.msra.mxu0 %v295
        %3055 = vmatprep.subr.bf16.mxu0 0
        %3056 = vmatpush1.bf16.msra.mxu0 %v294
        %3057 = vmatprep.subr.bf16.mxu0 0
        %3058 = vmatpush2.bf16.msra.mxu0 0
        %3059 = vmatprep.subr.bf16.mxu0 0
        %3060 = vmatpush2.bf16.msra.mxu0 0
        %3061 = vmatprep.subr.bf16.mxu0 0
        %3062 = vmatpush2.bf16.msra.mxu0 0
        %3063 = vmatprep.subr.bf16.mxu0 0
        %3064 = vmatpush2.bf16.msra.mxu0 0
        %3065 = vmatprep.subr.bf16.mxu0 0
        %3066 = vmatpush2.bf16.msra.mxu0 0
        %3067 = vmatprep.subr.bf16.mxu0 0
        %3068 = vmatpush2.bf16.msra.mxu0 0
        %3069 = vmatprep.subr.bf16.mxu0 0
        %3070 = vmatpush2.bf16.msra.mxu0 0
        %3071 = vmatprep.subr.bf16.mxu0 0
        %3072 = vmatpush2.bf16.msra.mxu0 0
        %3073 = vmatprep.mubr.bf16.mxu0 0
        %3074 = vmatmul.mubr.bf16.gmra.mxu0 %v3039
        %v3075 = vpop.f32.mrf.mxu0
        %v3076 = vadd.f32 0.0, %v3075
        %v3077 = vpop.f32.mrf.mxu0
        %v3078 = vpop.f32.mrf.mxu0
        %v3079 = vpop.f32.mrf.mxu0
        %3080 = vdwg.mxu0
        %v3082 = vsel %vm299, %v3036, 0
        %3084 = vmatprep.subr.bf16.mxu0 0
        %3085 = vmatpush1.bf16.msra.mxu0 0
        %3086 = vmatprep.subr.bf16.mxu0 0
        %3087 = vmatpush1.bf16.msra.mxu0 0
        %3088 = vmatprep.subr.bf16.mxu0 0
        %3089 = vmatpush1.bf16.msra.mxu0 0
        %3090 = vmatprep.subr.bf16.mxu0 0
        %3091 = vmatpush1.bf16.msra.mxu0 0
        %3092 = vmatprep.subr.bf16.mxu0 0
        %3093 = vmatpush1.bf16.msra.mxu0 0
        %3094 = vmatprep.subr.bf16.mxu0 0
        %3095 = vmatpush1.bf16.msra.mxu0 %v368
        %3096 = vmatprep.subr.bf16.mxu0 0
        %3097 = vmatpush1.bf16.msra.mxu0 %v360
        %3098 = vmatprep.subr.bf16.mxu0 0
        %3099 = vmatpush1.bf16.msra.mxu0 %v359
        %3100 = vmatprep.subr.bf16.mxu0 0
        %3101 = vmatpush2.bf16.msra.mxu0 0
        %3102 = vmatprep.subr.bf16.mxu0 0
        %3103 = vmatpush2.bf16.msra.mxu0 0
        %3104 = vmatprep.subr.bf16.mxu0 0
        %3105 = vmatpush2.bf16.msra.mxu0 0
        %3106 = vmatprep.subr.bf16.mxu0 0
        %3107 = vmatpush2.bf16.msra.mxu0 0
        %3108 = vmatprep.subr.bf16.mxu0 0
        %3109 = vmatpush2.bf16.msra.mxu0 0
        %3110 = vmatprep.subr.bf16.mxu0 0
        %3111 = vmatpush2.bf16.msra.mxu0 0
        %3112 = vmatprep.subr.bf16.mxu0 0
        %3113 = vmatpush2.bf16.msra.mxu0 0
        %3114 = vmatprep.subr.bf16.mxu0 0
        %3115 = vmatpush2.bf16.msra.mxu0 0
        %3116 = vmatprep.mubr.bf16.mxu0 0
        %3117 = vmatmul.mubr.bf16.gmra.mxu0 %v3082
        %v3118 = vpop.f32.mrf.mxu0
        %v3119 = vadd.f32 %v3076, %v3118
        %v3120 = vpop.f32.mrf.mxu0
        %v3121 = vpop.f32.mrf.mxu0
        %v3122 = vpop.f32.mrf.mxu0
        %3123 = vdwg.mxu0
        %v3124 = vadd.f32 %v3119, %v258
        %v3125 = vtanh.pop %v3124
        %v3126 = vadd.f32 %v3119, %v3033
        %v3127 = vadd.f32 %v3126, %v3035
        %v3128 = vmax.f32 %v3009, %v3127
        %v3129 = vsub.f32 %v3009, %v3128
        %v3130 = vmul.f32 %v3129, 1.442695
        %v3131 = vpow.pop %v3130
        %v3132 = vsub.f32 %v3127, %v3128
        %v3133 = vmul.f32 %v3132, 1.442695
        %v3134 = vpow.pop %v3133
        %v3135 = vmul.f32 %v3131, %v3017
        %v3136 = vadd.f32 %v3135, %v3134
        %3138 = vset.pattern.permute.xlu0 32
        %3139 = vperm.xlu0 %3138, %v3131
        %v3140 = vpop.permute.xlu0 %3139
        %v3142 = vmul.f32 %v3140, %v3030
        %3144 = vset.pattern.permute.xlu0 32
        %3145 = vperm.xlu0 %3144, %v3134
        %v3146 = vpop.permute.xlu0 %3145
        %v3148 = vmul.f32 %v3146, %v3125
        %v3149 = vadd.f32 %v3142, %v3148
        %v3150 = vmul.f32 %v3131, %v3032
        %v3151 = vmul.f32 %v3134, %v3127
        %v3152 = vadd.f32 %v3150, %v3151
        %v3153 = vld [vmem:[%s704] sm:$0xff]
        %v3154 = vld [vmem:[%s1569] sm:$0xff]
        %v3155 = vrot.slane %v3154, 3
        %v3156 = vpack.c.bf16 %v3153, %v3153
        %v3157 = vpack.c.bf16 %v3155, %v3155
        %v3159 = vsel %vm299, %v3157, 0
        %3161 = vmatprep.subr.bf16.mxu0 0
        %3162 = vmatpush1.bf16.msra.mxu0 0
        %3163 = vmatprep.subr.bf16.mxu0 0
        %3164 = vmatpush1.bf16.msra.mxu0 0
        %3165 = vmatprep.subr.bf16.mxu0 0
        %3166 = vmatpush1.bf16.msra.mxu0 0
        %3167 = vmatprep.subr.bf16.mxu0 0
        %3168 = vmatpush1.bf16.msra.mxu0 0
        %3169 = vmatprep.subr.bf16.mxu0 0
        %3170 = vmatpush1.bf16.msra.mxu0 0
        %3171 = vmatprep.subr.bf16.mxu0 0
        %3172 = vmatpush1.bf16.msra.mxu0 %v307
        %3173 = vmatprep.subr.bf16.mxu0 0
        %3174 = vmatpush1.bf16.msra.mxu0 %v295
        %3175 = vmatprep.subr.bf16.mxu0 0
        %3176 = vmatpush1.bf16.msra.mxu0 %v294
        %3177 = vmatprep.subr.bf16.mxu0 0
        %3178 = vmatpush2.bf16.msra.mxu0 0
        %3179 = vmatprep.subr.bf16.mxu0 0
        %3180 = vmatpush2.bf16.msra.mxu0 0
        %3181 = vmatprep.subr.bf16.mxu0 0
        %3182 = vmatpush2.bf16.msra.mxu0 0
        %3183 = vmatprep.subr.bf16.mxu0 0
        %3184 = vmatpush2.bf16.msra.mxu0 0
        %3185 = vmatprep.subr.bf16.mxu0 0
        %3186 = vmatpush2.bf16.msra.mxu0 0
        %3187 = vmatprep.subr.bf16.mxu0 0
        %3188 = vmatpush2.bf16.msra.mxu0 0
        %3189 = vmatprep.subr.bf16.mxu0 0
        %3190 = vmatpush2.bf16.msra.mxu0 0
        %3191 = vmatprep.subr.bf16.mxu0 0
        %3192 = vmatpush2.bf16.msra.mxu0 0
        %3193 = vmatprep.mubr.bf16.mxu0 0
        %3194 = vmatmul.mubr.bf16.gmra.mxu0 %v3159
        %v3195 = vpop.f32.mrf.mxu0
        %v3196 = vadd.f32 0.0, %v3195
        %v3197 = vpop.f32.mrf.mxu0
        %v3198 = vpop.f32.mrf.mxu0
        %v3199 = vpop.f32.mrf.mxu0
        %3200 = vdwg.mxu0
        %v3202 = vsel %vm299, %v3156, 0
        %3204 = vmatprep.subr.bf16.mxu0 0
        %3205 = vmatpush1.bf16.msra.mxu0 0
        %3206 = vmatprep.subr.bf16.mxu0 0
        %3207 = vmatpush1.bf16.msra.mxu0 0
        %3208 = vmatprep.subr.bf16.mxu0 0
        %3209 = vmatpush1.bf16.msra.mxu0 0
        %3210 = vmatprep.subr.bf16.mxu0 0
        %3211 = vmatpush1.bf16.msra.mxu0 0
        %3212 = vmatprep.subr.bf16.mxu0 0
        %3213 = vmatpush1.bf16.msra.mxu0 0
        %3214 = vmatprep.subr.bf16.mxu0 0
        %3215 = vmatpush1.bf16.msra.mxu0 %v368
        %3216 = vmatprep.subr.bf16.mxu0 0
        %3217 = vmatpush1.bf16.msra.mxu0 %v360
        %3218 = vmatprep.subr.bf16.mxu0 0
        %3219 = vmatpush1.bf16.msra.mxu0 %v359
        %3220 = vmatprep.subr.bf16.mxu0 0
        %3221 = vmatpush2.bf16.msra.mxu0 0
        %3222 = vmatprep.subr.bf16.mxu0 0
        %3223 = vmatpush2.bf16.msra.mxu0 0
        %3224 = vmatprep.subr.bf16.mxu0 0
        %3225 = vmatpush2.bf16.msra.mxu0 0
        %3226 = vmatprep.subr.bf16.mxu0 0
        %3227 = vmatpush2.bf16.msra.mxu0 0
        %3228 = vmatprep.subr.bf16.mxu0 0
        %3229 = vmatpush2.bf16.msra.mxu0 0
        %3230 = vmatprep.subr.bf16.mxu0 0
        %3231 = vmatpush2.bf16.msra.mxu0 0
        %3232 = vmatprep.subr.bf16.mxu0 0
        %3233 = vmatpush2.bf16.msra.mxu0 0
        %3234 = vmatprep.subr.bf16.mxu0 0
        %3235 = vmatpush2.bf16.msra.mxu0 0
        %3236 = vmatprep.mubr.bf16.mxu0 0
        %3237 = vmatmul.mubr.bf16.gmra.mxu0 %v3202
        %v3238 = vpop.f32.mrf.mxu0
        %v3239 = vadd.f32 %v3196, %v3238
        %v3240 = vpop.f32.mrf.mxu0
        %v3241 = vpop.f32.mrf.mxu0
        %v3242 = vpop.f32.mrf.mxu0
        %3243 = vdwg.mxu0
        %v3244 = vadd.f32 %v3239, %v258
        %v3245 = vtanh.pop %v3244
        %v3246 = vadd.f32 %v3239, %v3153
        %v3247 = vadd.f32 %v3246, %v3155
        %v3248 = vmax.f32 %v3128, %v3247
        %v3249 = vsub.f32 %v3128, %v3248
        %v3250 = vmul.f32 %v3249, 1.442695
        %v3251 = vpow.pop %v3250
        %v3252 = vsub.f32 %v3247, %v3248
        %v3253 = vmul.f32 %v3252, 1.442695
        %v3254 = vpow.pop %v3253
        %v3255 = vmul.f32 %v3251, %v3136
        %v3256 = vadd.f32 %v3255, %v3254
        %3258 = vset.pattern.permute.xlu0 32
        %3259 = vperm.xlu0 %3258, %v3251
        %v3260 = vpop.permute.xlu0 %3259
        %v3262 = vmul.f32 %v3260, %v3149
        %3264 = vset.pattern.permute.xlu0 32
        %3265 = vperm.xlu0 %3264, %v3254
        %v3266 = vpop.permute.xlu0 %3265
        %v3268 = vmul.f32 %v3266, %v3245
        %v3269 = vadd.f32 %v3262, %v3268
        %v3270 = vmul.f32 %v3251, %v3152
        %v3271 = vmul.f32 %v3254, %v3247
        %v3272 = vadd.f32 %v3270, %v3271
        %v3273 = vld [vmem:[%s1077] sm:$0xff]
        %v3274 = vrot.slane %v3273, 4
        %v3275 = vpack.c.bf16 %v3273, %v3273
        %v3276 = vpack.c.bf16 %v3274, %v3274
        %v3278 = vsel %vm299, %v3276, 0
        %3280 = vmatprep.subr.bf16.mxu0 0
        %3281 = vmatpush1.bf16.msra.mxu0 0
        %3282 = vmatprep.subr.bf16.mxu0 0
        %3283 = vmatpush1.bf16.msra.mxu0 0
        %3284 = vmatprep.subr.bf16.mxu0 0
        %3285 = vmatpush1.bf16.msra.mxu0 0
        %3286 = vmatprep.subr.bf16.mxu0 0
        %3287 = vmatpush1.bf16.msra.mxu0 0
        %3288 = vmatprep.subr.bf16.mxu0 0
        %3289 = vmatpush1.bf16.msra.mxu0 0
        %3290 = vmatprep.subr.bf16.mxu0 0
        %3291 = vmatpush1.bf16.msra.mxu0 %v307
        %3292 = vmatprep.subr.bf16.mxu0 0
        %3293 = vmatpush1.bf16.msra.mxu0 %v295
        %3294 = vmatprep.subr.bf16.mxu0 0
        %3295 = vmatpush1.bf16.msra.mxu0 %v294
        %3296 = vmatprep.subr.bf16.mxu0 0
        %3297 = vmatpush2.bf16.msra.mxu0 0
        %3298 = vmatprep.subr.bf16.mxu0 0
        %3299 = vmatpush2.bf16.msra.mxu0 0
        %3300 = vmatprep.subr.bf16.mxu0 0
        %3301 = vmatpush2.bf16.msra.mxu0 0
        %3302 = vmatprep.subr.bf16.mxu0 0
        %3303 = vmatpush2.bf16.msra.mxu0 0
        %3304 = vmatprep.subr.bf16.mxu0 0
        %3305 = vmatpush2.bf16.msra.mxu0 0
        %3306 = vmatprep.subr.bf16.mxu0 0
        %3307 = vmatpush2.bf16.msra.mxu0 0
        %3308 = vmatprep.subr.bf16.mxu0 0
        %3309 = vmatpush2.bf16.msra.mxu0 0
        %3310 = vmatprep.subr.bf16.mxu0 0
        %3311 = vmatpush2.bf16.msra.mxu0 0
        %3312 = vmatprep.mubr.bf16.mxu0 0
        %3313 = vmatmul.mubr.bf16.gmra.mxu0 %v3278
        %v3314 = vpop.f32.mrf.mxu0
        %v3315 = vadd.f32 0.0, %v3314
        %v3316 = vpop.f32.mrf.mxu0
        %v3317 = vpop.f32.mrf.mxu0
        %v3318 = vpop.f32.mrf.mxu0
        %3319 = vdwg.mxu0
        %v3321 = vsel %vm299, %v3275, 0
        %3323 = vmatprep.subr.bf16.mxu0 0
        %3324 = vmatpush1.bf16.msra.mxu0 0
        %3325 = vmatprep.subr.bf16.mxu0 0
        %3326 = vmatpush1.bf16.msra.mxu0 0
        %3327 = vmatprep.subr.bf16.mxu0 0
        %3328 = vmatpush1.bf16.msra.mxu0 0
        %3329 = vmatprep.subr.bf16.mxu0 0
        %3330 = vmatpush1.bf16.msra.mxu0 0
        %3331 = vmatprep.subr.bf16.mxu0 0
        %3332 = vmatpush1.bf16.msra.mxu0 0
        %3333 = vmatprep.subr.bf16.mxu0 0
        %3334 = vmatpush1.bf16.msra.mxu0 %v368
        %3335 = vmatprep.subr.bf16.mxu0 0
        %3336 = vmatpush1.bf16.msra.mxu0 %v360
        %3337 = vmatprep.subr.bf16.mxu0 0
        %3338 = vmatpush1.bf16.msra.mxu0 %v359
        %3339 = vmatprep.subr.bf16.mxu0 0
        %3340 = vmatpush2.bf16.msra.mxu0 0
        %3341 = vmatprep.subr.bf16.mxu0 0
        %3342 = vmatpush2.bf16.msra.mxu0 0
        %3343 = vmatprep.subr.bf16.mxu0 0
        %3344 = vmatpush2.bf16.msra.mxu0 0
        %3345 = vmatprep.subr.bf16.mxu0 0
        %3346 = vmatpush2.bf16.msra.mxu0 0
        %3347 = vmatprep.subr.bf16.mxu0 0
        %3348 = vmatpush2.bf16.msra.mxu0 0
        %3349 = vmatprep.subr.bf16.mxu0 0
        %3350 = vmatpush2.bf16.msra.mxu0 0
        %3351 = vmatprep.subr.bf16.mxu0 0
        %3352 = vmatpush2.bf16.msra.mxu0 0
        %3353 = vmatprep.subr.bf16.mxu0 0
        %3354 = vmatpush2.bf16.msra.mxu0 0
        %3355 = vmatprep.mubr.bf16.mxu0 0
        %3356 = vmatmul.mubr.bf16.gmra.mxu0 %v3321
        %v3357 = vpop.f32.mrf.mxu0
        %v3358 = vadd.f32 %v3315, %v3357
        %v3359 = vpop.f32.mrf.mxu0
        %v3360 = vpop.f32.mrf.mxu0
        %v3361 = vpop.f32.mrf.mxu0
        %3362 = vdwg.mxu0
        %v3363 = vadd.f32 %v3358, %v258
        %v3364 = vtanh.pop %v3363
        %v3365 = vadd.f32 %v3358, %v3273
        %v3366 = vadd.f32 %v3365, %v3274
        %v3367 = vmax.f32 %v3248, %v3366
        %v3368 = vsub.f32 %v3248, %v3367
        %v3369 = vmul.f32 %v3368, 1.442695
        %v3370 = vpow.pop %v3369
        %v3371 = vsub.f32 %v3366, %v3367
        %v3372 = vmul.f32 %v3371, 1.442695
        %v3373 = vpow.pop %v3372
        %v3374 = vmul.f32 %v3370, %v3256
        %v3375 = vadd.f32 %v3374, %v3373
        %3377 = vset.pattern.permute.xlu0 32
        %3378 = vperm.xlu0 %3377, %v3370
        %v3379 = vpop.permute.xlu0 %3378
        %v3381 = vmul.f32 %v3379, %v3269
        %3383 = vset.pattern.permute.xlu0 32
        %3384 = vperm.xlu0 %3383, %v3373
        %v3385 = vpop.permute.xlu0 %3384
        %v3387 = vmul.f32 %v3385, %v3364
        %v3388 = vadd.f32 %v3381, %v3387
        %v3389 = vmul.f32 %v3370, %v3272
        %v3390 = vmul.f32 %v3373, %v3366
        %v3391 = vadd.f32 %v3389, %v3390
        %v3392 = vrot.slane %v3153, 5
        %v3393 = vpack.c.bf16 %v3154, %v3154
        %v3394 = vpack.c.bf16 %v3392, %v3392
        %v3396 = vsel %vm299, %v3394, 0
        %3398 = vmatprep.subr.bf16.mxu0 0
        %3399 = vmatpush1.bf16.msra.mxu0 0
        %3400 = vmatprep.subr.bf16.mxu0 0
        %3401 = vmatpush1.bf16.msra.mxu0 0
        %3402 = vmatprep.subr.bf16.mxu0 0
        %3403 = vmatpush1.bf16.msra.mxu0 0
        %3404 = vmatprep.subr.bf16.mxu0 0
        %3405 = vmatpush1.bf16.msra.mxu0 0
        %3406 = vmatprep.subr.bf16.mxu0 0
        %3407 = vmatpush1.bf16.msra.mxu0 0
        %3408 = vmatprep.subr.bf16.mxu0 0
        %3409 = vmatpush1.bf16.msra.mxu0 %v307
        %3410 = vmatprep.subr.bf16.mxu0 0
        %3411 = vmatpush1.bf16.msra.mxu0 %v295
        %3412 = vmatprep.subr.bf16.mxu0 0
        %3413 = vmatpush1.bf16.msra.mxu0 %v294
        %3414 = vmatprep.subr.bf16.mxu0 0
        %3415 = vmatpush2.bf16.msra.mxu0 0
        %3416 = vmatprep.subr.bf16.mxu0 0
        %3417 = vmatpush2.bf16.msra.mxu0 0
        %3418 = vmatprep.subr.bf16.mxu0 0
        %3419 = vmatpush2.bf16.msra.mxu0 0
        %3420 = vmatprep.subr.bf16.mxu0 0
        %3421 = vmatpush2.bf16.msra.mxu0 0
        %3422 = vmatprep.subr.bf16.mxu0 0
        %3423 = vmatpush2.bf16.msra.mxu0 0
        %3424 = vmatprep.subr.bf16.mxu0 0
        %3425 = vmatpush2.bf16.msra.mxu0 0
        %3426 = vmatprep.subr.bf16.mxu0 0
        %3427 = vmatpush2.bf16.msra.mxu0 0
        %3428 = vmatprep.subr.bf16.mxu0 0
        %3429 = vmatpush2.bf16.msra.mxu0 0
        %3430 = vmatprep.mubr.bf16.mxu0 0
        %3431 = vmatmul.mubr.bf16.gmra.mxu0 %v3396
        %v3432 = vpop.f32.mrf.mxu0
        %v3433 = vadd.f32 0.0, %v3432
        %v3434 = vpop.f32.mrf.mxu0
        %v3435 = vpop.f32.mrf.mxu0
        %v3436 = vpop.f32.mrf.mxu0
        %3437 = vdwg.mxu0
        %v3439 = vsel %vm299, %v3393, 0
        %3441 = vmatprep.subr.bf16.mxu0 0
        %3442 = vmatpush1.bf16.msra.mxu0 0
        %3443 = vmatprep.subr.bf16.mxu0 0
        %3444 = vmatpush1.bf16.msra.mxu0 0
        %3445 = vmatprep.subr.bf16.mxu0 0
        %3446 = vmatpush1.bf16.msra.mxu0 0
        %3447 = vmatprep.subr.bf16.mxu0 0
        %3448 = vmatpush1.bf16.msra.mxu0 0
        %3449 = vmatprep.subr.bf16.mxu0 0
        %3450 = vmatpush1.bf16.msra.mxu0 0
        %3451 = vmatprep.subr.bf16.mxu0 0
        %3452 = vmatpush1.bf16.msra.mxu0 %v368
        %3453 = vmatprep.subr.bf16.mxu0 0
        %3454 = vmatpush1.bf16.msra.mxu0 %v360
        %3455 = vmatprep.subr.bf16.mxu0 0
        %3456 = vmatpush1.bf16.msra.mxu0 %v359
        %3457 = vmatprep.subr.bf16.mxu0 0
        %3458 = vmatpush2.bf16.msra.mxu0 0
        %3459 = vmatprep.subr.bf16.mxu0 0
        %3460 = vmatpush2.bf16.msra.mxu0 0
        %3461 = vmatprep.subr.bf16.mxu0 0
        %3462 = vmatpush2.bf16.msra.mxu0 0
        %3463 = vmatprep.subr.bf16.mxu0 0
        %3464 = vmatpush2.bf16.msra.mxu0 0
        %3465 = vmatprep.subr.bf16.mxu0 0
        %3466 = vmatpush2.bf16.msra.mxu0 0
        %3467 = vmatprep.subr.bf16.mxu0 0
        %3468 = vmatpush2.bf16.msra.mxu0 0
        %3469 = vmatprep.subr.bf16.mxu0 0
        %3470 = vmatpush2.bf16.msra.mxu0 0
        %3471 = vmatprep.subr.bf16.mxu0 0
        %3472 = vmatpush2.bf16.msra.mxu0 0
        %3473 = vmatprep.mubr.bf16.mxu0 0
        %3474 = vmatmul.mubr.bf16.gmra.mxu0 %v3439
        %v3475 = vpop.f32.mrf.mxu0
        %v3476 = vadd.f32 %v3433, %v3475
        %v3477 = vpop.f32.mrf.mxu0
        %v3478 = vpop.f32.mrf.mxu0
        %v3479 = vpop.f32.mrf.mxu0
        %3480 = vdwg.mxu0
        %v3481 = vadd.f32 %v3476, %v258
        %v3482 = vtanh.pop %v3481
        %v3483 = vadd.f32 %v3476, %v3154
        %v3484 = vadd.f32 %v3483, %v3392
        %v3485 = vmax.f32 %v3367, %v3484
        %v3486 = vsub.f32 %v3367, %v3485
        %v3487 = vmul.f32 %v3486, 1.442695
        %v3488 = vpow.pop %v3487
        %v3489 = vsub.f32 %v3484, %v3485
        %v3490 = vmul.f32 %v3489, 1.442695
        %v3491 = vpow.pop %v3490
        %v3492 = vmul.f32 %v3488, %v3375
        %v3493 = vadd.f32 %v3492, %v3491
        %3495 = vset.pattern.permute.xlu0 32
        %3496 = vperm.xlu0 %3495, %v3488
        %v3497 = vpop.permute.xlu0 %3496
        %v3499 = vmul.f32 %v3497, %v3388
        %3501 = vset.pattern.permute.xlu0 32
        %3502 = vperm.xlu0 %3501, %v3491
        %v3503 = vpop.permute.xlu0 %3502
        %v3505 = vmul.f32 %v3503, %v3482
        %v3506 = vadd.f32 %v3499, %v3505
        %v3507 = vmul.f32 %v3488, %v3391
        %v3508 = vmul.f32 %v3491, %v3484
        %v3509 = vadd.f32 %v3507, %v3508
        %v3510 = vrot.slane %v3033, 6
        %v3511 = vpack.c.bf16 %v3034, %v3034
        %v3512 = vpack.c.bf16 %v3510, %v3510
        %v3514 = vsel %vm299, %v3512, 0
        %3516 = vmatprep.subr.bf16.mxu0 0
        %3517 = vmatpush1.bf16.msra.mxu0 0
        %3518 = vmatprep.subr.bf16.mxu0 0
        %3519 = vmatpush1.bf16.msra.mxu0 0
        %3520 = vmatprep.subr.bf16.mxu0 0
        %3521 = vmatpush1.bf16.msra.mxu0 0
        %3522 = vmatprep.subr.bf16.mxu0 0
        %3523 = vmatpush1.bf16.msra.mxu0 0
        %3524 = vmatprep.subr.bf16.mxu0 0
        %3525 = vmatpush1.bf16.msra.mxu0 0
        %3526 = vmatprep.subr.bf16.mxu0 0
        %3527 = vmatpush1.bf16.msra.mxu0 %v307
        %3528 = vmatprep.subr.bf16.mxu0 0
        %3529 = vmatpush1.bf16.msra.mxu0 %v295
        %3530 = vmatprep.subr.bf16.mxu0 0
        %3531 = vmatpush1.bf16.msra.mxu0 %v294
        %3532 = vmatprep.subr.bf16.mxu0 0
        %3533 = vmatpush2.bf16.msra.mxu0 0
        %3534 = vmatprep.subr.bf16.mxu0 0
        %3535 = vmatpush2.bf16.msra.mxu0 0
        %3536 = vmatprep.subr.bf16.mxu0 0
        %3537 = vmatpush2.bf16.msra.mxu0 0
        %3538 = vmatprep.subr.bf16.mxu0 0
        %3539 = vmatpush2.bf16.msra.mxu0 0
        %3540 = vmatprep.subr.bf16.mxu0 0
        %3541 = vmatpush2.bf16.msra.mxu0 0
        %3542 = vmatprep.subr.bf16.mxu0 0
        %3543 = vmatpush2.bf16.msra.mxu0 0
        %3544 = vmatprep.subr.bf16.mxu0 0
        %3545 = vmatpush2.bf16.msra.mxu0 0
        %3546 = vmatprep.subr.bf16.mxu0 0
        %3547 = vmatpush2.bf16.msra.mxu0 0
        %3548 = vmatprep.mubr.bf16.mxu0 0
        %3549 = vmatmul.mubr.bf16.gmra.mxu0 %v3514
        %v3550 = vpop.f32.mrf.mxu0
        %v3551 = vadd.f32 0.0, %v3550
        %v3552 = vpop.f32.mrf.mxu0
        %v3553 = vpop.f32.mrf.mxu0
        %v3554 = vpop.f32.mrf.mxu0
        %3555 = vdwg.mxu0
        %v3557 = vsel %vm299, %v3511, 0
        %3559 = vmatprep.subr.bf16.mxu0 0
        %3560 = vmatpush1.bf16.msra.mxu0 0
        %3561 = vmatprep.subr.bf16.mxu0 0
        %3562 = vmatpush1.bf16.msra.mxu0 0
        %3563 = vmatprep.subr.bf16.mxu0 0
        %3564 = vmatpush1.bf16.msra.mxu0 0
        %3565 = vmatprep.subr.bf16.mxu0 0
        %3566 = vmatpush1.bf16.msra.mxu0 0
        %3567 = vmatprep.subr.bf16.mxu0 0
        %3568 = vmatpush1.bf16.msra.mxu0 0
        %3569 = vmatprep.subr.bf16.mxu0 0
        %3570 = vmatpush1.bf16.msra.mxu0 %v368
        %3571 = vmatprep.subr.bf16.mxu0 0
        %3572 = vmatpush1.bf16.msra.mxu0 %v360
        %3573 = vmatprep.subr.bf16.mxu0 0
        %3574 = vmatpush1.bf16.msra.mxu0 %v359
        %3575 = vmatprep.subr.bf16.mxu0 0
        %3576 = vmatpush2.bf16.msra.mxu0 0
        %3577 = vmatprep.subr.bf16.mxu0 0
        %3578 = vmatpush2.bf16.msra.mxu0 0
        %3579 = vmatprep.subr.bf16.mxu0 0
        %3580 = vmatpush2.bf16.msra.mxu0 0
        %3581 = vmatprep.subr.bf16.mxu0 0
        %3582 = vmatpush2.bf16.msra.mxu0 0
        %3583 = vmatprep.subr.bf16.mxu0 0
        %3584 = vmatpush2.bf16.msra.mxu0 0
        %3585 = vmatprep.subr.bf16.mxu0 0
        %3586 = vmatpush2.bf16.msra.mxu0 0
        %3587 = vmatprep.subr.bf16.mxu0 0
        %3588 = vmatpush2.bf16.msra.mxu0 0
        %3589 = vmatprep.subr.bf16.mxu0 0
        %3590 = vmatpush2.bf16.msra.mxu0 0
        %3591 = vmatprep.mubr.bf16.mxu0 0
        %3592 = vmatmul.mubr.bf16.gmra.mxu0 %v3557
        %v3593 = vpop.f32.mrf.mxu0
        %v3594 = vadd.f32 %v3551, %v3593
        %v3595 = vpop.f32.mrf.mxu0
        %v3596 = vpop.f32.mrf.mxu0
        %v3597 = vpop.f32.mrf.mxu0
        %3598 = vdwg.mxu0
        %v3599 = vadd.f32 %v3594, %v258
        %v3600 = vtanh.pop %v3599
        %v3601 = vadd.f32 %v3594, %v3034
        %v3602 = vadd.f32 %v3601, %v3510
        %v3603 = vmax.f32 %v3485, %v3602
        %v3604 = vsub.f32 %v3485, %v3603
        %v3605 = vmul.f32 %v3604, 1.442695
        %v3606 = vpow.pop %v3605
        %v3607 = vsub.f32 %v3602, %v3603
        %v3608 = vmul.f32 %v3607, 1.442695
        %v3609 = vpow.pop %v3608
        %v3610 = vmul.f32 %v3606, %v3493
        %v3611 = vadd.f32 %v3610, %v3609
        %3613 = vset.pattern.permute.xlu0 32
        %3614 = vperm.xlu0 %3613, %v3606
        %v3615 = vpop.permute.xlu0 %3614
        %v3617 = vmul.f32 %v3615, %v3506
        %3619 = vset.pattern.permute.xlu0 32
        %3620 = vperm.xlu0 %3619, %v3609
        %v3621 = vpop.permute.xlu0 %3620
        %v3623 = vmul.f32 %v3621, %v3600
        %v3624 = vadd.f32 %v3617, %v3623
        %v3625 = vmul.f32 %v3606, %v3509
        %v3626 = vmul.f32 %v3609, %v3602
        %v3627 = vadd.f32 %v3625, %v3626
        %v3628 = vrot.slane %v2915, 7
        %v3629 = vpack.c.bf16 %v2916, %v2916
        %v3630 = vpack.c.bf16 %v3628, %v3628
        %v3632 = vsel %vm299, %v3630, 0
        %3634 = vmatprep.subr.bf16.mxu0 0
        %3635 = vmatpush1.bf16.msra.mxu0 0
        %3636 = vmatprep.subr.bf16.mxu0 0
        %3637 = vmatpush1.bf16.msra.mxu0 0
        %3638 = vmatprep.subr.bf16.mxu0 0
        %3639 = vmatpush1.bf16.msra.mxu0 0
        %3640 = vmatprep.subr.bf16.mxu0 0
        %3641 = vmatpush1.bf16.msra.mxu0 0
        %3642 = vmatprep.subr.bf16.mxu0 0
        %3643 = vmatpush1.bf16.msra.mxu0 0
        %3644 = vmatprep.subr.bf16.mxu0 0
        %3645 = vmatpush1.bf16.msra.mxu0 %v307
        %3646 = vmatprep.subr.bf16.mxu0 0
        %3647 = vmatpush1.bf16.msra.mxu0 %v295
        %3648 = vmatprep.subr.bf16.mxu0 0
        %3649 = vmatpush1.bf16.msra.mxu0 %v294
        %3650 = vmatprep.subr.bf16.mxu0 0
        %3651 = vmatpush2.bf16.msra.mxu0 0
        %3652 = vmatprep.subr.bf16.mxu0 0
        %3653 = vmatpush2.bf16.msra.mxu0 0
        %3654 = vmatprep.subr.bf16.mxu0 0
        %3655 = vmatpush2.bf16.msra.mxu0 0
        %3656 = vmatprep.subr.bf16.mxu0 0
        %3657 = vmatpush2.bf16.msra.mxu0 0
        %3658 = vmatprep.subr.bf16.mxu0 0
        %3659 = vmatpush2.bf16.msra.mxu0 0
        %3660 = vmatprep.subr.bf16.mxu0 0
        %3661 = vmatpush2.bf16.msra.mxu0 0
        %3662 = vmatprep.subr.bf16.mxu0 0
        %3663 = vmatpush2.bf16.msra.mxu0 0
        %3664 = vmatprep.subr.bf16.mxu0 0
        %3665 = vmatpush2.bf16.msra.mxu0 0
        %3666 = vmatprep.mubr.bf16.mxu0 0
        %3667 = vmatmul.mubr.bf16.gmra.mxu0 %v3632
        %v3668 = vpop.f32.mrf.mxu0
        %v3669 = vadd.f32 0.0, %v3668
        %v3670 = vpop.f32.mrf.mxu0
        %v3671 = vpop.f32.mrf.mxu0
        %v3672 = vpop.f32.mrf.mxu0
        %3673 = vdwg.mxu0
        %v3675 = vsel %vm299, %v3629, 0
        %3677 = vmatprep.subr.bf16.mxu0 0
        %3678 = vmatpush1.bf16.msra.mxu0 0
        %3679 = vmatprep.subr.bf16.mxu0 0
        %3680 = vmatpush1.bf16.msra.mxu0 0
        %3681 = vmatprep.subr.bf16.mxu0 0
        %3682 = vmatpush1.bf16.msra.mxu0 0
        %3683 = vmatprep.subr.bf16.mxu0 0
        %3684 = vmatpush1.bf16.msra.mxu0 0
        %3685 = vmatprep.subr.bf16.mxu0 0
        %3686 = vmatpush1.bf16.msra.mxu0 0
        %3687 = vmatprep.subr.bf16.mxu0 0
        %3688 = vmatpush1.bf16.msra.mxu0 %v368
        %3689 = vmatprep.subr.bf16.mxu0 0
        %3690 = vmatpush1.bf16.msra.mxu0 %v360
        %3691 = vmatprep.subr.bf16.mxu0 0
        %3692 = vmatpush1.bf16.msra.mxu0 %v359
        %3693 = vmatprep.subr.bf16.mxu0 0
        %3694 = vmatpush2.bf16.msra.mxu0 0
        %3695 = vmatprep.subr.bf16.mxu0 0
        %3696 = vmatpush2.bf16.msra.mxu0 0
        %3697 = vmatprep.subr.bf16.mxu0 0
        %3698 = vmatpush2.bf16.msra.mxu0 0
        %3699 = vmatprep.subr.bf16.mxu0 0
        %3700 = vmatpush2.bf16.msra.mxu0 0
        %3701 = vmatprep.subr.bf16.mxu0 0
        %3702 = vmatpush2.bf16.msra.mxu0 0
        %3703 = vmatprep.subr.bf16.mxu0 0
        %3704 = vmatpush2.bf16.msra.mxu0 0
        %3705 = vmatprep.subr.bf16.mxu0 0
        %3706 = vmatpush2.bf16.msra.mxu0 0
        %3707 = vmatprep.subr.bf16.mxu0 0
        %3708 = vmatpush2.bf16.msra.mxu0 0
        %3709 = vmatprep.mubr.bf16.mxu0 0
        %3710 = vmatmul.mubr.bf16.gmra.mxu0 %v3675
        %v3711 = vpop.f32.mrf.mxu0
        %v3712 = vadd.f32 %v3669, %v3711
        %v3713 = vpop.f32.mrf.mxu0
        %v3714 = vpop.f32.mrf.mxu0
        %v3715 = vpop.f32.mrf.mxu0
        %3716 = vdwg.mxu0
        %v3717 = vadd.f32 %v3712, %v258
        %v3718 = vtanh.pop %v3717
        %v3719 = vadd.f32 %v3712, %v2916
        %v3720 = vadd.f32 %v3719, %v3628
        %v3721 = vmax.f32 %v3603, %v3720
        %v3722 = vsub.f32 %v3603, %v3721
        %v3723 = vmul.f32 %v3722, 1.442695
        %v3724 = vpow.pop %v3723
        %v3725 = vsub.f32 %v3720, %v3721
        %v3726 = vmul.f32 %v3725, 1.442695
        %v3727 = vpow.pop %v3726
        %v3728 = vmul.f32 %v3724, %v3611
        %v3729 = vadd.f32 %v3728, %v3727
        %3731 = vset.pattern.permute.xlu0 32
        %3732 = vperm.xlu0 %3731, %v3724
        %v3733 = vpop.permute.xlu0 %3732
        %v3735 = vmul.f32 %v3733, %v3624
        %3737 = vset.pattern.permute.xlu0 32
        %3738 = vperm.xlu0 %3737, %v3727
        %v3739 = vpop.permute.xlu0 %3738
        %v3741 = vmul.f32 %v3739, %v3718
        %v3742 = vadd.f32 %v3735, %v3741
        %v3743 = vmul.f32 %v3724, %v3627
        %v3744 = vmul.f32 %v3727, %v3720
        %v3745 = vadd.f32 %v3743, %v3744
        %v3746 = vrcp.pop %v3729
        %vm3747 = vcmp.lt.s32.totalorder %v273, 1
        %3749 = vset.pattern.permute.xlu0 32
        %3750 = vperm.xlu0 %3749, %v3746
        %v3751 = vpop.permute.xlu0 %3750
        %v3753 = vmul.f32 %v3742, %v3751
        %v3754 = vsel %vm3747, 1, 0
        %vm3755 = vcmp.eq.s32.totalorder %v3754, 1
        %v3756 = vsel %vm3755, %v3753, 0.0
        %v3757 = vmul.f32 %v3745, %v3746
        %v3758 = vsel %vm3747, %v3757, 0.0
        %s3759 = scalar_lea.vmem [#allocation2], 56
        %3760 = vst.msk [vmem:[%s3759] sm:$0xff] %vm275, %v3756
        %3761 = vst.msk [vmem:[%s3759] sm:$0xff] %vm277, %v3758
        %s3762 = scalar_lea.vmem %s241, 56 [#allocation9]
        %3763 = vst.msk [vmem:[%s3762] sm:$0xff] %vm275, %v3756
        %s3764 = sand.u32 %s119, 1
        %s3765 = scalar_lea.sflag [#allocation5], %s3764
        %s3766 = sand.u32 %s119, 1
        %s3767 = smul.addr %s3766, 64
        %s3768 = scalar_lea.vmem [#allocation9], %s3767
        // Predicated region
        $region49: #{tpu_custom_call.1} parent=35 // pred_check
          %p3769 = pneg %p129
        $region50: #{tpu_custom_call.1} parent=35 // pred_check_branch
          %3771 = sbr.rel (%p3769) target = $region52
        $region51: #{tpu_custom_call.1} parent=35 // pred_region
          %s3773 = ssub.s32 1024, 1024
          %3774 = vsyncadd %s3765, %s3773
          %s3775 = smul.addr %s22, 8
          %s3776 = smul.addr %s3775, 128
          %s3777 = scalar_lea.hbm %s4, %s3776
          %s3778 = sshll.u32 %s3768, 4
          %s3779 = int_to_ptr.vmem [resolvable:$true] %s3778
          %3784 = dma.vmem_to_hbm [thread:$0]  %s3779, 1024, %s3777, %s3765, 128, 128, 8
        $region52: #{tpu_custom_call.1} parent=35 // pred_fallthru
          _
      $region36: #{tpu_custom_call.1} parent=5 // pred_fallthru
        _
      %p3785 = scmp.le.s32.totalorder 2, %s17
      // Predicated region
      $region53: #{tpu_custom_call.1} parent=5 // pred_check
        %p3786 = pneg %p3785
      $region54: #{tpu_custom_call.1} parent=5 // pred_check_branch
        %3788 = sbr.rel (%p3786) target = $region56
      $region55: #{tpu_custom_call.1} parent=5 // pred_region
        %s3789 = ssub.s32 %s17, 2
        // Predicated region
        $region57: #{tpu_custom_call.1} parent=55 // pred_check
          %p3790 = pneg %p135
        $region58: #{tpu_custom_call.1} parent=55 // pred_check_branch
          %3792 = sbr.rel (%p3790) target = $region60
        $region59: #{tpu_custom_call.1} parent=55 // pred_region
          %s3793 = sand.u32 %s120, 1
          %s3794 = scalar_lea.sflag [#allocation5], %s3793
          %s3795 = sand.u32 %s120, 1
          %s3796 = smul.addr %s3795, 64
          %s3797 = scalar_lea.vmem [#allocation9], %s3796
          %3798 = dma.done %s3794, 1024
        $region60: #{tpu_custom_call.1} parent=55 // pred_fallthru
          _
      $region56: #{tpu_custom_call.1} parent=5 // pred_fallthru
        _
    $region6: #{tpu_custom_call.1} parent=1 // loop_footer
      %s21 = sadd.s32 1, %s17
    $region7: #{tpu_custom_call.1} parent=1 // loop_footer_branch
      %16 = sbr.rel target = $region3
    $region8: #{tpu_custom_call.1} parent=1 // loop_exit
      _
    %3799 = vsyncpa [#allocation4], 1
    %s3800 = scalar_lea.sflag [#allocation4], 1
    %3801 = vsyncpa %s3800, 1
    %3802 = vsyncpa [#allocation7], 1
    %3803 = vsyncpa [#allocation5], 1
    %s3804 = scalar_lea.sflag [#allocation5], 1
    %3805 = vsyncpa %s3804, 1

</llo_original>
